<compile_context>
chip_gen: v7x
topology: tpu7x:2x2x1
jax: 0.10.0
libtpu: 0.0.40
codegen_flags: <defaults>
</compile_context>

<pallas_src>
import functools
import math

import jax
import jax.numpy as jnp
from jax import lax
from jax.experimental import pallas as pl
from jax.experimental.pallas import tpu as pltpu


# ------------------------------ DFT bases ------------------------------------

def _rdft_mats(n, scale=1.0):
    """Ortho rfft as matmul: real = C @ x, imag = S @ x, each [nf, n]."""
    nf = n // 2 + 1
    f = jnp.arange(nf, dtype=jnp.float32)[:, None]
    t = jnp.arange(n, dtype=jnp.float32)[None, :]
    ang = 2.0 * math.pi * f * t / n
    s = jnp.float32(scale / math.sqrt(n))
    return jnp.cos(ang) * s, -jnp.sin(ang) * s


def _irdft_mats(n):
    """Ortho irfft as matmul: x = Cr @ real + Ci @ imag, each [n, nf]."""
    nf = n // 2 + 1
    t = jnp.arange(n, dtype=jnp.float32)[:, None]
    f = jnp.arange(nf, dtype=jnp.float32)[None, :]
    ang = 2.0 * math.pi * t * f / n
    w = jnp.full((nf,), 2.0, dtype=jnp.float32)
    w = w.at[0].set(1.0)                      # DC counted once
    if n % 2 == 0:
        w = w.at[nf - 1].set(1.0)             # Nyquist counted once
    s = 1.0 / math.sqrt(n)
    cr = jnp.cos(ang) * (w[None, :] * s)
    ci = -jnp.sin(ang) * (w[None, :] * s)
    return cr, ci


# ------------------------------- kernel --------------------------------------

def _fourier_attn_kernel(xq_ref, xk_ref, xv_ref,
                         fqc_ref, fqs_ref, fvc_ref, fvs_ref, icr_ref, ici_ref,
                         out_ref, o_r_ref, o_i_ref, *, n_heads, head_dim):
    E = head_dim
    f32 = jnp.float32

    xq = xq_ref[...]       # [L,   G*E]   (heads packed along lanes)
    xk = xk_ref[...]       # [G*E, S  ]   (heads packed along sublanes)
    xv = xv_ref[...]       # [S,   G*E]
    fqc = fqc_ref[...]     # [Lf, L]  -- 1/(sqrt(E)*T) pre-folded into this basis
    fqs = fqs_ref[...]
    fvc = fvc_ref[...]     # [Sf, S]
    fvs = fvs_ref[...]
    icr = icr_ref[...]     # [L, Lf]
    ici = ici_ref[...]

    # Batched forward real-DFTs: one matmul each with M or N = G*E (MXU fill).
    qr = jnp.dot(fqc, xq, preferred_element_type=f32)               # [Lf, G*E]
    qi = jnp.dot(fqs, xq, preferred_element_type=f32)
    dn = (((1,), (1,)), ((), ()))                                   # contract S
    kr = lax.dot_general(xk, fvc, dn, preferred_element_type=f32)   # [G*E, Sf]
    ki = lax.dot_general(xk, fvs, dn, preferred_element_type=f32)
    vr = jnp.dot(fvc, xv, preferred_element_type=f32)               # [Sf, G*E]
    vi = jnp.dot(fvs, xv, preferred_element_type=f32)

    # Per-head frequency-domain attention (E-contraction is inherently per-head).
    for g in range(n_heads):
        lo, hi = g * E, (g + 1) * E
        qr_h, qi_h = qr[:, lo:hi], qi[:, lo:hi]      # [Lf, E]
        kr_h, ki_h = kr[lo:hi, :], ki[lo:hi, :]      # [E, Sf]
        vr_h, vi_h = vr[:, lo:hi], vi[:, lo:hi]      # [Sf, E]

        # A = Qf . conj(Kf):  real = qr.kr + qi.ki,  imag = qi.kr - qr.ki
        a_real = (jnp.dot(qr_h, kr_h, preferred_element_type=f32)
                  + jnp.dot(qi_h, ki_h, preferred_element_type=f32))
        a_imag = (jnp.dot(qi_h, kr_h, preferred_element_type=f32)
                  - jnp.dot(qr_h, ki_h, preferred_element_type=f32))

        # softmax(|A| / (sqrt(E) * T)); the scale is already in the Q basis.
        a_abs = jnp.sqrt(a_real * a_real + a_imag * a_imag)         # [Lf, Sf]
        m = jnp.max(a_abs, axis=-1, keepdims=True)
        p = jnp.exp(a_abs - m)
        attn = p / jnp.sum(p, axis=-1, keepdims=True)               # exact recip

        # Of = attn @ Vf, accumulated into the head-packed frequency slabs.
        o_r_ref[:, lo:hi] = jnp.dot(attn, vr_h, preferred_element_type=f32)
        o_i_ref[:, lo:hi] = jnp.dot(attn, vi_h, preferred_element_type=f32)

    # Batched inverse real-DFT; single lane-dense store of the [L, G*E] block.
    out_ref[...] = (jnp.dot(icr, o_r_ref[...], preferred_element_type=f32)
                    + jnp.dot(ici, o_i_ref[...], preferred_element_type=f32))


# -------------------------- group / VMEM heuristics ---------------------------

def _rup(x, m):
    return -(-x // m) * m


def _pad2_bytes(r, c):
    """Padded f32 bytes of an [r, c] VMEM tile ((8,128) tiling)."""
    return _rup(r, 8) * _rup(c, 128) * 4


def _vmem_estimate(g, L, S, E, Lf, Sf):
    ge = g * E
    io = 2 * (2 * _pad2_bytes(L, ge) + _pad2_bytes(ge, S) + _pad2_bytes(S, ge))
    bases = 2 * (2 * _pad2_bytes(Lf, L) + 2 * _pad2_bytes(Sf, S)
                 + 2 * _pad2_bytes(L, Lf))
    mid = (6 * _pad2_bytes(Lf, ge) + 2 * _pad2_bytes(ge, Sf)
           + 2 * _pad2_bytes(Sf, ge) + 6 * _pad2_bytes(Lf, Sf)
           + 2 * _pad2_bytes(Lf, ge))          # o_r / o_i scratch
    return io + bases + mid


def _default_vmem_limit_bytes():
    kind = ""
    try:
        kind = jax.devices()[0].device_kind.lower()
    except Exception:
        pass
    if "v7" in kind:
        return 48 * 1024 * 1024          # 64 MiB physical VMEM per TensorCore
    if any(t in kind for t in ("v6", "v5", "v4")):
        return 96 * 1024 * 1024          # 128 MiB physical VMEM
    return 48 * 1024 * 1024              # conservative default


def _pick_group(bh, L, S, E, budget_bytes, max_g=8):
    """Largest head-group that fits the VMEM budget; prefer an even #steps."""
    Lf, Sf = L // 2 + 1, S // 2 + 1
    divs = [d for d in range(1, min(bh, max_g) + 1) if bh % d == 0]
    fits = [d for d in divs if _vmem_estimate(d, L, S, E, Lf, Sf) <= budget_bytes]
    if not fits:
        return 1
    # Even step count >= 2 keeps both v7x TensorCores busy on the parallel axis.
    even = [d for d in fits if (bh // d) >= 2 and (bh // d) % 2 == 0]
    return max(even) if even else max(fits)


# ------------------------------- wrapper --------------------------------------

def ds_fourier_attention(q, k, v, *, T=1.0, group=None, vmem_limit_bytes=None):
    """Pallas implementation of DSFourierAttention.forward (softmax branch).

    Returns only `out` (output_attention=False, tau=None -> *1, delta=None -> +0).
    """
    B, L, H, E = q.shape
    S = k.shape[1]
    Lf, Sf = L // 2 + 1, S // 2 + 1
    BH = B * H

    vmem_limit = (_default_vmem_limit_bytes() if vmem_limit_bytes is None
                  else vmem_limit_bytes)
    G = (_pick_group(BH, L, S, E, budget_bytes=int(0.6 * vmem_limit))
         if group is None else group)
    assert BH % G == 0, (BH, G)
    nblk = BH // G
    GE = G * E
    f32 = jnp.float32

    # Head-packed layouts (single XLA copies, fused by the compiler):
    #   xq / xv / out : heads along lanes    -> [nblk, L|S, G*E]
    #   xk            : heads along sublanes -> [nblk, G*E, S]
    xq = jnp.transpose(q, (0, 2, 1, 3)).reshape(nblk, G, L, E)
    xq = jnp.transpose(xq, (0, 2, 1, 3)).reshape(nblk, L, GE).astype(f32)
    xv = jnp.transpose(v, (0, 2, 1, 3)).reshape(nblk, G, S, E)
    xv = jnp.transpose(xv, (0, 2, 1, 3)).reshape(nblk, S, GE).astype(f32)
    xk = jnp.transpose(k, (0, 2, 3, 1)).reshape(nblk, GE, S).astype(f32)

    # DFT / iDFT bases (tiny, shared across all grid steps; softmax scale
    # folded into the Q basis).
    fqc, fqs = _rdft_mats(L, scale=1.0 / (math.sqrt(E) * float(T)))   # [Lf, L]
    fvc, fvs = _rdft_mats(S)                                          # [Sf, S]
    icr, ici = _irdft_mats(L)                                         # [L, Lf]

    # TODO(synk): no FFT primitive in Pallas -> exact O(n^2) real-DFT matmuls;
    # for very long sequences stage the transform or fall back to jnp.fft glue.
    kernel = functools.partial(_fourier_attn_kernel, n_heads=G, head_dim=E)

    def _const_spec(r, c):
        return pl.BlockSpec((r, c), lambda i: (0, 0))

    out = pl.pallas_call(
        kernel,
        out_shape=jax.ShapeDtypeStruct((nblk, L, GE), f32),
        grid=(nblk,),
        in_specs=[
            pl.BlockSpec((None, L, GE), lambda i: (i, 0, 0)),
            pl.BlockSpec((None, GE, S), lambda i: (i, 0, 0)),
            pl.BlockSpec((None, S, GE), lambda i: (i, 0, 0)),
            _const_spec(Lf, L), _const_spec(Lf, L),
            _const_spec(Sf, S), _const_spec(Sf, S),
            _const_spec(L, Lf), _const_spec(L, Lf),
        ],
        out_specs=pl.BlockSpec((None, L, GE), lambda i: (i, 0, 0)),
        scratch_shapes=[pltpu.VMEM((Lf, GE), f32),
                        pltpu.VMEM((Lf, GE), f32)],
        compiler_params=pltpu.CompilerParams(
            dimension_semantics=("parallel",),
            vmem_limit_bytes=vmem_limit),
    )(xq, xk, xv, fqc, fqs, fvc, fvs, icr, ici)

    out = out.reshape(nblk, L, G, E)
    out = jnp.transpose(out, (0, 2, 1, 3)).reshape(B, H, L, E)
    return jnp.transpose(out, (0, 2, 1, 3)).astype(q.dtype)   # [B, L, H, E]


# ------------------------------ reference -------------------------------------

def ds_fourier_attention_reference(q, k, v, *, T=1.0):
    """Pure-JAX reference mirroring the PyTorch module (softmax branch)."""
    B, L, H, E = q.shape
    xq = jnp.transpose(q, (0, 2, 3, 1)).astype(jnp.float32)
    xk = jnp.transpose(k, (0, 2, 3, 1)).astype(jnp.float32)
    xv = jnp.transpose(v, (0, 2, 3, 1)).astype(jnp.float32)
    qf = jnp.fft.rfft(xq, axis=-1, norm='ortho')
    kf = jnp.fft.rfft(xk, axis=-1, norm='ortho')
    vf = jnp.fft.rfft(xv, axis=-1, norm='ortho')
    xqk = jnp.einsum('bhex,bhey->bhxy', qf, jnp.conj(kf)) / math.sqrt(E)
    w = jax.nn.softmax(jnp.abs(xqk) / T, axis=-1)
    xqkv = jnp.einsum('bhxy,bhey->bhex', w.astype(vf.dtype), vf)
    out = jnp.fft.irfft(xqkv, n=L, axis=-1, norm='ortho')
    return jnp.transpose(out, (0, 3, 1, 2))


if __name__ == "__main__":
    # Shapes consistent with the module forward: q:[B,L,H,E], k,v:[B,S,H,E]
    B, L, S, H, E = 2, 16, 16, 4, 32
    key = jax.random.PRNGKey(0)
    kq, kk, kv = jax.random.split(key, 3)
    q = jax.random.normal(kq, (B, L, H, E), dtype=jnp.float32)
    k = jax.random.normal(kk, (B, S, H, E), dtype=jnp.float32)
    v = jax.random.normal(kv, (B, S, H, E), dtype=jnp.float32)

    out = jax.block_until_ready(ds_fourier_attention(q, k, v, T=1.0))
    ref = jax.block_until_ready(ds_fourier_attention_reference(q, k, v, T=1.0))

    assert out.shape == (B, L, H, E), out.shape
    max_err = float(jnp.max(jnp.abs(out - ref)))
    assert max_err < 2e-3, max_err

    print("KERNEL_OK")
</pallas_src>

<mosaic_0001>
module attributes {stable_mosaic.version = 11 : i64} {
  func.func @_fourier_attn_kernel(%arg0: i32, %arg1: memref<1x16x128xf32, #tpu.memory_space<vmem>>, %arg2: memref<1x128x16xf32, #tpu.memory_space<vmem>>, %arg3: memref<1x16x128xf32, #tpu.memory_space<vmem>>, %arg4: memref<9x16xf32, #tpu.memory_space<vmem>>, %arg5: memref<9x16xf32, #tpu.memory_space<vmem>>, %arg6: memref<9x16xf32, #tpu.memory_space<vmem>>, %arg7: memref<9x16xf32, #tpu.memory_space<vmem>>, %arg8: memref<16x9xf32, #tpu.memory_space<vmem>>, %arg9: memref<16x9xf32, #tpu.memory_space<vmem>>, %arg10: memref<1x16x128xf32, #tpu.memory_space<vmem>>, %arg11: memref<9x128xf32, #tpu.memory_space<vmem>>, %arg12: memref<9x128xf32, #tpu.memory_space<vmem>>) attributes {dimension_semantics = [#tpu.dimension_semantics<parallel>], iteration_bounds = array<i64: 2>, scalar_prefetch = 0 : i64, scratch_operands = 2 : i64, tpu.core_type = #tpu.core_type<tc>, window_params = [{transform_indices = @transform_0, window_bounds = array<i64: 1, 16, 128>}, {transform_indices = @transform_1, window_bounds = array<i64: 1, 128, 16>}, {transform_indices = @transform_2, window_bounds = array<i64: 1, 16, 128>}, {pipeline_mode = #tpu.pipeline_mode<synchronous>, transform_indices = @transform_3, window_bounds = array<i64: 9, 16>}, {pipeline_mode = #tpu.pipeline_mode<synchronous>, transform_indices = @transform_4, window_bounds = array<i64: 9, 16>}, {pipeline_mode = #tpu.pipeline_mode<synchronous>, transform_indices = @transform_5, window_bounds = array<i64: 9, 16>}, {pipeline_mode = #tpu.pipeline_mode<synchronous>, transform_indices = @transform_6, window_bounds = array<i64: 9, 16>}, {pipeline_mode = #tpu.pipeline_mode<synchronous>, transform_indices = @transform_7, window_bounds = array<i64: 16, 9>}, {pipeline_mode = #tpu.pipeline_mode<synchronous>, transform_indices = @transform_8, window_bounds = array<i64: 16, 9>}, {transform_indices = @transform_9, window_bounds = array<i64: 1, 16, 128>}]} {
    %c0 = arith.constant 0 : index
    %c0_0 = arith.constant 0 : index
    %c0_1 = arith.constant 0 : index
    %0 = vector.load %arg1[%c0, %c0_0, %c0_1] : memref<1x16x128xf32, #tpu.memory_space<vmem>>, vector<1x16x128xf32>
    %1 = vector.shape_cast %0 : vector<1x16x128xf32> to vector<16x128xf32>
    %c0_2 = arith.constant 0 : index
    %c0_3 = arith.constant 0 : index
    %c0_4 = arith.constant 0 : index
    %2 = vector.load %arg2[%c0_2, %c0_3, %c0_4] : memref<1x128x16xf32, #tpu.memory_space<vmem>>, vector<1x128x16xf32>
    %3 = vector.shape_cast %2 : vector<1x128x16xf32> to vector<128x16xf32>
    %c0_5 = arith.constant 0 : index
    %c0_6 = arith.constant 0 : index
    %c0_7 = arith.constant 0 : index
    %4 = vector.load %arg3[%c0_5, %c0_6, %c0_7] : memref<1x16x128xf32, #tpu.memory_space<vmem>>, vector<1x16x128xf32>
    %5 = vector.shape_cast %4 : vector<1x16x128xf32> to vector<16x128xf32>
    %c0_8 = arith.constant 0 : index
    %c0_9 = arith.constant 0 : index
    %6 = vector.load %arg4[%c0_8, %c0_9] : memref<9x16xf32, #tpu.memory_space<vmem>>, vector<9x16xf32>
    %c0_10 = arith.constant 0 : index
    %c0_11 = arith.constant 0 : index
    %7 = vector.load %arg5[%c0_10, %c0_11] : memref<9x16xf32, #tpu.memory_space<vmem>>, vector<9x16xf32>
    %c0_12 = arith.constant 0 : index
    %c0_13 = arith.constant 0 : index
    %8 = vector.load %arg6[%c0_12, %c0_13] : memref<9x16xf32, #tpu.memory_space<vmem>>, vector<9x16xf32>
    %c0_14 = arith.constant 0 : index
    %c0_15 = arith.constant 0 : index
    %9 = vector.load %arg7[%c0_14, %c0_15] : memref<9x16xf32, #tpu.memory_space<vmem>>, vector<9x16xf32>
    %c0_16 = arith.constant 0 : index
    %c0_17 = arith.constant 0 : index
    %10 = vector.load %arg8[%c0_16, %c0_17] : memref<16x9xf32, #tpu.memory_space<vmem>>, vector<16x9xf32>
    %c0_18 = arith.constant 0 : index
    %c0_19 = arith.constant 0 : index
    %11 = vector.load %arg9[%c0_18, %c0_19] : memref<16x9xf32, #tpu.memory_space<vmem>>, vector<16x9xf32>
    %cst = arith.constant dense<0.000000e+00> : vector<9x128xf32>
    %12 = tpu.matmul %6, %1, %cst {dimension_numbers = #tpu.dot_dimension_numbers<[1], [0], [0], [1], [0, 0, 1, 1], [], []>} : vector<9x16xf32>, vector<16x128xf32>, vector<9x128xf32> -> vector<9x128xf32>
    %cst_20 = arith.constant dense<0.000000e+00> : vector<9x128xf32>
    %13 = tpu.matmul %7, %1, %cst_20 {dimension_numbers = #tpu.dot_dimension_numbers<[1], [0], [0], [1], [0, 0, 1, 1], [], []>} : vector<9x16xf32>, vector<16x128xf32>, vector<9x128xf32> -> vector<9x128xf32>
    %cst_21 = arith.constant dense<0.000000e+00> : vector<128x9xf32>
    %14 = tpu.matmul %3, %8, %cst_21 {dimension_numbers = #tpu.dot_dimension_numbers<[1], [1], [0], [0], [0, 0, 1, 0], [], []>} : vector<128x16xf32>, vector<9x16xf32>, vector<128x9xf32> -> vector<128x9xf32>
    %cst_22 = arith.constant dense<0.000000e+00> : vector<128x9xf32>
    %15 = tpu.matmul %3, %9, %cst_22 {dimension_numbers = #tpu.dot_dimension_numbers<[1], [1], [0], [0], [0, 0, 1, 0], [], []>} : vector<128x16xf32>, vector<9x16xf32>, vector<128x9xf32> -> vector<128x9xf32>
    %cst_23 = arith.constant dense<0.000000e+00> : vector<9x128xf32>
    %16 = tpu.matmul %8, %5, %cst_23 {dimension_numbers = #tpu.dot_dimension_numbers<[1], [0], [0], [1], [0, 0, 1, 1], [], []>} : vector<9x16xf32>, vector<16x128xf32>, vector<9x128xf32> -> vector<9x128xf32>
    %cst_24 = arith.constant dense<0.000000e+00> : vector<9x128xf32>
    %17 = tpu.matmul %9, %5, %cst_24 {dimension_numbers = #tpu.dot_dimension_numbers<[1], [0], [0], [1], [0, 0, 1, 1], [], []>} : vector<9x16xf32>, vector<16x128xf32>, vector<9x128xf32> -> vector<9x128xf32>
    %18 = vector.extract_strided_slice %12 {offsets = [0, 0], sizes = [9, 32], strides = [1, 1]} : vector<9x128xf32> to vector<9x32xf32>
    %19 = vector.extract_strided_slice %13 {offsets = [0, 0], sizes = [9, 32], strides = [1, 1]} : vector<9x128xf32> to vector<9x32xf32>
    %20 = vector.extract_strided_slice %14 {offsets = [0, 0], sizes = [32, 9], strides = [1, 1]} : vector<128x9xf32> to vector<32x9xf32>
    %21 = vector.extract_strided_slice %15 {offsets = [0, 0], sizes = [32, 9], strides = [1, 1]} : vector<128x9xf32> to vector<32x9xf32>
    %22 = vector.extract_strided_slice %16 {offsets = [0, 0], sizes = [9, 32], strides = [1, 1]} : vector<9x128xf32> to vector<9x32xf32>
    %23 = vector.extract_strided_slice %17 {offsets = [0, 0], sizes = [9, 32], strides = [1, 1]} : vector<9x128xf32> to vector<9x32xf32>
    %cst_25 = arith.constant dense<0.000000e+00> : vector<9x9xf32>
    %24 = tpu.matmul %18, %20, %cst_25 {dimension_numbers = #tpu.dot_dimension_numbers<[1], [0], [0], [1], [0, 0, 1, 1], [], []>} : vector<9x32xf32>, vector<32x9xf32>, vector<9x9xf32> -> vector<9x9xf32>
    %cst_26 = arith.constant dense<0.000000e+00> : vector<9x9xf32>
    %25 = tpu.matmul %19, %21, %cst_26 {dimension_numbers = #tpu.dot_dimension_numbers<[1], [0], [0], [1], [0, 0, 1, 1], [], []>} : vector<9x32xf32>, vector<32x9xf32>, vector<9x9xf32> -> vector<9x9xf32>
    %26 = arith.addf %24, %25 : vector<9x9xf32>
    %cst_27 = arith.constant dense<0.000000e+00> : vector<9x9xf32>
    %27 = tpu.matmul %19, %20, %cst_27 {dimension_numbers = #tpu.dot_dimension_numbers<[1], [0], [0], [1], [0, 0, 1, 1], [], []>} : vector<9x32xf32>, vector<32x9xf32>, vector<9x9xf32> -> vector<9x9xf32>
    %cst_28 = arith.constant dense<0.000000e+00> : vector<9x9xf32>
    %28 = tpu.matmul %18, %21, %cst_28 {dimension_numbers = #tpu.dot_dimension_numbers<[1], [0], [0], [1], [0, 0, 1, 1], [], []>} : vector<9x32xf32>, vector<32x9xf32>, vector<9x9xf32> -> vector<9x9xf32>
    %29 = arith.subf %27, %28 : vector<9x9xf32>
    %30 = arith.mulf %26, %26 : vector<9x9xf32>
    %31 = arith.mulf %29, %29 : vector<9x9xf32>
    %32 = arith.addf %30, %31 : vector<9x9xf32>
    %33 = math.sqrt %32 : vector<9x9xf32>
    %cst_29 = arith.constant dense<0xFF800000> : vector<9xf32>
    %34 = vector.multi_reduction <maximumf>, %33, %cst_29 [1] : vector<9x9xf32> to vector<9xf32>
    %35 = vector.shape_cast %34 : vector<9xf32> to vector<9x1xf32>
    %36 = vector.broadcast %35 : vector<9x1xf32> to vector<9x9xf32>
    %37 = arith.subf %33, %36 : vector<9x9xf32>
    %38 = math.exp %37 : vector<9x9xf32>
    %cst_30 = arith.constant dense<0.000000e+00> : vector<9xf32>
    %39 = vector.multi_reduction <add>, %38, %cst_30 [1] : vector<9x9xf32> to vector<9xf32>
    %40 = vector.shape_cast %39 : vector<9xf32> to vector<9x1xf32>
    %41 = vector.broadcast %40 : vector<9x1xf32> to vector<9x9xf32>
    %42 = arith.divf %38, %41 : vector<9x9xf32>
    %cst_31 = arith.constant dense<0.000000e+00> : vector<9x32xf32>
    %43 = tpu.matmul %42, %22, %cst_31 {dimension_numbers = #tpu.dot_dimension_numbers<[1], [0], [0], [1], [0, 0, 1, 1], [], []>} : vector<9x9xf32>, vector<9x32xf32>, vector<9x32xf32> -> vector<9x32xf32>
    %c0_32 = arith.constant 0 : index
    %c0_33 = arith.constant 0 : index
    %44 = vector.load %arg11[%c0_32, %c0_33] : memref<9x128xf32, #tpu.memory_space<vmem>>, vector<9x32xf32>
    tpu.vector_store %arg11[%c0_32, %c0_33], %43 {strides = array<i32>} : memref<9x128xf32, #tpu.memory_space<vmem>>, vector<9x32xf32>,
    %cst_34 = arith.constant dense<0.000000e+00> : vector<9x32xf32>
    %45 = tpu.matmul %42, %23, %cst_34 {dimension_numbers = #tpu.dot_dimension_numbers<[1], [0], [0], [1], [0, 0, 1, 1], [], []>} : vector<9x9xf32>, vector<9x32xf32>, vector<9x32xf32> -> vector<9x32xf32>
    %c0_35 = arith.constant 0 : index
    %c0_36 = arith.constant 0 : index
    %46 = vector.load %arg12[%c0_35, %c0_36] : memref<9x128xf32, #tpu.memory_space<vmem>>, vector<9x32xf32>
    tpu.vector_store %arg12[%c0_35, %c0_36], %45 {strides = array<i32>} : memref<9x128xf32, #tpu.memory_space<vmem>>, vector<9x32xf32>,
    %47 = vector.extract_strided_slice %12 {offsets = [0, 32], sizes = [9, 32], strides = [1, 1]} : vector<9x128xf32> to vector<9x32xf32>
    %48 = vector.extract_strided_slice %13 {offsets = [0, 32], sizes = [9, 32], strides = [1, 1]} : vector<9x128xf32> to vector<9x32xf32>
    %49 = vector.extract_strided_slice %14 {offsets = [32, 0], sizes = [32, 9], strides = [1, 1]} : vector<128x9xf32> to vector<32x9xf32>
    %50 = vector.extract_strided_slice %15 {offsets = [32, 0], sizes = [32, 9], strides = [1, 1]} : vector<128x9xf32> to vector<32x9xf32>
    %51 = vector.extract_strided_slice %16 {offsets = [0, 32], sizes = [9, 32], strides = [1, 1]} : vector<9x128xf32> to vector<9x32xf32>
    %52 = vector.extract_strided_slice %17 {offsets = [0, 32], sizes = [9, 32], strides = [1, 1]} : vector<9x128xf32> to vector<9x32xf32>
    %cst_37 = arith.constant dense<0.000000e+00> : vector<9x9xf32>
    %53 = tpu.matmul %47, %49, %cst_37 {dimension_numbers = #tpu.dot_dimension_numbers<[1], [0], [0], [1], [0, 0, 1, 1], [], []>} : vector<9x32xf32>, vector<32x9xf32>, vector<9x9xf32> -> vector<9x9xf32>
    %cst_38 = arith.constant dense<0.000000e+00> : vector<9x9xf32>
    %54 = tpu.matmul %48, %50, %cst_38 {dimension_numbers = #tpu.dot_dimension_numbers<[1], [0], [0], [1], [0, 0, 1, 1], [], []>} : vector<9x32xf32>, vector<32x9xf32>, vector<9x9xf32> -> vector<9x9xf32>
    %55 = arith.addf %53, %54 : vector<9x9xf32>
    %cst_39 = arith.constant dense<0.000000e+00> : vector<9x9xf32>
    %56 = tpu.matmul %48, %49, %cst_39 {dimension_numbers = #tpu.dot_dimension_numbers<[1], [0], [0], [1], [0, 0, 1, 1], [], []>} : vector<9x32xf32>, vector<32x9xf32>, vector<9x9xf32> -> vector<9x9xf32>
    %cst_40 = arith.constant dense<0.000000e+00> : vector<9x9xf32>
    %57 = tpu.matmul %47, %50, %cst_40 {dimension_numbers = #tpu.dot_dimension_numbers<[1], [0], [0], [1], [0, 0, 1, 1], [], []>} : vector<9x32xf32>, vector<32x9xf32>, vector<9x9xf32> -> vector<9x9xf32>
    %58 = arith.subf %56, %57 : vector<9x9xf32>
    %59 = arith.mulf %55, %55 : vector<9x9xf32>
    %60 = arith.mulf %58, %58 : vector<9x9xf32>
    %61 = arith.addf %59, %60 : vector<9x9xf32>
    %62 = math.sqrt %61 : vector<9x9xf32>
    %cst_41 = arith.constant dense<0xFF800000> : vector<9xf32>
    %63 = vector.multi_reduction <maximumf>, %62, %cst_41 [1] : vector<9x9xf32> to vector<9xf32>
    %64 = vector.shape_cast %63 : vector<9xf32> to vector<9x1xf32>
    %65 = vector.broadcast %64 : vector<9x1xf32> to vector<9x9xf32>
    %66 = arith.subf %62, %65 : vector<9x9xf32>
    %67 = math.exp %66 : vector<9x9xf32>
    %cst_42 = arith.constant dense<0.000000e+00> : vector<9xf32>
    %68 = vector.multi_reduction <add>, %67, %cst_42 [1] : vector<9x9xf32> to vector<9xf32>
    %69 = vector.shape_cast %68 : vector<9xf32> to vector<9x1xf32>
    %70 = vector.broadcast %69 : vector<9x1xf32> to vector<9x9xf32>
    %71 = arith.divf %67, %70 : vector<9x9xf32>
    %cst_43 = arith.constant dense<0.000000e+00> : vector<9x32xf32>
    %72 = tpu.matmul %71, %51, %cst_43 {dimension_numbers = #tpu.dot_dimension_numbers<[1], [0], [0], [1], [0, 0, 1, 1], [], []>} : vector<9x9xf32>, vector<9x32xf32>, vector<9x32xf32> -> vector<9x32xf32>
    %c0_44 = arith.constant 0 : index
    %c32 = arith.constant 32 : index
    %73 = vector.load %arg11[%c0_44, %c32] : memref<9x128xf32, #tpu.memory_space<vmem>>, vector<9x32xf32>
    tpu.vector_store %arg11[%c0_44, %c32], %72 {strides = array<i32>} : memref<9x128xf32, #tpu.memory_space<vmem>>, vector<9x32xf32>,
    %cst_45 = arith.constant dense<0.000000e+00> : vector<9x32xf32>
    %74 = tpu.matmul %71, %52, %cst_45 {dimension_numbers = #tpu.dot_dimension_numbers<[1], [0], [0], [1], [0, 0, 1, 1], [], []>} : vector<9x9xf32>, vector<9x32xf32>, vector<9x32xf32> -> vector<9x32xf32>
    %c0_46 = arith.constant 0 : index
    %c32_47 = arith.constant 32 : index
    %75 = vector.load %arg12[%c0_46, %c32_47] : memref<9x128xf32, #tpu.memory_space<vmem>>, vector<9x32xf32>
    tpu.vector_store %arg12[%c0_46, %c32_47], %74 {strides = array<i32>} : memref<9x128xf32, #tpu.memory_space<vmem>>, vector<9x32xf32>,
    %76 = vector.extract_strided_slice %12 {offsets = [0, 64], sizes = [9, 32], strides = [1, 1]} : vector<9x128xf32> to vector<9x32xf32>
    %77 = vector.extract_strided_slice %13 {offsets = [0, 64], sizes = [9, 32], strides = [1, 1]} : vector<9x128xf32> to vector<9x32xf32>
    %78 = vector.extract_strided_slice %14 {offsets = [64, 0], sizes = [32, 9], strides = [1, 1]} : vector<128x9xf32> to vector<32x9xf32>
    %79 = vector.extract_strided_slice %15 {offsets = [64, 0], sizes = [32, 9], strides = [1, 1]} : vector<128x9xf32> to vector<32x9xf32>
    %80 = vector.extract_strided_slice %16 {offsets = [0, 64], sizes = [9, 32], strides = [1, 1]} : vector<9x128xf32> to vector<9x32xf32>
    %81 = vector.extract_strided_slice %17 {offsets = [0, 64], sizes = [9, 32], strides = [1, 1]} : vector<9x128xf32> to vector<9x32xf32>
    %cst_48 = arith.constant dense<0.000000e+00> : vector<9x9xf32>
    %82 = tpu.matmul %76, %78, %cst_48 {dimension_numbers = #tpu.dot_dimension_numbers<[1], [0], [0], [1], [0, 0, 1, 1], [], []>} : vector<9x32xf32>, vector<32x9xf32>, vector<9x9xf32> -> vector<9x9xf32>
    %cst_49 = arith.constant dense<0.000000e+00> : vector<9x9xf32>
    %83 = tpu.matmul %77, %79, %cst_49 {dimension_numbers = #tpu.dot_dimension_numbers<[1], [0], [0], [1], [0, 0, 1, 1], [], []>} : vector<9x32xf32>, vector<32x9xf32>, vector<9x9xf32> -> vector<9x9xf32>
    %84 = arith.addf %82, %83 : vector<9x9xf32>
    %cst_50 = arith.constant dense<0.000000e+00> : vector<9x9xf32>
    %85 = tpu.matmul %77, %78, %cst_50 {dimension_numbers = #tpu.dot_dimension_numbers<[1], [0], [0], [1], [0, 0, 1, 1], [], []>} : vector<9x32xf32>, vector<32x9xf32>, vector<9x9xf32> -> vector<9x9xf32>
    %cst_51 = arith.constant dense<0.000000e+00> : vector<9x9xf32>
    %86 = tpu.matmul %76, %79, %cst_51 {dimension_numbers = #tpu.dot_dimension_numbers<[1], [0], [0], [1], [0, 0, 1, 1], [], []>} : vector<9x32xf32>, vector<32x9xf32>, vector<9x9xf32> -> vector<9x9xf32>
    %87 = arith.subf %85, %86 : vector<9x9xf32>
    %88 = arith.mulf %84, %84 : vector<9x9xf32>
    %89 = arith.mulf %87, %87 : vector<9x9xf32>
    %90 = arith.addf %88, %89 : vector<9x9xf32>
    %91 = math.sqrt %90 : vector<9x9xf32>
    %cst_52 = arith.constant dense<0xFF800000> : vector<9xf32>
    %92 = vector.multi_reduction <maximumf>, %91, %cst_52 [1] : vector<9x9xf32> to vector<9xf32>
    %93 = vector.shape_cast %92 : vector<9xf32> to vector<9x1xf32>
    %94 = vector.broadcast %93 : vector<9x1xf32> to vector<9x9xf32>
    %95 = arith.subf %91, %94 : vector<9x9xf32>
    %96 = math.exp %95 : vector<9x9xf32>
    %cst_53 = arith.constant dense<0.000000e+00> : vector<9xf32>
    %97 = vector.multi_reduction <add>, %96, %cst_53 [1] : vector<9x9xf32> to vector<9xf32>
    %98 = vector.shape_cast %97 : vector<9xf32> to vector<9x1xf32>
    %99 = vector.broadcast %98 : vector<9x1xf32> to vector<9x9xf32>
    %100 = arith.divf %96, %99 : vector<9x9xf32>
    %cst_54 = arith.constant dense<0.000000e+00> : vector<9x32xf32>
    %101 = tpu.matmul %100, %80, %cst_54 {dimension_numbers = #tpu.dot_dimension_numbers<[1], [0], [0], [1], [0, 0, 1, 1], [], []>} : vector<9x9xf32>, vector<9x32xf32>, vector<9x32xf32> -> vector<9x32xf32>
    %c0_55 = arith.constant 0 : index
    %c64 = arith.constant 64 : index
    %102 = vector.load %arg11[%c0_55, %c64] : memref<9x128xf32, #tpu.memory_space<vmem>>, vector<9x32xf32>
    tpu.vector_store %arg11[%c0_55, %c64], %101 {strides = array<i32>} : memref<9x128xf32, #tpu.memory_space<vmem>>, vector<9x32xf32>,
    %cst_56 = arith.constant dense<0.000000e+00> : vector<9x32xf32>
    %103 = tpu.matmul %100, %81, %cst_56 {dimension_numbers = #tpu.dot_dimension_numbers<[1], [0], [0], [1], [0, 0, 1, 1], [], []>} : vector<9x9xf32>, vector<9x32xf32>, vector<9x32xf32> -> vector<9x32xf32>
    %c0_57 = arith.constant 0 : index
    %c64_58 = arith.constant 64 : index
    %104 = vector.load %arg12[%c0_57, %c64_58] : memref<9x128xf32, #tpu.memory_space<vmem>>, vector<9x32xf32>
    tpu.vector_store %arg12[%c0_57, %c64_58], %103 {strides = array<i32>} : memref<9x128xf32, #tpu.memory_space<vmem>>, vector<9x32xf32>,
    %105 = vector.extract_strided_slice %12 {offsets = [0, 96], sizes = [9, 32], strides = [1, 1]} : vector<9x128xf32> to vector<9x32xf32>
    %106 = vector.extract_strided_slice %13 {offsets = [0, 96], sizes = [9, 32], strides = [1, 1]} : vector<9x128xf32> to vector<9x32xf32>
    %107 = vector.extract_strided_slice %14 {offsets = [96, 0], sizes = [32, 9], strides = [1, 1]} : vector<128x9xf32> to vector<32x9xf32>
    %108 = vector.extract_strided_slice %15 {offsets = [96, 0], sizes = [32, 9], strides = [1, 1]} : vector<128x9xf32> to vector<32x9xf32>
    %109 = vector.extract_strided_slice %16 {offsets = [0, 96], sizes = [9, 32], strides = [1, 1]} : vector<9x128xf32> to vector<9x32xf32>
    %110 = vector.extract_strided_slice %17 {offsets = [0, 96], sizes = [9, 32], strides = [1, 1]} : vector<9x128xf32> to vector<9x32xf32>
    %cst_59 = arith.constant dense<0.000000e+00> : vector<9x9xf32>
    %111 = tpu.matmul %105, %107, %cst_59 {dimension_numbers = #tpu.dot_dimension_numbers<[1], [0], [0], [1], [0, 0, 1, 1], [], []>} : vector<9x32xf32>, vector<32x9xf32>, vector<9x9xf32> -> vector<9x9xf32>
    %cst_60 = arith.constant dense<0.000000e+00> : vector<9x9xf32>
    %112 = tpu.matmul %106, %108, %cst_60 {dimension_numbers = #tpu.dot_dimension_numbers<[1], [0], [0], [1], [0, 0, 1, 1], [], []>} : vector<9x32xf32>, vector<32x9xf32>, vector<9x9xf32> -> vector<9x9xf32>
    %113 = arith.addf %111, %112 : vector<9x9xf32>
    %cst_61 = arith.constant dense<0.000000e+00> : vector<9x9xf32>
    %114 = tpu.matmul %106, %107, %cst_61 {dimension_numbers = #tpu.dot_dimension_numbers<[1], [0], [0], [1], [0, 0, 1, 1], [], []>} : vector<9x32xf32>, vector<32x9xf32>, vector<9x9xf32> -> vector<9x9xf32>
    %cst_62 = arith.constant dense<0.000000e+00> : vector<9x9xf32>
    %115 = tpu.matmul %105, %108, %cst_62 {dimension_numbers = #tpu.dot_dimension_numbers<[1], [0], [0], [1], [0, 0, 1, 1], [], []>} : vector<9x32xf32>, vector<32x9xf32>, vector<9x9xf32> -> vector<9x9xf32>
    %116 = arith.subf %114, %115 : vector<9x9xf32>
    %117 = arith.mulf %113, %113 : vector<9x9xf32>
    %118 = arith.mulf %116, %116 : vector<9x9xf32>
    %119 = arith.addf %117, %118 : vector<9x9xf32>
    %120 = math.sqrt %119 : vector<9x9xf32>
    %cst_63 = arith.constant dense<0xFF800000> : vector<9xf32>
    %121 = vector.multi_reduction <maximumf>, %120, %cst_63 [1] : vector<9x9xf32> to vector<9xf32>
    %122 = vector.shape_cast %121 : vector<9xf32> to vector<9x1xf32>
    %123 = vector.broadcast %122 : vector<9x1xf32> to vector<9x9xf32>
    %124 = arith.subf %120, %123 : vector<9x9xf32>
    %125 = math.exp %124 : vector<9x9xf32>
    %cst_64 = arith.constant dense<0.000000e+00> : vector<9xf32>
    %126 = vector.multi_reduction <add>, %125, %cst_64 [1] : vector<9x9xf32> to vector<9xf32>
    %127 = vector.shape_cast %126 : vector<9xf32> to vector<9x1xf32>
    %128 = vector.broadcast %127 : vector<9x1xf32> to vector<9x9xf32>
    %129 = arith.divf %125, %128 : vector<9x9xf32>
    %cst_65 = arith.constant dense<0.000000e+00> : vector<9x32xf32>
    %130 = tpu.matmul %129, %109, %cst_65 {dimension_numbers = #tpu.dot_dimension_numbers<[1], [0], [0], [1], [0, 0, 1, 1], [], []>} : vector<9x9xf32>, vector<9x32xf32>, vector<9x32xf32> -> vector<9x32xf32>
    %c0_66 = arith.constant 0 : index
    %c96 = arith.constant 96 : index
    %131 = vector.load %arg11[%c0_66, %c96] : memref<9x128xf32, #tpu.memory_space<vmem>>, vector<9x32xf32>
    tpu.vector_store %arg11[%c0_66, %c96], %130 {strides = array<i32>} : memref<9x128xf32, #tpu.memory_space<vmem>>, vector<9x32xf32>,
    %cst_67 = arith.constant dense<0.000000e+00> : vector<9x32xf32>
    %132 = tpu.matmul %129, %110, %cst_67 {dimension_numbers = #tpu.dot_dimension_numbers<[1], [0], [0], [1], [0, 0, 1, 1], [], []>} : vector<9x9xf32>, vector<9x32xf32>, vector<9x32xf32> -> vector<9x32xf32>
    %c0_68 = arith.constant 0 : index
    %c96_69 = arith.constant 96 : index
    %133 = vector.load %arg12[%c0_68, %c96_69] : memref<9x128xf32, #tpu.memory_space<vmem>>, vector<9x32xf32>
    tpu.vector_store %arg12[%c0_68, %c96_69], %132 {strides = array<i32>} : memref<9x128xf32, #tpu.memory_space<vmem>>, vector<9x32xf32>,
    %c0_70 = arith.constant 0 : index
    %c0_71 = arith.constant 0 : index
    %134 = vector.load %arg11[%c0_70, %c0_71] : memref<9x128xf32, #tpu.memory_space<vmem>>, vector<9x128xf32>
    %cst_72 = arith.constant dense<0.000000e+00> : vector<16x128xf32>
    %135 = tpu.matmul %10, %134, %cst_72 {dimension_numbers = #tpu.dot_dimension_numbers<[1], [0], [0], [1], [0, 0, 1, 1], [], []>} : vector<16x9xf32>, vector<9x128xf32>, vector<16x128xf32> -> vector<16x128xf32>
    %c0_73 = arith.constant 0 : index
    %c0_74 = arith.constant 0 : index
    %136 = vector.load %arg12[%c0_73, %c0_74] : memref<9x128xf32, #tpu.memory_space<vmem>>, vector<9x128xf32>
    %cst_75 = arith.constant dense<0.000000e+00> : vector<16x128xf32>
    %137 = tpu.matmul %11, %136, %cst_75 {dimension_numbers = #tpu.dot_dimension_numbers<[1], [0], [0], [1], [0, 0, 1, 1], [], []>} : vector<16x9xf32>, vector<9x128xf32>, vector<16x128xf32> -> vector<16x128xf32>
    %138 = arith.addf %135, %137 : vector<16x128xf32>
    %c0_76 = arith.constant 0 : index
    %c0_77 = arith.constant 0 : index
    %c0_78 = arith.constant 0 : index
    %139 = vector.load %arg10[%c0_76, %c0_77, %c0_78] : memref<1x16x128xf32, #tpu.memory_space<vmem>>, vector<1x16x128xf32>
    %140 = vector.shape_cast %139 : vector<1x16x128xf32> to vector<16x128xf32>
    %141 = vector.shape_cast %138 : vector<16x128xf32> to vector<1x16x128xf32>
    tpu.vector_store %arg10[%c0_76, %c0_77, %c0_78], %141 {strides = array<i32>} : memref<1x16x128xf32, #tpu.memory_space<vmem>>, vector<1x16x128xf32>,
    return
  }
  func.func @transform_0(%arg0: i32) -> (i32, i32, i32) {
    %c0_i32 = arith.constant 0 : i32
    %c0_i32_0 = arith.constant 0 : i32
    %c0_i32_1 = arith.constant 0 : i32
    return %arg0, %c0_i32, %c0_i32_0 : i32, i32, i32
  }
  func.func @transform_1(%arg0: i32) -> (i32, i32, i32) {
    %c0_i32 = arith.constant 0 : i32
    %c0_i32_0 = arith.constant 0 : i32
    %c0_i32_1 = arith.constant 0 : i32
    return %arg0, %c0_i32, %c0_i32_0 : i32, i32, i32
  }
  func.func @transform_2(%arg0: i32) -> (i32, i32, i32) {
    %c0_i32 = arith.constant 0 : i32
    %c0_i32_0 = arith.constant 0 : i32
    %c0_i32_1 = arith.constant 0 : i32
    return %arg0, %c0_i32, %c0_i32_0 : i32, i32, i32
  }
  func.func @transform_3(%arg0: i32) -> (i32, i32) {
    %c0_i32 = arith.constant 0 : i32
    %c0_i32_0 = arith.constant 0 : i32
    %c0_i32_1 = arith.constant 0 : i32
    return %c0_i32, %c0_i32_0 : i32, i32
  }
  func.func @transform_4(%arg0: i32) -> (i32, i32) {
    %c0_i32 = arith.constant 0 : i32
    %c0_i32_0 = arith.constant 0 : i32
    %c0_i32_1 = arith.constant 0 : i32
    return %c0_i32, %c0_i32_0 : i32, i32
  }
  func.func @transform_5(%arg0: i32) -> (i32, i32) {
    %c0_i32 = arith.constant 0 : i32
    %c0_i32_0 = arith.constant 0 : i32
    %c0_i32_1 = arith.constant 0 : i32
    return %c0_i32, %c0_i32_0 : i32, i32
  }
  func.func @transform_6(%arg0: i32) -> (i32, i32) {
    %c0_i32 = arith.constant 0 : i32
    %c0_i32_0 = arith.constant 0 : i32
    %c0_i32_1 = arith.constant 0 : i32
    return %c0_i32, %c0_i32_0 : i32, i32
  }
  func.func @transform_7(%arg0: i32) -> (i32, i32) {
    %c0_i32 = arith.constant 0 : i32
    %c0_i32_0 = arith.constant 0 : i32
    %c0_i32_1 = arith.constant 0 : i32
    return %c0_i32, %c0_i32_0 : i32, i32
  }
  func.func @transform_8(%arg0: i32) -> (i32, i32) {
    %c0_i32 = arith.constant 0 : i32
    %c0_i32_0 = arith.constant 0 : i32
    %c0_i32_1 = arith.constant 0 : i32
    return %c0_i32, %c0_i32_0 : i32, i32
  }
  func.func @transform_9(%arg0: i32) -> (i32, i32, i32) {
    %c0_i32 = arith.constant 0 : i32
    %c0_i32_0 = arith.constant 0 : i32
    %c0_i32_1 = arith.constant 0 : i32
    return %arg0, %c0_i32, %c0_i32_0 : i32, i32, i32
  }
}

</mosaic_0001>

<llo_original>
// kernel: tpu_custom_call.1
$region0: #{tpu_custom_call.1}
  #allocation0 [shape = 'u32[]', space=smem, size = 0x4, offset = 0x4, fixed_abs, tag = 'smem constant byte address 0x4 - core index']
  #allocation1 [shape = 'u32[144,128]{1,0:T(1,128)}', space=vmem, size = 0x12000, scoped, tag = 'internal scratch']
  #allocation2 [shape = 'f32[9,128]{1,0:T(8,128)}', space=vmem, size = 0x2000, scoped, tag = 'scratch operand']
  #allocation3 [shape = 'f32[9,128]{1,0:T(8,128)}', space=vmem, size = 0x2000, scoped, tag = 'scratch operand']
  %s0 = inlined_call_operand.vmem [shape: f32[2,16,128], index: 0, kind: input, shape index: {}]
  %s1 = inlined_call_operand.vmem [shape: f32[2,128,16], index: 1, kind: input, shape index: {}]
  %s2 = inlined_call_operand.vmem [shape: f32[2,16,128], index: 2, kind: input, shape index: {}]
  %s3 = inlined_call_operand.vmem [shape: f32[9,16], index: 3, kind: input, shape index: {}]
  %s4 = inlined_call_operand.vmem [shape: f32[9,16], index: 4, kind: input, shape index: {}]
  %s5 = inlined_call_operand.vmem [shape: f32[9,16], index: 5, kind: input, shape index: {}]
  %s6 = inlined_call_operand.vmem [shape: f32[9,16], index: 6, kind: input, shape index: {}]
  %s7 = inlined_call_operand.vmem [shape: f32[16,9], index: 7, kind: input, shape index: {}]
  %s8 = inlined_call_operand.vmem [shape: f32[16,9], index: 8, kind: input, shape index: {}]
  %s9 = inlined_call_operand.hbm [shape: f32[2,16,128], index: 9, kind: output, shape index: {}]
  %s10 = sld [smem:[#allocation0]]
  $region69: #{tpu_custom_call.1} parent=0
    _
  %s12 = ssub.s32 1, %s10
  %s13 = scalar_select 0, %s12, %s10
  $region1: #{tpu_custom_call.1} parent=0
    #allocation4 [shape = 'u8[16384]{0}', space=vmem, size = 0x4000, scoped, tag = 'output window, operand 0']
    #allocation5 [shape = 's32[2]{0}', space=sflag, size = 0x8, scoped, tag = 'scoped memory for tpu_custom_call.1']
    %14 = vsyncpa [#allocation5], 0
    %s15 = scalar_lea.sflag [#allocation5], 1
    %16 = vsyncpa %s15, 0
    loop: start=0, step=1, limit=4
    $region2: #{tpu_custom_call.1} parent=1 // loop_pre_header
      _
    $region3: #{tpu_custom_call.1} parent=1 // loop_header
      %s18 = sphi 0, %s22
      %p19 = scmp.ge.s32.totalorder %s18, 4
      %s28 = sphi 0, %s30
      %s31 = sphi 0, %s28
      %s32 = sphi 0, %s31
      %s48 = sphi 0, %s32
      %s54 = sphi 0, %s56
      %s57 = sphi 0, %s54
      %s58 = sphi 0, %s57
      %s74 = sphi 0, %s58
      %s80 = sphi 0, %s82
      %s83 = sphi 0, %s80
      %s84 = sphi 0, %s83
      %s100 = sphi 0, %s84
      %s104 = sphi 0, %s104
      %s106 = sphi 0, %s104
      %s107 = sphi 0, %s106
      %s121 = sphi 0, %s107
      %s125 = sphi 0, %s125
      %s127 = sphi 0, %s125
      %s128 = sphi 0, %s127
      %s142 = sphi 0, %s128
      %s146 = sphi 0, %s146
      %s148 = sphi 0, %s146
      %s149 = sphi 0, %s148
      %s163 = sphi 0, %s149
      %s167 = sphi 0, %s167
      %s169 = sphi 0, %s167
      %s170 = sphi 0, %s169
      %s184 = sphi 0, %s170
      %s188 = sphi 0, %s188
      %s190 = sphi 0, %s188
      %s191 = sphi 0, %s190
      %s205 = sphi 0, %s191
      %s209 = sphi 0, %s209
      %s211 = sphi 0, %s209
      %s212 = sphi 0, %s211
      %s226 = sphi 0, %s212
      %s232 = sphi 0, %s234
      %s235 = sphi 0, %s232
      %s236 = sphi 0, %s235
      %s252 = sphi 0, %s236
    $region4: #{tpu_custom_call.1} parent=1 // loop_header_branch
      %21 = sbr.rel (%p19) target = $region8
    $region5: #{tpu_custom_call.1} parent=1 // loop_body
      %s23 = ssub.s32 %s18, 1
      %s24 = ssub.s32 %s18, 2
      %s25 = sadd.s32 %s18, 1
      %s26 = ssub.s32 %s18, %s25
      %p27 = scmp.eq.s32.totalorder %s26, 0
      %s29 = sadd.s32 %s28, 1
      %s30 = scalar_select %p27, %s28, %s29
      %p33 = pneg %p27
      %p34 = scmp.eq.s32.totalorder %s18, 1
      %p35 = por %p33, %p34
      %p36 = scmp.ne.s32.totalorder %s28, %s31
      %p37 = scmp.eq.s32.totalorder %s18, 0
      %p38 = por %p36, %p37
      %p39 = scmp.ne.s32.totalorder %s28, %s31
      %p40 = scmp.eq.s32.totalorder %s23, 1
      %p41 = por %p39, %p40
      %p42 = scmp.ne.s32.totalorder %s31, %s32
      %p43 = scmp.eq.s32.totalorder %s23, 0
      %p44 = por %p42, %p43
      %p45 = scmp.ne.s32.totalorder %s31, %s32
      %p46 = scmp.eq.s32.totalorder %s24, 1
      %p47 = por %p45, %p46
      %p49 = scmp.ne.s32.totalorder %s32, %s48
      %p50 = scmp.eq.s32.totalorder %s24, 0
      %p51 = por %p49, %p50
      %s52 = ssub.s32 %s18, %s25
      %p53 = scmp.eq.s32.totalorder %s52, 0
      %s55 = sadd.s32 %s54, 1
      %s56 = scalar_select %p53, %s54, %s55
      %p59 = pneg %p53
      %p60 = scmp.eq.s32.totalorder %s18, 1
      %p61 = por %p59, %p60
      %p62 = scmp.ne.s32.totalorder %s54, %s57
      %p63 = scmp.eq.s32.totalorder %s18, 0
      %p64 = por %p62, %p63
      %p65 = scmp.ne.s32.totalorder %s54, %s57
      %p66 = scmp.eq.s32.totalorder %s23, 1
      %p67 = por %p65, %p66
      %p68 = scmp.ne.s32.totalorder %s57, %s58
      %p69 = scmp.eq.s32.totalorder %s23, 0
      %p70 = por %p68, %p69
      %p71 = scmp.ne.s32.totalorder %s57, %s58
      %p72 = scmp.eq.s32.totalorder %s24, 1
      %p73 = por %p71, %p72
      %p75 = scmp.ne.s32.totalorder %s58, %s74
      %p76 = scmp.eq.s32.totalorder %s24, 0
      %p77 = por %p75, %p76
      %s78 = ssub.s32 %s18, %s25
      %p79 = scmp.eq.s32.totalorder %s78, 0
      %s81 = sadd.s32 %s80, 1
      %s82 = scalar_select %p79, %s80, %s81
      %p85 = pneg %p79
      %p86 = scmp.eq.s32.totalorder %s18, 1
      %p87 = por %p85, %p86
      %p88 = scmp.ne.s32.totalorder %s80, %s83
      %p89 = scmp.eq.s32.totalorder %s18, 0
      %p90 = por %p88, %p89
      %p91 = scmp.ne.s32.totalorder %s80, %s83
      %p92 = scmp.eq.s32.totalorder %s23, 1
      %p93 = por %p91, %p92
      %p94 = scmp.ne.s32.totalorder %s83, %s84
      %p95 = scmp.eq.s32.totalorder %s23, 0
      %p96 = por %p94, %p95
      %p97 = scmp.ne.s32.totalorder %s83, %s84
      %p98 = scmp.eq.s32.totalorder %s24, 1
      %p99 = por %p97, %p98
      %p101 = scmp.ne.s32.totalorder %s84, %s100
      %p102 = scmp.eq.s32.totalorder %s24, 0
      %p103 = por %p101, %p102
      %s105 = sadd.s32 %s104, 1
      %p108 = scmp.eq.s32.totalorder %s18, 1
      %p109 = scmp.ne.s32.totalorder %s104, %s106
      %p110 = scmp.eq.s32.totalorder %s18, 0
      %p111 = por %p109, %p110
      %p112 = scmp.ne.s32.totalorder %s104, %s106
      %p113 = scmp.eq.s32.totalorder %s23, 1
      %p114 = por %p112, %p113
      %p115 = scmp.ne.s32.totalorder %s106, %s107
      %p116 = scmp.eq.s32.totalorder %s23, 0
      %p117 = por %p115, %p116
      %p118 = scmp.ne.s32.totalorder %s106, %s107
      %p119 = scmp.eq.s32.totalorder %s24, 1
      %p120 = por %p118, %p119
      %p122 = scmp.ne.s32.totalorder %s107, %s121
      %p123 = scmp.eq.s32.totalorder %s24, 0
      %p124 = por %p122, %p123
      %s126 = sadd.s32 %s125, 1
      %p129 = scmp.eq.s32.totalorder %s18, 1
      %p130 = scmp.ne.s32.totalorder %s125, %s127
      %p131 = scmp.eq.s32.totalorder %s18, 0
      %p132 = por %p130, %p131
      %p133 = scmp.ne.s32.totalorder %s125, %s127
      %p134 = scmp.eq.s32.totalorder %s23, 1
      %p135 = por %p133, %p134
      %p136 = scmp.ne.s32.totalorder %s127, %s128
      %p137 = scmp.eq.s32.totalorder %s23, 0
      %p138 = por %p136, %p137
      %p139 = scmp.ne.s32.totalorder %s127, %s128
      %p140 = scmp.eq.s32.totalorder %s24, 1
      %p141 = por %p139, %p140
      %p143 = scmp.ne.s32.totalorder %s128, %s142
      %p144 = scmp.eq.s32.totalorder %s24, 0
      %p145 = por %p143, %p144
      %s147 = sadd.s32 %s146, 1
      %p150 = scmp.eq.s32.totalorder %s18, 1
      %p151 = scmp.ne.s32.totalorder %s146, %s148
      %p152 = scmp.eq.s32.totalorder %s18, 0
      %p153 = por %p151, %p152
      %p154 = scmp.ne.s32.totalorder %s146, %s148
      %p155 = scmp.eq.s32.totalorder %s23, 1
      %p156 = por %p154, %p155
      %p157 = scmp.ne.s32.totalorder %s148, %s149
      %p158 = scmp.eq.s32.totalorder %s23, 0
      %p159 = por %p157, %p158
      %p160 = scmp.ne.s32.totalorder %s148, %s149
      %p161 = scmp.eq.s32.totalorder %s24, 1
      %p162 = por %p160, %p161
      %p164 = scmp.ne.s32.totalorder %s149, %s163
      %p165 = scmp.eq.s32.totalorder %s24, 0
      %p166 = por %p164, %p165
      %s168 = sadd.s32 %s167, 1
      %p171 = scmp.eq.s32.totalorder %s18, 1
      %p172 = scmp.ne.s32.totalorder %s167, %s169
      %p173 = scmp.eq.s32.totalorder %s18, 0
      %p174 = por %p172, %p173
      %p175 = scmp.ne.s32.totalorder %s167, %s169
      %p176 = scmp.eq.s32.totalorder %s23, 1
      %p177 = por %p175, %p176
      %p178 = scmp.ne.s32.totalorder %s169, %s170
      %p179 = scmp.eq.s32.totalorder %s23, 0
      %p180 = por %p178, %p179
      %p181 = scmp.ne.s32.totalorder %s169, %s170
      %p182 = scmp.eq.s32.totalorder %s24, 1
      %p183 = por %p181, %p182
      %p185 = scmp.ne.s32.totalorder %s170, %s184
      %p186 = scmp.eq.s32.totalorder %s24, 0
      %p187 = por %p185, %p186
      %s189 = sadd.s32 %s188, 1
      %p192 = scmp.eq.s32.totalorder %s18, 1
      %p193 = scmp.ne.s32.totalorder %s188, %s190
      %p194 = scmp.eq.s32.totalorder %s18, 0
      %p195 = por %p193, %p194
      %p196 = scmp.ne.s32.totalorder %s188, %s190
      %p197 = scmp.eq.s32.totalorder %s23, 1
      %p198 = por %p196, %p197
      %p199 = scmp.ne.s32.totalorder %s190, %s191
      %p200 = scmp.eq.s32.totalorder %s23, 0
      %p201 = por %p199, %p200
      %p202 = scmp.ne.s32.totalorder %s190, %s191
      %p203 = scmp.eq.s32.totalorder %s24, 1
      %p204 = por %p202, %p203
      %p206 = scmp.ne.s32.totalorder %s191, %s205
      %p207 = scmp.eq.s32.totalorder %s24, 0
      %p208 = por %p206, %p207
      %s210 = sadd.s32 %s209, 1
      %p213 = scmp.eq.s32.totalorder %s18, 1
      %p214 = scmp.ne.s32.totalorder %s209, %s211
      %p215 = scmp.eq.s32.totalorder %s18, 0
      %p216 = por %p214, %p215
      %p217 = scmp.ne.s32.totalorder %s209, %s211
      %p218 = scmp.eq.s32.totalorder %s23, 1
      %p219 = por %p217, %p218
      %p220 = scmp.ne.s32.totalorder %s211, %s212
      %p221 = scmp.eq.s32.totalorder %s23, 0
      %p222 = por %p220, %p221
      %p223 = scmp.ne.s32.totalorder %s211, %s212
      %p224 = scmp.eq.s32.totalorder %s24, 1
      %p225 = por %p223, %p224
      %p227 = scmp.ne.s32.totalorder %s212, %s226
      %p228 = scmp.eq.s32.totalorder %s24, 0
      %p229 = por %p227, %p228
      %s230 = ssub.s32 %s18, %s25
      %p231 = scmp.eq.s32.totalorder %s230, 0
      %s233 = sadd.s32 %s232, 1
      %s234 = scalar_select %p231, %s232, %s233
      %p237 = pneg %p231
      %p238 = scmp.eq.s32.totalorder %s18, 1
      %p239 = por %p237, %p238
      %p240 = scmp.ne.s32.totalorder %s232, %s235
      %p241 = scmp.eq.s32.totalorder %s18, 0
      %p242 = por %p240, %p241
      %p243 = scmp.ne.s32.totalorder %s232, %s235
      %p244 = scmp.eq.s32.totalorder %s23, 1
      %p245 = por %p243, %p244
      %p246 = scmp.ne.s32.totalorder %s235, %s236
      %p247 = scmp.eq.s32.totalorder %s23, 0
      %p248 = por %p246, %p247
      %p249 = scmp.ne.s32.totalorder %s235, %s236
      %p250 = scmp.eq.s32.totalorder %s24, 1
      %p251 = por %p249, %p250
      %p253 = scmp.ne.s32.totalorder %s236, %s252
      %p254 = scmp.eq.s32.totalorder %s24, 0
      %p255 = por %p253, %p254
      %p256 = scmp.le.s32.totalorder 1, %s18
      %p257 = scmp.lt.s32.totalorder %s18, 3
      %p258 = pnand %p256, %p257
      %p259 = pneg %p258
      // Predicated region
      $region9: #{tpu_custom_call.1} parent=5 // pred_check
        _
      $region10: #{tpu_custom_call.1} parent=5 // pred_check_branch
        %261 = sbr.rel (%p258) target = $region12
      $region11: #{tpu_custom_call.1} parent=5 // pred_region
        %s262 = ssub.s32 %s18, 1
        // Predicated region
        $region13: #{tpu_custom_call.1} parent=11 // pred_check
          %p263 = pneg %p117
        $region14: #{tpu_custom_call.1} parent=11 // pred_check_branch
          %265 = sbr.rel (%p263) target = $region16
        $region15: #{tpu_custom_call.1} parent=11 // pred_region
          _
        $region16: #{tpu_custom_call.1} parent=11 // pred_fallthru
          _
        // Predicated region
        $region17: #{tpu_custom_call.1} parent=11 // pred_check
          %p266 = pneg %p138
        $region18: #{tpu_custom_call.1} parent=11 // pred_check_branch
          %268 = sbr.rel (%p266) target = $region20
        $region19: #{tpu_custom_call.1} parent=11 // pred_region
          _
        $region20: #{tpu_custom_call.1} parent=11 // pred_fallthru
          _
        // Predicated region
        $region21: #{tpu_custom_call.1} parent=11 // pred_check
          %p269 = pneg %p159
        $region22: #{tpu_custom_call.1} parent=11 // pred_check_branch
          %271 = sbr.rel (%p269) target = $region24
        $region23: #{tpu_custom_call.1} parent=11 // pred_region
          _
        $region24: #{tpu_custom_call.1} parent=11 // pred_fallthru
          _
        // Predicated region
        $region25: #{tpu_custom_call.1} parent=11 // pred_check
          %p272 = pneg %p180
        $region26: #{tpu_custom_call.1} parent=11 // pred_check_branch
          %274 = sbr.rel (%p272) target = $region28
        $region27: #{tpu_custom_call.1} parent=11 // pred_region
          _
        $region28: #{tpu_custom_call.1} parent=11 // pred_fallthru
          _
        // Predicated region
        $region29: #{tpu_custom_call.1} parent=11 // pred_check
          %p275 = pneg %p201
        $region30: #{tpu_custom_call.1} parent=11 // pred_check_branch
          %277 = sbr.rel (%p275) target = $region32
        $region31: #{tpu_custom_call.1} parent=11 // pred_region
          _
        $region32: #{tpu_custom_call.1} parent=11 // pred_fallthru
          _
        // Predicated region
        $region33: #{tpu_custom_call.1} parent=11 // pred_check
          %p278 = pneg %p222
        $region34: #{tpu_custom_call.1} parent=11 // pred_check_branch
          %280 = sbr.rel (%p278) target = $region36
        $region35: #{tpu_custom_call.1} parent=11 // pred_region
          _
        $region36: #{tpu_custom_call.1} parent=11 // pred_fallthru
          _
      $region12: #{tpu_custom_call.1} parent=5 // pred_fallthru
        _
      %p281 = scmp.lt.s32.totalorder %s18, 2
      // Predicated region
      $region37: #{tpu_custom_call.1} parent=5 // pred_check
        %p282 = pneg %p281
      $region38: #{tpu_custom_call.1} parent=5 // pred_check_branch
        %284 = sbr.rel (%p282) target = $region40
      $region39: #{tpu_custom_call.1} parent=5 // pred_region
        // Predicated region
        $region41: #{tpu_custom_call.1} parent=39 // pred_check
          %p285 = pneg %p38
        $region42: #{tpu_custom_call.1} parent=39 // pred_check_branch
          %287 = sbr.rel (%p285) target = $region44
        $region43: #{tpu_custom_call.1} parent=39 // pred_region
          %p288 = scmp.lt.s32.totalorder %s18, 1
          %s289 = scalar_select %p288, %s18, 1
          %s290 = smul.addr %s289, 2
          %s291 = smul.addr %s290, 8
          %s292 = scalar_lea.vmem %s0, %s291
        $region44: #{tpu_custom_call.1} parent=39 // pred_fallthru
          _
        // Predicated region
        $region45: #{tpu_custom_call.1} parent=39 // pred_check
          %p293 = pneg %p64
        $region46: #{tpu_custom_call.1} parent=39 // pred_check_branch
          %295 = sbr.rel (%p293) target = $region48
        $region47: #{tpu_custom_call.1} parent=39 // pred_region
          %p296 = scmp.lt.s32.totalorder %s18, 1
          %s297 = scalar_select %p296, %s18, 1
          %s298 = smul.addr %s297, 16
          %s299 = smul.addr %s298, 8
          %s300 = scalar_lea.vmem %s1, %s299
        $region48: #{tpu_custom_call.1} parent=39 // pred_fallthru
          _
        // Predicated region
        $region49: #{tpu_custom_call.1} parent=39 // pred_check
          %p301 = pneg %p90
        $region50: #{tpu_custom_call.1} parent=39 // pred_check_branch
          %303 = sbr.rel (%p301) target = $region52
        $region51: #{tpu_custom_call.1} parent=39 // pred_region
          %p304 = scmp.lt.s32.totalorder %s18, 1
          %s305 = scalar_select %p304, %s18, 1
          %s306 = smul.addr %s305, 2
          %s307 = smul.addr %s306, 8
          %s308 = scalar_lea.vmem %s2, %s307
        $region52: #{tpu_custom_call.1} parent=39 // pred_fallthru
          _
      $region40: #{tpu_custom_call.1} parent=5 // pred_fallthru
        _
      %p309 = scmp.le.s32.totalorder 1, %s18
      %p310 = scmp.lt.s32.totalorder %s18, 3
      %p311 = pnand %p309, %p310
      %p312 = pneg %p311
      // Predicated region
      $region53: #{tpu_custom_call.1} parent=5 // pred_check
        _
      $region54: #{tpu_custom_call.1} parent=5 // pred_check_branch
        %314 = sbr.rel (%p311) target = $region56
      $region55: #{tpu_custom_call.1} parent=5 // pred_region
        %s315 = ssub.s32 %s18, 1
        %p316 = scmp.lt.s32.totalorder %s23, 1
        %s317 = scalar_select %p316, %s23, 1
        %s318 = smul.addr %s317, 2
        %s319 = smul.addr %s318, 8
        %s320 = scalar_lea.vmem %s0, %s319
        %p321 = pneg %p44
        %p322 = pneg %p41
        %p323 = scmp.lt.s32.totalorder %s23, 1
        %s324 = scalar_select %p323, %s23, 1
        %s325 = smul.addr %s324, 16
        %s326 = smul.addr %s325, 8
        %s327 = scalar_lea.vmem %s1, %s326
        %p328 = pneg %p70
        %p329 = pneg %p67
        %p330 = scmp.lt.s32.totalorder %s23, 1
        %s331 = scalar_select %p330, %s23, 1
        %s332 = smul.addr %s331, 2
        %s333 = smul.addr %s332, 8
        %s334 = scalar_lea.vmem %s2, %s333
        %p335 = pneg %p96
        %p336 = pneg %p93
        %p337 = pneg %p117
        %p338 = pneg %p114
        %p339 = pneg %p138
        %p340 = pneg %p135
        %p341 = pneg %p159
        %p342 = pneg %p156
        %p343 = pneg %p180
        %p344 = pneg %p177
        %p345 = pneg %p201
        %p346 = pneg %p198
        %p347 = pneg %p222
        %p348 = pneg %p219
        %p349 = pneg %p248
        %p350 = pneg %p245
        %s351 = sand.u32 %s235, 1
        %s352 = scalar_lea.sflag [#allocation5], %s351
        %s353 = sand.u32 %s235, 1
        %s354 = smul.addr %s353, 16
        %s355 = scalar_lea.vmem [#allocation4], %s354
        %p356 = scmp.lt.s32.totalorder %s23, 1
        %s357 = scalar_select %p356, %s23, 1
        %s358 = smul.addr %s357, 2
        %s359 = smul.addr %s358, 8
        %s360 = scalar_lea.vmem %s0, %s359
        %p361 = scmp.lt.s32.totalorder %s23, 1
        %s362 = scalar_select %p361, %s23, 1
        %s363 = smul.addr %s362, 16
        %s364 = smul.addr %s363, 8
        %s365 = scalar_lea.vmem %s1, %s364
        %p366 = scmp.lt.s32.totalorder %s23, 1
        %s367 = scalar_select %p366, %s23, 1
        %s368 = smul.addr %s367, 2
        %s369 = smul.addr %s368, 8
        %s370 = scalar_lea.vmem %s2, %s369
        %v371 = vld [vmem:[%s360] sm:$0xff]
        %v372 = vld [vmem:[%s360 + $0x8] sm:$0xff]
        %v373 = vld [vmem:[%s365] sm:$0xff]
        %v374 = vld [vmem:[%s365 + $0x8] sm:$0xff]
        %v375 = vld [vmem:[%s365 + $0x10] sm:$0xff]
        %v376 = vld [vmem:[%s365 + $0x18] sm:$0xff]
        %v377 = vld [vmem:[%s365 + $0x20] sm:$0xff]
        %v378 = vld [vmem:[%s365 + $0x28] sm:$0xff]
        %v379 = vld [vmem:[%s365 + $0x30] sm:$0xff]
        %v380 = vld [vmem:[%s365 + $0x38] sm:$0xff]
        %v381 = vld [vmem:[%s365 + $0x40] sm:$0xff]
        %v382 = vld [vmem:[%s365 + $0x48] sm:$0xff]
        %v383 = vld [vmem:[%s365 + $0x50] sm:$0xff]
        %v384 = vld [vmem:[%s365 + $0x58] sm:$0xff]
        %v385 = vld [vmem:[%s365 + $0x60] sm:$0xff]
        %v386 = vld [vmem:[%s365 + $0x68] sm:$0xff]
        %v387 = vld [vmem:[%s365 + $0x70] sm:$0xff]
        %v388 = vld [vmem:[%s365 + $0x78] sm:$0xff]
        %v389 = vld [vmem:[%s370] sm:$0xff]
        %v390 = vld [vmem:[%s370 + $0x8] sm:$0xff]
        %v391 = vld [vmem:[%s3] sm:$0xff]
        %v392 = vld [vmem:[%s3 + $0x8] sm:$0x1]
        %v393 = vld [vmem:[%s4] sm:$0xff]
        %v394 = vld [vmem:[%s4 + $0x8] sm:$0x1]
        %v395 = vld [vmem:[%s5] sm:$0xff]
        %v396 = vld [vmem:[%s5 + $0x8] sm:$0x1]
        %v397 = vld [vmem:[%s6] sm:$0xff]
        %v398 = vld [vmem:[%s6 + $0x8] sm:$0x1]
        %v399 = vld [vmem:[%s7] sm:$0xff]
        %v400 = vld [vmem:[%s7 + $0x8] sm:$0xff]
        %v401 = vld [vmem:[%s8] sm:$0xff]
        %v402 = vld [vmem:[%s8 + $0x8] sm:$0xff]
        %vm403 = vcmask 130048
        %v405 = vsel %vm403, %v391, 0
        %v408 = vsel %vm403, %v392, 0
        %410 = vmatprep.subr.mxu0 0.0
        %411 = vmatpush1.msra.mxu0 %v371
        %412 = vmatprep.subr.mxu0 0.0
        %413 = vmatpush1.msra.mxu0 %v372
        %414 = vmatprep.subr.mxu0 0.0
        %415 = vmatpush1.msra.mxu0 0.0
        %416 = vmatprep.subr.mxu0 0.0
        %417 = vmatpush1.msra.mxu0 0.0
        %418 = vmatprep.subr.mxu0 0.0
        %419 = vmatpush1.msra.mxu0 0.0
        %420 = vmatprep.subr.mxu0 0.0
        %421 = vmatpush1.msra.mxu0 0.0
        %422 = vmatprep.subr.mxu0 0.0
        %423 = vmatpush1.msra.mxu0 0.0
        %424 = vmatprep.subr.mxu0 0.0
        %425 = vmatpush1.msra.mxu0 0.0
        %426 = vmatprep.subr.mxu0 0.0
        %427 = vmatpush1.msra.mxu0 0.0
        %428 = vmatprep.subr.mxu0 0.0
        %429 = vmatpush1.msra.mxu0 0.0
        %430 = vmatprep.subr.mxu0 0.0
        %431 = vmatpush1.msra.mxu0 0.0
        %432 = vmatprep.subr.mxu0 0.0
        %433 = vmatpush1.msra.mxu0 0.0
        %434 = vmatprep.subr.mxu0 0.0
        %435 = vmatpush1.msra.mxu0 0.0
        %436 = vmatprep.subr.mxu0 0.0
        %437 = vmatpush1.msra.mxu0 0.0
        %438 = vmatprep.subr.mxu0 0.0
        %439 = vmatpush1.msra.mxu0 0.0
        %440 = vmatprep.subr.mxu0 0.0
        %441 = vmatpush1.msra.mxu0 0.0
        %442 = vmatprep.subr.mxu0 0.0
        %443 = vmatpush1.msra.mxu0 0.0
        %444 = vmatprep.subr.mxu0 0.0
        %445 = vmatpush1.msra.mxu0 0.0
        %446 = vmatprep.subr.mxu0 0.0
        %447 = vmatpush1.msra.mxu0 0.0
        %448 = vmatprep.subr.mxu0 0.0
        %449 = vmatpush1.msra.mxu0 0.0
        %450 = vmatprep.subr.mxu0 0.0
        %451 = vmatpush1.msra.mxu0 0.0
        %452 = vmatprep.subr.mxu0 0.0
        %453 = vmatpush1.msra.mxu0 0.0
        %454 = vmatprep.subr.mxu0 0.0
        %455 = vmatpush1.msra.mxu0 0.0
        %456 = vmatprep.subr.mxu0 0.0
        %457 = vmatpush1.msra.mxu0 0.0
        %458 = vmatprep.subr.mxu0 0.0
        %459 = vmatpush1.msra.mxu0 0.0
        %460 = vmatprep.subr.mxu0 0.0
        %461 = vmatpush1.msra.mxu0 0.0
        %462 = vmatprep.subr.mxu0 0.0
        %463 = vmatpush1.msra.mxu0 0.0
        %464 = vmatprep.subr.mxu0 0.0
        %465 = vmatpush1.msra.mxu0 0.0
        %466 = vmatprep.subr.mxu0 0.0
        %467 = vmatpush1.msra.mxu0 0.0
        %468 = vmatprep.subr.mxu0 0.0
        %469 = vmatpush1.msra.mxu0 0.0
        %470 = vmatprep.subr.mxu0 0.0
        %471 = vmatpush1.msra.mxu0 0.0
        %472 = vmatprep.subr.mxu0 0.0
        %473 = vmatpush1.msra.mxu0 0.0
        %474 = vmatprep.mubr.f32.mxu0 0.0
        %475 = vmatmul.mubr.f32.gmra.mrb[0].mxu0 %v405
        %v476 = vpop.f32.mrb[0].mxu0
        %v477 = vadd.f32 0.0, %v476
        %v478 = vpop.f32.mrb[0].mxu0
        %479 = vmatprep.mubr.f32.mxu0 0.0
        %480 = vmatmul.mubr.f32.gmra.mrb[0].mxu0 %v408
        %v481 = vpop.f32.mrb[0].mxu0
        %v482 = vadd.f32 0.0, %v481
        %v483 = vpop.f32.mrb[0].mxu0
        %484 = vdwg.mxu0
        %v486 = vsel %vm403, %v393, 0
        %v489 = vsel %vm403, %v394, 0
        %491 = vmatprep.subr.mxu0 0.0
        %492 = vmatpush1.msra.mxu0 %v371
        %493 = vmatprep.subr.mxu0 0.0
        %494 = vmatpush1.msra.mxu0 %v372
        %495 = vmatprep.subr.mxu0 0.0
        %496 = vmatpush1.msra.mxu0 0.0
        %497 = vmatprep.subr.mxu0 0.0
        %498 = vmatpush1.msra.mxu0 0.0
        %499 = vmatprep.subr.mxu0 0.0
        %500 = vmatpush1.msra.mxu0 0.0
        %501 = vmatprep.subr.mxu0 0.0
        %502 = vmatpush1.msra.mxu0 0.0
        %503 = vmatprep.subr.mxu0 0.0
        %504 = vmatpush1.msra.mxu0 0.0
        %505 = vmatprep.subr.mxu0 0.0
        %506 = vmatpush1.msra.mxu0 0.0
        %507 = vmatprep.subr.mxu0 0.0
        %508 = vmatpush1.msra.mxu0 0.0
        %509 = vmatprep.subr.mxu0 0.0
        %510 = vmatpush1.msra.mxu0 0.0
        %511 = vmatprep.subr.mxu0 0.0
        %512 = vmatpush1.msra.mxu0 0.0
        %513 = vmatprep.subr.mxu0 0.0
        %514 = vmatpush1.msra.mxu0 0.0
        %515 = vmatprep.subr.mxu0 0.0
        %516 = vmatpush1.msra.mxu0 0.0
        %517 = vmatprep.subr.mxu0 0.0
        %518 = vmatpush1.msra.mxu0 0.0
        %519 = vmatprep.subr.mxu0 0.0
        %520 = vmatpush1.msra.mxu0 0.0
        %521 = vmatprep.subr.mxu0 0.0
        %522 = vmatpush1.msra.mxu0 0.0
        %523 = vmatprep.subr.mxu0 0.0
        %524 = vmatpush1.msra.mxu0 0.0
        %525 = vmatprep.subr.mxu0 0.0
        %526 = vmatpush1.msra.mxu0 0.0
        %527 = vmatprep.subr.mxu0 0.0
        %528 = vmatpush1.msra.mxu0 0.0
        %529 = vmatprep.subr.mxu0 0.0
        %530 = vmatpush1.msra.mxu0 0.0
        %531 = vmatprep.subr.mxu0 0.0
        %532 = vmatpush1.msra.mxu0 0.0
        %533 = vmatprep.subr.mxu0 0.0
        %534 = vmatpush1.msra.mxu0 0.0
        %535 = vmatprep.subr.mxu0 0.0
        %536 = vmatpush1.msra.mxu0 0.0
        %537 = vmatprep.subr.mxu0 0.0
        %538 = vmatpush1.msra.mxu0 0.0
        %539 = vmatprep.subr.mxu0 0.0
        %540 = vmatpush1.msra.mxu0 0.0
        %541 = vmatprep.subr.mxu0 0.0
        %542 = vmatpush1.msra.mxu0 0.0
        %543 = vmatprep.subr.mxu0 0.0
        %544 = vmatpush1.msra.mxu0 0.0
        %545 = vmatprep.subr.mxu0 0.0
        %546 = vmatpush1.msra.mxu0 0.0
        %547 = vmatprep.subr.mxu0 0.0
        %548 = vmatpush1.msra.mxu0 0.0
        %549 = vmatprep.subr.mxu0 0.0
        %550 = vmatpush1.msra.mxu0 0.0
        %551 = vmatprep.subr.mxu0 0.0
        %552 = vmatpush1.msra.mxu0 0.0
        %553 = vmatprep.subr.mxu0 0.0
        %554 = vmatpush1.msra.mxu0 0.0
        %555 = vmatprep.mubr.f32.mxu0 0.0
        %556 = vmatmul.mubr.f32.gmra.mrb[0].mxu0 %v486
        %v557 = vpop.f32.mrb[0].mxu0
        %v558 = vadd.f32 0.0, %v557
        %v559 = vpop.f32.mrb[0].mxu0
        %560 = vmatprep.mubr.f32.mxu0 0.0
        %561 = vmatmul.mubr.f32.gmra.mrb[0].mxu0 %v489
        %v562 = vpop.f32.mrb[0].mxu0
        %v563 = vadd.f32 0.0, %v562
        %v564 = vpop.f32.mrb[0].mxu0
        %565 = vdwg.mxu0
        %v567 = vsel %vm403, %v373, 0
        %v570 = vsel %vm403, %v374, 0
        %v573 = vsel %vm403, %v375, 0
        %v576 = vsel %vm403, %v376, 0
        %v579 = vsel %vm403, %v377, 0
        %v582 = vsel %vm403, %v378, 0
        %v585 = vsel %vm403, %v379, 0
        %v588 = vsel %vm403, %v380, 0
        %v591 = vsel %vm403, %v381, 0
        %v594 = vsel %vm403, %v382, 0
        %v597 = vsel %vm403, %v383, 0
        %v600 = vsel %vm403, %v384, 0
        %v603 = vsel %vm403, %v385, 0
        %v606 = vsel %vm403, %v386, 0
        %v609 = vsel %vm403, %v387, 0
        %v612 = vsel %vm403, %v388, 0
        %v615 = vsel %vm403, %v395, 0
        %v618 = vsel %vm403, %v396, 0
        %620 = vmatprep.subr.mxu0 0.0
        %621 = vmatpush1.xpose.msra.mxu0 %v615
        %622 = vmatprep.subr.mxu0 0.0
        %623 = vmatpush1.xpose.msra.mxu0 %v618
        %624 = vmatprep.subr.mxu0 0.0
        %625 = vmatpush1.xpose.msra.mxu0 0.0
        %626 = vmatprep.subr.mxu0 0.0
        %627 = vmatpush1.xpose.msra.mxu0 0.0
        %628 = vmatprep.subr.mxu0 0.0
        %629 = vmatpush1.xpose.msra.mxu0 0.0
        %630 = vmatprep.subr.mxu0 0.0
        %631 = vmatpush1.xpose.msra.mxu0 0.0
        %632 = vmatprep.subr.mxu0 0.0
        %633 = vmatpush1.xpose.msra.mxu0 0.0
        %634 = vmatprep.subr.mxu0 0.0
        %635 = vmatpush1.xpose.msra.mxu0 0.0
        %636 = vmatprep.subr.mxu0 0.0
        %637 = vmatpush1.xpose.msra.mxu0 0.0
        %638 = vmatprep.subr.mxu0 0.0
        %639 = vmatpush1.xpose.msra.mxu0 0.0
        %640 = vmatprep.subr.mxu0 0.0
        %641 = vmatpush1.xpose.msra.mxu0 0.0
        %642 = vmatprep.subr.mxu0 0.0
        %643 = vmatpush1.xpose.msra.mxu0 0.0
        %644 = vmatprep.subr.mxu0 0.0
        %645 = vmatpush1.xpose.msra.mxu0 0.0
        %646 = vmatprep.subr.mxu0 0.0
        %647 = vmatpush1.xpose.msra.mxu0 0.0
        %648 = vmatprep.subr.mxu0 0.0
        %649 = vmatpush1.xpose.msra.mxu0 0.0
        %650 = vmatprep.subr.mxu0 0.0
        %651 = vmatpush1.xpose.msra.mxu0 0.0
        %652 = vmatprep.subr.mxu0 0.0
        %653 = vmatpush1.xpose.msra.mxu0 0.0
        %654 = vmatprep.subr.mxu0 0.0
        %655 = vmatpush1.xpose.msra.mxu0 0.0
        %656 = vmatprep.subr.mxu0 0.0
        %657 = vmatpush1.xpose.msra.mxu0 0.0
        %658 = vmatprep.subr.mxu0 0.0
        %659 = vmatpush1.xpose.msra.mxu0 0.0
        %660 = vmatprep.subr.mxu0 0.0
        %661 = vmatpush1.xpose.msra.mxu0 0.0
        %662 = vmatprep.subr.mxu0 0.0
        %663 = vmatpush1.xpose.msra.mxu0 0.0
        %664 = vmatprep.subr.mxu0 0.0
        %665 = vmatpush1.xpose.msra.mxu0 0.0
        %666 = vmatprep.subr.mxu0 0.0
        %667 = vmatpush1.xpose.msra.mxu0 0.0
        %668 = vmatprep.subr.mxu0 0.0
        %669 = vmatpush1.xpose.msra.mxu0 0.0
        %670 = vmatprep.subr.mxu0 0.0
        %671 = vmatpush1.xpose.msra.mxu0 0.0
        %672 = vmatprep.subr.mxu0 0.0
        %673 = vmatpush1.xpose.msra.mxu0 0.0
        %674 = vmatprep.subr.mxu0 0.0
        %675 = vmatpush1.xpose.msra.mxu0 0.0
        %676 = vmatprep.subr.mxu0 0.0
        %677 = vmatpush1.xpose.msra.mxu0 0.0
        %678 = vmatprep.subr.mxu0 0.0
        %679 = vmatpush1.xpose.msra.mxu0 0.0
        %680 = vmatprep.subr.mxu0 0.0
        %681 = vmatpush1.xpose.msra.mxu0 0.0
        %682 = vmatprep.subr.mxu0 0.0
        %683 = vmatpush1.xpose.msra.mxu0 0.0
        %684 = vmatprep.mubr.f32.mxu0 0.0
        %685 = vmatmul.mubr.f32.gmra.mrb[0].mxu0 %v567
        %v686 = vpop.f32.mrb[0].mxu0
        %v687 = vadd.f32 0.0, %v686
        %v688 = vpop.f32.mrb[0].mxu0
        %689 = vmatprep.mubr.f32.mxu0 0.0
        %690 = vmatmul.mubr.f32.gmra.mrb[0].mxu0 %v570
        %v691 = vpop.f32.mrb[0].mxu0
        %v692 = vadd.f32 0.0, %v691
        %v693 = vpop.f32.mrb[0].mxu0
        %694 = vmatprep.mubr.f32.mxu0 0.0
        %695 = vmatmul.mubr.f32.gmra.mrb[0].mxu0 %v573
        %v696 = vpop.f32.mrb[0].mxu0
        %v697 = vadd.f32 0.0, %v696
        %v698 = vpop.f32.mrb[0].mxu0
        %699 = vmatprep.mubr.f32.mxu0 0.0
        %700 = vmatmul.mubr.f32.gmra.mrb[0].mxu0 %v576
        %v701 = vpop.f32.mrb[0].mxu0
        %v702 = vadd.f32 0.0, %v701
        %v703 = vpop.f32.mrb[0].mxu0
        %704 = vmatprep.mubr.f32.mxu0 0.0
        %705 = vmatmul.mubr.f32.gmra.mrb[0].mxu0 %v579
        %v706 = vpop.f32.mrb[0].mxu0
        %v707 = vadd.f32 0.0, %v706
        %v708 = vpop.f32.mrb[0].mxu0
        %709 = vmatprep.mubr.f32.mxu0 0.0
        %710 = vmatmul.mubr.f32.gmra.mrb[0].mxu0 %v582
        %v711 = vpop.f32.mrb[0].mxu0
        %v712 = vadd.f32 0.0, %v711
        %v713 = vpop.f32.mrb[0].mxu0
        %714 = vmatprep.mubr.f32.mxu0 0.0
        %715 = vmatmul.mubr.f32.gmra.mrb[0].mxu0 %v585
        %v716 = vpop.f32.mrb[0].mxu0
        %v717 = vadd.f32 0.0, %v716
        %v718 = vpop.f32.mrb[0].mxu0
        %719 = vmatprep.mubr.f32.mxu0 0.0
        %720 = vmatmul.mubr.f32.gmra.mrb[0].mxu0 %v588
        %v721 = vpop.f32.mrb[0].mxu0
        %v722 = vadd.f32 0.0, %v721
        %v723 = vpop.f32.mrb[0].mxu0
        %724 = vmatprep.mubr.f32.mxu0 0.0
        %725 = vmatmul.mubr.f32.gmra.mrb[0].mxu0 %v591
        %v726 = vpop.f32.mrb[0].mxu0
        %v727 = vadd.f32 0.0, %v726
        %v728 = vpop.f32.mrb[0].mxu0
        %729 = vmatprep.mubr.f32.mxu0 0.0
        %730 = vmatmul.mubr.f32.gmra.mrb[0].mxu0 %v594
        %v731 = vpop.f32.mrb[0].mxu0
        %v732 = vadd.f32 0.0, %v731
        %v733 = vpop.f32.mrb[0].mxu0
        %734 = vmatprep.mubr.f32.mxu0 0.0
        %735 = vmatmul.mubr.f32.gmra.mrb[0].mxu0 %v597
        %v736 = vpop.f32.mrb[0].mxu0
        %v737 = vadd.f32 0.0, %v736
        %v738 = vpop.f32.mrb[0].mxu0
        %739 = vmatprep.mubr.f32.mxu0 0.0
        %740 = vmatmul.mubr.f32.gmra.mrb[0].mxu0 %v600
        %v741 = vpop.f32.mrb[0].mxu0
        %v742 = vadd.f32 0.0, %v741
        %v743 = vpop.f32.mrb[0].mxu0
        %744 = vmatprep.mubr.f32.mxu0 0.0
        %745 = vmatmul.mubr.f32.gmra.mrb[0].mxu0 %v603
        %v746 = vpop.f32.mrb[0].mxu0
        %v747 = vadd.f32 0.0, %v746
        %v748 = vpop.f32.mrb[0].mxu0
        %749 = vmatprep.mubr.f32.mxu0 0.0
        %750 = vmatmul.mubr.f32.gmra.mrb[0].mxu0 %v606
        %v751 = vpop.f32.mrb[0].mxu0
        %v752 = vadd.f32 0.0, %v751
        %v753 = vpop.f32.mrb[0].mxu0
        %754 = vmatprep.mubr.f32.mxu0 0.0
        %755 = vmatmul.mubr.f32.gmra.mrb[0].mxu0 %v609
        %v756 = vpop.f32.mrb[0].mxu0
        %v757 = vadd.f32 0.0, %v756
        %v758 = vpop.f32.mrb[0].mxu0
        %759 = vmatprep.mubr.f32.mxu0 0.0
        %760 = vmatmul.mubr.f32.gmra.mrb[0].mxu0 %v612
        %v761 = vpop.f32.mrb[0].mxu0
        %v762 = vadd.f32 0.0, %v761
        %v763 = vpop.f32.mrb[0].mxu0
        %764 = vdwg.mxu0
        %v766 = vsel %vm403, %v397, 0
        %v769 = vsel %vm403, %v398, 0
        %771 = vmatprep.subr.mxu0 0.0
        %772 = vmatpush1.xpose.msra.mxu0 %v766
        %773 = vmatprep.subr.mxu0 0.0
        %774 = vmatpush1.xpose.msra.mxu0 %v769
        %775 = vmatprep.subr.mxu0 0.0
        %776 = vmatpush1.xpose.msra.mxu0 0.0
        %777 = vmatprep.subr.mxu0 0.0
        %778 = vmatpush1.xpose.msra.mxu0 0.0
        %779 = vmatprep.subr.mxu0 0.0
        %780 = vmatpush1.xpose.msra.mxu0 0.0
        %781 = vmatprep.subr.mxu0 0.0
        %782 = vmatpush1.xpose.msra.mxu0 0.0
        %783 = vmatprep.subr.mxu0 0.0
        %784 = vmatpush1.xpose.msra.mxu0 0.0
        %785 = vmatprep.subr.mxu0 0.0
        %786 = vmatpush1.xpose.msra.mxu0 0.0
        %787 = vmatprep.subr.mxu0 0.0
        %788 = vmatpush1.xpose.msra.mxu0 0.0
        %789 = vmatprep.subr.mxu0 0.0
        %790 = vmatpush1.xpose.msra.mxu0 0.0
        %791 = vmatprep.subr.mxu0 0.0
        %792 = vmatpush1.xpose.msra.mxu0 0.0
        %793 = vmatprep.subr.mxu0 0.0
        %794 = vmatpush1.xpose.msra.mxu0 0.0
        %795 = vmatprep.subr.mxu0 0.0
        %796 = vmatpush1.xpose.msra.mxu0 0.0
        %797 = vmatprep.subr.mxu0 0.0
        %798 = vmatpush1.xpose.msra.mxu0 0.0
        %799 = vmatprep.subr.mxu0 0.0
        %800 = vmatpush1.xpose.msra.mxu0 0.0
        %801 = vmatprep.subr.mxu0 0.0
        %802 = vmatpush1.xpose.msra.mxu0 0.0
        %803 = vmatprep.subr.mxu0 0.0
        %804 = vmatpush1.xpose.msra.mxu0 0.0
        %805 = vmatprep.subr.mxu0 0.0
        %806 = vmatpush1.xpose.msra.mxu0 0.0
        %807 = vmatprep.subr.mxu0 0.0
        %808 = vmatpush1.xpose.msra.mxu0 0.0
        %809 = vmatprep.subr.mxu0 0.0
        %810 = vmatpush1.xpose.msra.mxu0 0.0
        %811 = vmatprep.subr.mxu0 0.0
        %812 = vmatpush1.xpose.msra.mxu0 0.0
        %813 = vmatprep.subr.mxu0 0.0
        %814 = vmatpush1.xpose.msra.mxu0 0.0
        %815 = vmatprep.subr.mxu0 0.0
        %816 = vmatpush1.xpose.msra.mxu0 0.0
        %817 = vmatprep.subr.mxu0 0.0
        %818 = vmatpush1.xpose.msra.mxu0 0.0
        %819 = vmatprep.subr.mxu0 0.0
        %820 = vmatpush1.xpose.msra.mxu0 0.0
        %821 = vmatprep.subr.mxu0 0.0
        %822 = vmatpush1.xpose.msra.mxu0 0.0
        %823 = vmatprep.subr.mxu0 0.0
        %824 = vmatpush1.xpose.msra.mxu0 0.0
        %825 = vmatprep.subr.mxu0 0.0
        %826 = vmatpush1.xpose.msra.mxu0 0.0
        %827 = vmatprep.subr.mxu0 0.0
        %828 = vmatpush1.xpose.msra.mxu0 0.0
        %829 = vmatprep.subr.mxu0 0.0
        %830 = vmatpush1.xpose.msra.mxu0 0.0
        %831 = vmatprep.subr.mxu0 0.0
        %832 = vmatpush1.xpose.msra.mxu0 0.0
        %833 = vmatprep.subr.mxu0 0.0
        %834 = vmatpush1.xpose.msra.mxu0 0.0
        %835 = vmatprep.mubr.f32.mxu0 0.0
        %836 = vmatmul.mubr.f32.gmra.mrb[0].mxu0 %v567
        %v837 = vpop.f32.mrb[0].mxu0
        %v838 = vadd.f32 0.0, %v837
        %v839 = vpop.f32.mrb[0].mxu0
        %840 = vmatprep.mubr.f32.mxu0 0.0
        %841 = vmatmul.mubr.f32.gmra.mrb[0].mxu0 %v570
        %v842 = vpop.f32.mrb[0].mxu0
        %v843 = vadd.f32 0.0, %v842
        %v844 = vpop.f32.mrb[0].mxu0
        %845 = vmatprep.mubr.f32.mxu0 0.0
        %846 = vmatmul.mubr.f32.gmra.mrb[0].mxu0 %v573
        %v847 = vpop.f32.mrb[0].mxu0
        %v848 = vadd.f32 0.0, %v847
        %v849 = vpop.f32.mrb[0].mxu0
        %850 = vmatprep.mubr.f32.mxu0 0.0
        %851 = vmatmul.mubr.f32.gmra.mrb[0].mxu0 %v576
        %v852 = vpop.f32.mrb[0].mxu0
        %v853 = vadd.f32 0.0, %v852
        %v854 = vpop.f32.mrb[0].mxu0
        %855 = vmatprep.mubr.f32.mxu0 0.0
        %856 = vmatmul.mubr.f32.gmra.mrb[0].mxu0 %v579
        %v857 = vpop.f32.mrb[0].mxu0
        %v858 = vadd.f32 0.0, %v857
        %v859 = vpop.f32.mrb[0].mxu0
        %860 = vmatprep.mubr.f32.mxu0 0.0
        %861 = vmatmul.mubr.f32.gmra.mrb[0].mxu0 %v582
        %v862 = vpop.f32.mrb[0].mxu0
        %v863 = vadd.f32 0.0, %v862
        %v864 = vpop.f32.mrb[0].mxu0
        %865 = vmatprep.mubr.f32.mxu0 0.0
        %866 = vmatmul.mubr.f32.gmra.mrb[0].mxu0 %v585
        %v867 = vpop.f32.mrb[0].mxu0
        %v868 = vadd.f32 0.0, %v867
        %v869 = vpop.f32.mrb[0].mxu0
        %870 = vmatprep.mubr.f32.mxu0 0.0
        %871 = vmatmul.mubr.f32.gmra.mrb[0].mxu0 %v588
        %v872 = vpop.f32.mrb[0].mxu0
        %v873 = vadd.f32 0.0, %v872
        %v874 = vpop.f32.mrb[0].mxu0
        %875 = vmatprep.mubr.f32.mxu0 0.0
        %876 = vmatmul.mubr.f32.gmra.mrb[0].mxu0 %v591
        %v877 = vpop.f32.mrb[0].mxu0
        %v878 = vadd.f32 0.0, %v877
        %v879 = vpop.f32.mrb[0].mxu0
        %880 = vmatprep.mubr.f32.mxu0 0.0
        %881 = vmatmul.mubr.f32.gmra.mrb[0].mxu0 %v594
        %v882 = vpop.f32.mrb[0].mxu0
        %v883 = vadd.f32 0.0, %v882
        %v884 = vpop.f32.mrb[0].mxu0
        %885 = vmatprep.mubr.f32.mxu0 0.0
        %886 = vmatmul.mubr.f32.gmra.mrb[0].mxu0 %v597
        %v887 = vpop.f32.mrb[0].mxu0
        %v888 = vadd.f32 0.0, %v887
        %v889 = vpop.f32.mrb[0].mxu0
        %890 = vmatprep.mubr.f32.mxu0 0.0
        %891 = vmatmul.mubr.f32.gmra.mrb[0].mxu0 %v600
        %v892 = vpop.f32.mrb[0].mxu0
        %v893 = vadd.f32 0.0, %v892
        %v894 = vpop.f32.mrb[0].mxu0
        %895 = vmatprep.mubr.f32.mxu0 0.0
        %896 = vmatmul.mubr.f32.gmra.mrb[0].mxu0 %v603
        %v897 = vpop.f32.mrb[0].mxu0
        %v898 = vadd.f32 0.0, %v897
        %v899 = vpop.f32.mrb[0].mxu0
        %900 = vmatprep.mubr.f32.mxu0 0.0
        %901 = vmatmul.mubr.f32.gmra.mrb[0].mxu0 %v606
        %v902 = vpop.f32.mrb[0].mxu0
        %v903 = vadd.f32 0.0, %v902
        %v904 = vpop.f32.mrb[0].mxu0
        %905 = vmatprep.mubr.f32.mxu0 0.0
        %906 = vmatmul.mubr.f32.gmra.mrb[0].mxu0 %v609
        %v907 = vpop.f32.mrb[0].mxu0
        %v908 = vadd.f32 0.0, %v907
        %v909 = vpop.f32.mrb[0].mxu0
        %910 = vmatprep.mubr.f32.mxu0 0.0
        %911 = vmatmul.mubr.f32.gmra.mrb[0].mxu0 %v612
        %v912 = vpop.f32.mrb[0].mxu0
        %v913 = vadd.f32 0.0, %v912
        %v914 = vpop.f32.mrb[0].mxu0
        %915 = vdwg.mxu0
        %916 = vmatprep.subr.mxu0 0.0
        %917 = vmatpush1.msra.mxu0 %v389
        %918 = vmatprep.subr.mxu0 0.0
        %919 = vmatpush1.msra.mxu0 %v390
        %920 = vmatprep.subr.mxu0 0.0
        %921 = vmatpush1.msra.mxu0 0.0
        %922 = vmatprep.subr.mxu0 0.0
        %923 = vmatpush1.msra.mxu0 0.0
        %924 = vmatprep.subr.mxu0 0.0
        %925 = vmatpush1.msra.mxu0 0.0
        %926 = vmatprep.subr.mxu0 0.0
        %927 = vmatpush1.msra.mxu0 0.0
        %928 = vmatprep.subr.mxu0 0.0
        %929 = vmatpush1.msra.mxu0 0.0
        %930 = vmatprep.subr.mxu0 0.0
        %931 = vmatpush1.msra.mxu0 0.0
        %932 = vmatprep.subr.mxu0 0.0
        %933 = vmatpush1.msra.mxu0 0.0
        %934 = vmatprep.subr.mxu0 0.0
        %935 = vmatpush1.msra.mxu0 0.0
        %936 = vmatprep.subr.mxu0 0.0
        %937 = vmatpush1.msra.mxu0 0.0
        %938 = vmatprep.subr.mxu0 0.0
        %939 = vmatpush1.msra.mxu0 0.0
        %940 = vmatprep.subr.mxu0 0.0
        %941 = vmatpush1.msra.mxu0 0.0
        %942 = vmatprep.subr.mxu0 0.0
        %943 = vmatpush1.msra.mxu0 0.0
        %944 = vmatprep.subr.mxu0 0.0
        %945 = vmatpush1.msra.mxu0 0.0
        %946 = vmatprep.subr.mxu0 0.0
        %947 = vmatpush1.msra.mxu0 0.0
        %948 = vmatprep.subr.mxu0 0.0
        %949 = vmatpush1.msra.mxu0 0.0
        %950 = vmatprep.subr.mxu0 0.0
        %951 = vmatpush1.msra.mxu0 0.0
        %952 = vmatprep.subr.mxu0 0.0
        %953 = vmatpush1.msra.mxu0 0.0
        %954 = vmatprep.subr.mxu0 0.0
        %955 = vmatpush1.msra.mxu0 0.0
        %956 = vmatprep.subr.mxu0 0.0
        %957 = vmatpush1.msra.mxu0 0.0
        %958 = vmatprep.subr.mxu0 0.0
        %959 = vmatpush1.msra.mxu0 0.0
        %960 = vmatprep.subr.mxu0 0.0
        %961 = vmatpush1.msra.mxu0 0.0
        %962 = vmatprep.subr.mxu0 0.0
        %963 = vmatpush1.msra.mxu0 0.0
        %964 = vmatprep.subr.mxu0 0.0
        %965 = vmatpush1.msra.mxu0 0.0
        %966 = vmatprep.subr.mxu0 0.0
        %967 = vmatpush1.msra.mxu0 0.0
        %968 = vmatprep.subr.mxu0 0.0
        %969 = vmatpush1.msra.mxu0 0.0
        %970 = vmatprep.subr.mxu0 0.0
        %971 = vmatpush1.msra.mxu0 0.0
        %972 = vmatprep.subr.mxu0 0.0
        %973 = vmatpush1.msra.mxu0 0.0
        %974 = vmatprep.subr.mxu0 0.0
        %975 = vmatpush1.msra.mxu0 0.0
        %976 = vmatprep.subr.mxu0 0.0
        %977 = vmatpush1.msra.mxu0 0.0
        %978 = vmatprep.subr.mxu0 0.0
        %979 = vmatpush1.msra.mxu0 0.0
        %980 = vmatprep.mubr.f32.mxu0 0.0
        %981 = vmatmul.mubr.f32.gmra.mrb[0].mxu0 %v615
        %v982 = vpop.f32.mrb[0].mxu0
        %v983 = vadd.f32 0.0, %v982
        %v984 = vpop.f32.mrb[0].mxu0
        %985 = vmatprep.mubr.f32.mxu0 0.0
        %986 = vmatmul.mubr.f32.gmra.mrb[0].mxu0 %v618
        %v987 = vpop.f32.mrb[0].mxu0
        %v988 = vadd.f32 0.0, %v987
        %v989 = vpop.f32.mrb[0].mxu0
        %990 = vdwg.mxu0
        %991 = vmatprep.subr.mxu0 0.0
        %992 = vmatpush1.msra.mxu0 %v389
        %993 = vmatprep.subr.mxu0 0.0
        %994 = vmatpush1.msra.mxu0 %v390
        %995 = vmatprep.subr.mxu0 0.0
        %996 = vmatpush1.msra.mxu0 0.0
        %997 = vmatprep.subr.mxu0 0.0
        %998 = vmatpush1.msra.mxu0 0.0
        %999 = vmatprep.subr.mxu0 0.0
        %1000 = vmatpush1.msra.mxu0 0.0
        %1001 = vmatprep.subr.mxu0 0.0
        %1002 = vmatpush1.msra.mxu0 0.0
        %1003 = vmatprep.subr.mxu0 0.0
        %1004 = vmatpush1.msra.mxu0 0.0
        %1005 = vmatprep.subr.mxu0 0.0
        %1006 = vmatpush1.msra.mxu0 0.0
        %1007 = vmatprep.subr.mxu0 0.0
        %1008 = vmatpush1.msra.mxu0 0.0
        %1009 = vmatprep.subr.mxu0 0.0
        %1010 = vmatpush1.msra.mxu0 0.0
        %1011 = vmatprep.subr.mxu0 0.0
        %1012 = vmatpush1.msra.mxu0 0.0
        %1013 = vmatprep.subr.mxu0 0.0
        %1014 = vmatpush1.msra.mxu0 0.0
        %1015 = vmatprep.subr.mxu0 0.0
        %1016 = vmatpush1.msra.mxu0 0.0
        %1017 = vmatprep.subr.mxu0 0.0
        %1018 = vmatpush1.msra.mxu0 0.0
        %1019 = vmatprep.subr.mxu0 0.0
        %1020 = vmatpush1.msra.mxu0 0.0
        %1021 = vmatprep.subr.mxu0 0.0
        %1022 = vmatpush1.msra.mxu0 0.0
        %1023 = vmatprep.subr.mxu0 0.0
        %1024 = vmatpush1.msra.mxu0 0.0
        %1025 = vmatprep.subr.mxu0 0.0
        %1026 = vmatpush1.msra.mxu0 0.0
        %1027 = vmatprep.subr.mxu0 0.0
        %1028 = vmatpush1.msra.mxu0 0.0
        %1029 = vmatprep.subr.mxu0 0.0
        %1030 = vmatpush1.msra.mxu0 0.0
        %1031 = vmatprep.subr.mxu0 0.0
        %1032 = vmatpush1.msra.mxu0 0.0
        %1033 = vmatprep.subr.mxu0 0.0
        %1034 = vmatpush1.msra.mxu0 0.0
        %1035 = vmatprep.subr.mxu0 0.0
        %1036 = vmatpush1.msra.mxu0 0.0
        %1037 = vmatprep.subr.mxu0 0.0
        %1038 = vmatpush1.msra.mxu0 0.0
        %1039 = vmatprep.subr.mxu0 0.0
        %1040 = vmatpush1.msra.mxu0 0.0
        %1041 = vmatprep.subr.mxu0 0.0
        %1042 = vmatpush1.msra.mxu0 0.0
        %1043 = vmatprep.subr.mxu0 0.0
        %1044 = vmatpush1.msra.mxu0 0.0
        %1045 = vmatprep.subr.mxu0 0.0
        %1046 = vmatpush1.msra.mxu0 0.0
        %1047 = vmatprep.subr.mxu0 0.0
        %1048 = vmatpush1.msra.mxu0 0.0
        %1049 = vmatprep.subr.mxu0 0.0
        %1050 = vmatpush1.msra.mxu0 0.0
        %1051 = vmatprep.subr.mxu0 0.0
        %1052 = vmatpush1.msra.mxu0 0.0
        %1053 = vmatprep.subr.mxu0 0.0
        %1054 = vmatpush1.msra.mxu0 0.0
        %1055 = vmatprep.mubr.f32.mxu0 0.0
        %1056 = vmatmul.mubr.f32.gmra.mrb[0].mxu0 %v766
        %v1057 = vpop.f32.mrb[0].mxu0
        %v1058 = vadd.f32 0.0, %v1057
        %v1059 = vpop.f32.mrb[0].mxu0
        %1060 = vmatprep.mubr.f32.mxu0 0.0
        %1061 = vmatmul.mubr.f32.gmra.mrb[0].mxu0 %v769
        %v1062 = vpop.f32.mrb[0].mxu0
        %v1063 = vadd.f32 0.0, %v1062
        %v1064 = vpop.f32.mrb[0].mxu0
        %1065 = vdwg.mxu0
        %vm1066 = vcmask 261120
        %v1068 = vsel %vm1066, %v558, 0
        %v1071 = vsel %vm1066, %v563, 0
        %1073 = vmatprep.subr.mxu0 0.0
        %1074 = vmatpush1.msra.mxu0 %v838
        %1075 = vmatprep.subr.mxu0 0.0
        %1076 = vmatpush1.msra.mxu0 %v843
        %1077 = vmatprep.subr.mxu0 0.0
        %1078 = vmatpush1.msra.mxu0 %v848
        %1079 = vmatprep.subr.mxu0 0.0
        %1080 = vmatpush1.msra.mxu0 %v853
        %1081 = vmatprep.subr.mxu0 0.0
        %1082 = vmatpush1.msra.mxu0 0.0
        %1083 = vmatprep.subr.mxu0 0.0
        %1084 = vmatpush1.msra.mxu0 0.0
        %1085 = vmatprep.subr.mxu0 0.0
        %1086 = vmatpush1.msra.mxu0 0.0
        %1087 = vmatprep.subr.mxu0 0.0
        %1088 = vmatpush1.msra.mxu0 0.0
        %1089 = vmatprep.subr.mxu0 0.0
        %1090 = vmatpush1.msra.mxu0 0.0
        %1091 = vmatprep.subr.mxu0 0.0
        %1092 = vmatpush1.msra.mxu0 0.0
        %1093 = vmatprep.subr.mxu0 0.0
        %1094 = vmatpush1.msra.mxu0 0.0
        %1095 = vmatprep.subr.mxu0 0.0
        %1096 = vmatpush1.msra.mxu0 0.0
        %1097 = vmatprep.subr.mxu0 0.0
        %1098 = vmatpush1.msra.mxu0 0.0
        %1099 = vmatprep.subr.mxu0 0.0
        %1100 = vmatpush1.msra.mxu0 0.0
        %1101 = vmatprep.subr.mxu0 0.0
        %1102 = vmatpush1.msra.mxu0 0.0
        %1103 = vmatprep.subr.mxu0 0.0
        %1104 = vmatpush1.msra.mxu0 0.0
        %1105 = vmatprep.subr.mxu0 0.0
        %1106 = vmatpush1.msra.mxu0 0.0
        %1107 = vmatprep.subr.mxu0 0.0
        %1108 = vmatpush1.msra.mxu0 0.0
        %1109 = vmatprep.subr.mxu0 0.0
        %1110 = vmatpush1.msra.mxu0 0.0
        %1111 = vmatprep.subr.mxu0 0.0
        %1112 = vmatpush1.msra.mxu0 0.0
        %1113 = vmatprep.subr.mxu0 0.0
        %1114 = vmatpush1.msra.mxu0 0.0
        %1115 = vmatprep.subr.mxu0 0.0
        %1116 = vmatpush1.msra.mxu0 0.0
        %1117 = vmatprep.subr.mxu0 0.0
        %1118 = vmatpush1.msra.mxu0 0.0
        %1119 = vmatprep.subr.mxu0 0.0
        %1120 = vmatpush1.msra.mxu0 0.0
        %1121 = vmatprep.subr.mxu0 0.0
        %1122 = vmatpush1.msra.mxu0 0.0
        %1123 = vmatprep.subr.mxu0 0.0
        %1124 = vmatpush1.msra.mxu0 0.0
        %1125 = vmatprep.subr.mxu0 0.0
        %1126 = vmatpush1.msra.mxu0 0.0
        %1127 = vmatprep.subr.mxu0 0.0
        %1128 = vmatpush1.msra.mxu0 0.0
        %1129 = vmatprep.subr.mxu0 0.0
        %1130 = vmatpush1.msra.mxu0 0.0
        %1131 = vmatprep.subr.mxu0 0.0
        %1132 = vmatpush1.msra.mxu0 0.0
        %1133 = vmatprep.subr.mxu0 0.0
        %1134 = vmatpush1.msra.mxu0 0.0
        %1135 = vmatprep.subr.mxu0 0.0
        %1136 = vmatpush1.msra.mxu0 0.0
        %1137 = vmatprep.mubr.f32.mxu0 0.0
        %1138 = vmatmul.mubr.f32.gmra.mrb[0].mxu0 %v1068
        %v1139 = vpop.f32.mrb[0].mxu0
        %v1140 = vadd.f32 0.0, %v1139
        %v1141 = vpop.f32.mrb[0].mxu0
        %1142 = vmatprep.mubr.f32.mxu0 0.0
        %1143 = vmatmul.mubr.f32.gmra.mrb[0].mxu0 %v1071
        %v1144 = vpop.f32.mrb[0].mxu0
        %v1145 = vadd.f32 0.0, %v1144
        %v1146 = vpop.f32.mrb[0].mxu0
        %1147 = vdwg.mxu0
        %v1149 = vsel %vm1066, %v477, 0
        %v1152 = vsel %vm1066, %v482, 0
        %1154 = vmatprep.subr.mxu0 0.0
        %1155 = vmatpush1.msra.mxu0 %v687
        %1156 = vmatprep.subr.mxu0 0.0
        %1157 = vmatpush1.msra.mxu0 %v692
        %1158 = vmatprep.subr.mxu0 0.0
        %1159 = vmatpush1.msra.mxu0 %v697
        %1160 = vmatprep.subr.mxu0 0.0
        %1161 = vmatpush1.msra.mxu0 %v702
        %1162 = vmatprep.subr.mxu0 0.0
        %1163 = vmatpush1.msra.mxu0 0.0
        %1164 = vmatprep.subr.mxu0 0.0
        %1165 = vmatpush1.msra.mxu0 0.0
        %1166 = vmatprep.subr.mxu0 0.0
        %1167 = vmatpush1.msra.mxu0 0.0
        %1168 = vmatprep.subr.mxu0 0.0
        %1169 = vmatpush1.msra.mxu0 0.0
        %1170 = vmatprep.subr.mxu0 0.0
        %1171 = vmatpush1.msra.mxu0 0.0
        %1172 = vmatprep.subr.mxu0 0.0
        %1173 = vmatpush1.msra.mxu0 0.0
        %1174 = vmatprep.subr.mxu0 0.0
        %1175 = vmatpush1.msra.mxu0 0.0
        %1176 = vmatprep.subr.mxu0 0.0
        %1177 = vmatpush1.msra.mxu0 0.0
        %1178 = vmatprep.subr.mxu0 0.0
        %1179 = vmatpush1.msra.mxu0 0.0
        %1180 = vmatprep.subr.mxu0 0.0
        %1181 = vmatpush1.msra.mxu0 0.0
        %1182 = vmatprep.subr.mxu0 0.0
        %1183 = vmatpush1.msra.mxu0 0.0
        %1184 = vmatprep.subr.mxu0 0.0
        %1185 = vmatpush1.msra.mxu0 0.0
        %1186 = vmatprep.subr.mxu0 0.0
        %1187 = vmatpush1.msra.mxu0 0.0
        %1188 = vmatprep.subr.mxu0 0.0
        %1189 = vmatpush1.msra.mxu0 0.0
        %1190 = vmatprep.subr.mxu0 0.0
        %1191 = vmatpush1.msra.mxu0 0.0
        %1192 = vmatprep.subr.mxu0 0.0
        %1193 = vmatpush1.msra.mxu0 0.0
        %1194 = vmatprep.subr.mxu0 0.0
        %1195 = vmatpush1.msra.mxu0 0.0
        %1196 = vmatprep.subr.mxu0 0.0
        %1197 = vmatpush1.msra.mxu0 0.0
        %1198 = vmatprep.subr.mxu0 0.0
        %1199 = vmatpush1.msra.mxu0 0.0
        %1200 = vmatprep.subr.mxu0 0.0
        %1201 = vmatpush1.msra.mxu0 0.0
        %1202 = vmatprep.subr.mxu0 0.0
        %1203 = vmatpush1.msra.mxu0 0.0
        %1204 = vmatprep.subr.mxu0 0.0
        %1205 = vmatpush1.msra.mxu0 0.0
        %1206 = vmatprep.subr.mxu0 0.0
        %1207 = vmatpush1.msra.mxu0 0.0
        %1208 = vmatprep.subr.mxu0 0.0
        %1209 = vmatpush1.msra.mxu0 0.0
        %1210 = vmatprep.subr.mxu0 0.0
        %1211 = vmatpush1.msra.mxu0 0.0
        %1212 = vmatprep.subr.mxu0 0.0
        %1213 = vmatpush1.msra.mxu0 0.0
        %1214 = vmatprep.subr.mxu0 0.0
        %1215 = vmatpush1.msra.mxu0 0.0
        %1216 = vmatprep.subr.mxu0 0.0
        %1217 = vmatpush1.msra.mxu0 0.0
        %1218 = vmatprep.mubr.f32.mxu0 0.0
        %1219 = vmatmul.mubr.f32.gmra.mrb[0].mxu0 %v1149
        %v1220 = vpop.f32.mrb[0].mxu0
        %v1221 = vadd.f32 %v1140, %v1220
        %v1222 = vpop.f32.mrb[0].mxu0
        %1223 = vmatprep.mubr.f32.mxu0 0.0
        %1224 = vmatmul.mubr.f32.gmra.mrb[0].mxu0 %v1152
        %v1225 = vpop.f32.mrb[0].mxu0
        %v1226 = vadd.f32 %v1145, %v1225
        %v1227 = vpop.f32.mrb[0].mxu0
        %1228 = vdwg.mxu0
        %1229 = vmatprep.subr.mxu0 0.0
        %1230 = vmatpush1.msra.mxu0 %v687
        %1231 = vmatprep.subr.mxu0 0.0
        %1232 = vmatpush1.msra.mxu0 %v692
        %1233 = vmatprep.subr.mxu0 0.0
        %1234 = vmatpush1.msra.mxu0 %v697
        %1235 = vmatprep.subr.mxu0 0.0
        %1236 = vmatpush1.msra.mxu0 %v702
        %1237 = vmatprep.subr.mxu0 0.0
        %1238 = vmatpush1.msra.mxu0 0.0
        %1239 = vmatprep.subr.mxu0 0.0
        %1240 = vmatpush1.msra.mxu0 0.0
        %1241 = vmatprep.subr.mxu0 0.0
        %1242 = vmatpush1.msra.mxu0 0.0
        %1243 = vmatprep.subr.mxu0 0.0
        %1244 = vmatpush1.msra.mxu0 0.0
        %1245 = vmatprep.subr.mxu0 0.0
        %1246 = vmatpush1.msra.mxu0 0.0
        %1247 = vmatprep.subr.mxu0 0.0
        %1248 = vmatpush1.msra.mxu0 0.0
        %1249 = vmatprep.subr.mxu0 0.0
        %1250 = vmatpush1.msra.mxu0 0.0
        %1251 = vmatprep.subr.mxu0 0.0
        %1252 = vmatpush1.msra.mxu0 0.0
        %1253 = vmatprep.subr.mxu0 0.0
        %1254 = vmatpush1.msra.mxu0 0.0
        %1255 = vmatprep.subr.mxu0 0.0
        %1256 = vmatpush1.msra.mxu0 0.0
        %1257 = vmatprep.subr.mxu0 0.0
        %1258 = vmatpush1.msra.mxu0 0.0
        %1259 = vmatprep.subr.mxu0 0.0
        %1260 = vmatpush1.msra.mxu0 0.0
        %1261 = vmatprep.subr.mxu0 0.0
        %1262 = vmatpush1.msra.mxu0 0.0
        %1263 = vmatprep.subr.mxu0 0.0
        %1264 = vmatpush1.msra.mxu0 0.0
        %1265 = vmatprep.subr.mxu0 0.0
        %1266 = vmatpush1.msra.mxu0 0.0
        %1267 = vmatprep.subr.mxu0 0.0
        %1268 = vmatpush1.msra.mxu0 0.0
        %1269 = vmatprep.subr.mxu0 0.0
        %1270 = vmatpush1.msra.mxu0 0.0
        %1271 = vmatprep.subr.mxu0 0.0
        %1272 = vmatpush1.msra.mxu0 0.0
        %1273 = vmatprep.subr.mxu0 0.0
        %1274 = vmatpush1.msra.mxu0 0.0
        %1275 = vmatprep.subr.mxu0 0.0
        %1276 = vmatpush1.msra.mxu0 0.0
        %1277 = vmatprep.subr.mxu0 0.0
        %1278 = vmatpush1.msra.mxu0 0.0
        %1279 = vmatprep.subr.mxu0 0.0
        %1280 = vmatpush1.msra.mxu0 0.0
        %1281 = vmatprep.subr.mxu0 0.0
        %1282 = vmatpush1.msra.mxu0 0.0
        %1283 = vmatprep.subr.mxu0 0.0
        %1284 = vmatpush1.msra.mxu0 0.0
        %1285 = vmatprep.subr.mxu0 0.0
        %1286 = vmatpush1.msra.mxu0 0.0
        %1287 = vmatprep.subr.mxu0 0.0
        %1288 = vmatpush1.msra.mxu0 0.0
        %1289 = vmatprep.subr.mxu0 0.0
        %1290 = vmatpush1.msra.mxu0 0.0
        %1291 = vmatprep.subr.mxu0 0.0
        %1292 = vmatpush1.msra.mxu0 0.0
        %1293 = vmatprep.mubr.f32.mxu0 0.0
        %1294 = vmatmul.mubr.f32.gmra.mrb[0].mxu0 %v1068
        %v1295 = vpop.f32.mrb[0].mxu0
        %v1296 = vadd.f32 0.0, %v1295
        %v1297 = vpop.f32.mrb[0].mxu0
        %1298 = vmatprep.mubr.f32.mxu0 0.0
        %1299 = vmatmul.mubr.f32.gmra.mrb[0].mxu0 %v1071
        %v1300 = vpop.f32.mrb[0].mxu0
        %v1301 = vadd.f32 0.0, %v1300
        %v1302 = vpop.f32.mrb[0].mxu0
        %1303 = vdwg.mxu0
        %1304 = vmatprep.subr.mxu0 0.0
        %1305 = vmatpush1.msra.mxu0 %v838
        %1306 = vmatprep.subr.mxu0 0.0
        %1307 = vmatpush1.msra.mxu0 %v843
        %1308 = vmatprep.subr.mxu0 0.0
        %1309 = vmatpush1.msra.mxu0 %v848
        %1310 = vmatprep.subr.mxu0 0.0
        %1311 = vmatpush1.msra.mxu0 %v853
        %1312 = vmatprep.subr.mxu0 0.0
        %1313 = vmatpush1.msra.mxu0 0.0
        %1314 = vmatprep.subr.mxu0 0.0
        %1315 = vmatpush1.msra.mxu0 0.0
        %1316 = vmatprep.subr.mxu0 0.0
        %1317 = vmatpush1.msra.mxu0 0.0
        %1318 = vmatprep.subr.mxu0 0.0
        %1319 = vmatpush1.msra.mxu0 0.0
        %1320 = vmatprep.subr.mxu0 0.0
        %1321 = vmatpush1.msra.mxu0 0.0
        %1322 = vmatprep.subr.mxu0 0.0
        %1323 = vmatpush1.msra.mxu0 0.0
        %1324 = vmatprep.subr.mxu0 0.0
        %1325 = vmatpush1.msra.mxu0 0.0
        %1326 = vmatprep.subr.mxu0 0.0
        %1327 = vmatpush1.msra.mxu0 0.0
        %1328 = vmatprep.subr.mxu0 0.0
        %1329 = vmatpush1.msra.mxu0 0.0
        %1330 = vmatprep.subr.mxu0 0.0
        %1331 = vmatpush1.msra.mxu0 0.0
        %1332 = vmatprep.subr.mxu0 0.0
        %1333 = vmatpush1.msra.mxu0 0.0
        %1334 = vmatprep.subr.mxu0 0.0
        %1335 = vmatpush1.msra.mxu0 0.0
        %1336 = vmatprep.subr.mxu0 0.0
        %1337 = vmatpush1.msra.mxu0 0.0
        %1338 = vmatprep.subr.mxu0 0.0
        %1339 = vmatpush1.msra.mxu0 0.0
        %1340 = vmatprep.subr.mxu0 0.0
        %1341 = vmatpush1.msra.mxu0 0.0
        %1342 = vmatprep.subr.mxu0 0.0
        %1343 = vmatpush1.msra.mxu0 0.0
        %1344 = vmatprep.subr.mxu0 0.0
        %1345 = vmatpush1.msra.mxu0 0.0
        %1346 = vmatprep.subr.mxu0 0.0
        %1347 = vmatpush1.msra.mxu0 0.0
        %1348 = vmatprep.subr.mxu0 0.0
        %1349 = vmatpush1.msra.mxu0 0.0
        %1350 = vmatprep.subr.mxu0 0.0
        %1351 = vmatpush1.msra.mxu0 0.0
        %1352 = vmatprep.subr.mxu0 0.0
        %1353 = vmatpush1.msra.mxu0 0.0
        %1354 = vmatprep.subr.mxu0 0.0
        %1355 = vmatpush1.msra.mxu0 0.0
        %1356 = vmatprep.subr.mxu0 0.0
        %1357 = vmatpush1.msra.mxu0 0.0
        %1358 = vmatprep.subr.mxu0 0.0
        %1359 = vmatpush1.msra.mxu0 0.0
        %1360 = vmatprep.subr.mxu0 0.0
        %1361 = vmatpush1.msra.mxu0 0.0
        %1362 = vmatprep.subr.mxu0 0.0
        %1363 = vmatpush1.msra.mxu0 0.0
        %1364 = vmatprep.subr.mxu0 0.0
        %1365 = vmatpush1.msra.mxu0 0.0
        %1366 = vmatprep.subr.mxu0 0.0
        %1367 = vmatpush1.msra.mxu0 0.0
        %1368 = vmatprep.mubr.f32.mxu0 0.0
        %1369 = vmatmul.mubr.f32.gmra.mrb[0].mxu0 %v1149
        %v1370 = vpop.f32.mrb[0].mxu0
        %v1371 = vadd.f32 0.0, %v1370
        %v1372 = vpop.f32.mrb[0].mxu0
        %1373 = vmatprep.mubr.f32.mxu0 0.0
        %1374 = vmatmul.mubr.f32.gmra.mrb[0].mxu0 %v1152
        %v1375 = vpop.f32.mrb[0].mxu0
        %v1376 = vadd.f32 0.0, %v1375
        %v1377 = vpop.f32.mrb[0].mxu0
        %1378 = vdwg.mxu0
        %v1379 = vsub.f32 %v1296, %v1371
        %v1380 = vsub.f32 %v1301, %v1376
        %v1381 = vmul.f32 %v1221, %v1221
        %v1382 = vmul.f32 %v1226, %v1226
        %v1383 = vmul.f32 %v1379, %v1379
        %v1384 = vmul.f32 %v1380, %v1380
        %v1385 = vadd.f32 %v1381, %v1383
        %v1386 = vadd.f32 %v1382, %v1384
        %v1387 = vrsqrt.pop %v1385
        %v1388 = vmul.f32 %v1385, %v1387
        %vm1389 = vcmp.eq.f32.partialorder %v1385, inf
        %v1390 = vsel %vm1389, %v1385, %v1388
        %vm1391 = vcmp.eq.f32.partialorder %v1385, 0.0
        %v1392 = vand.u32 %v1385, 2147483648
        %v1393 = vsel %vm1391, %v1392, %v1390
        %v1394 = vrsqrt.pop %v1386
        %v1395 = vmul.f32 %v1386, %v1394
        %vm1396 = vcmp.eq.f32.partialorder %v1386, inf
        %v1397 = vsel %vm1396, %v1386, %v1395
        %vm1398 = vcmp.eq.f32.partialorder %v1386, 0.0
        %v1399 = vand.u32 %v1386, 2147483648
        %v1400 = vsel %vm1398, %v1399, %v1397
        %vm1401 = vcmask 72704
        %v1402 = vsel %vm1401, %v1393, -inf
        %1403 = vmax.xlane.f32.xlu0 %v1402
        %v1404 = vpop.xlane.xlu0 %1403
        %vm1405 = vcmask 65536
        %v1406 = vsel %vm1405, %v1400, -inf
        %1407 = vmax.xlane.f32.xlu0 %v1406
        %v1408 = vpop.xlane.xlu0 %1407
        %v1409 = vsub.f32 %v1393, %v1404
        %v1410 = vsub.f32 %v1400, %v1408
        %v1411 = vmul.f32 %v1409, 1.442695
        %v1412 = vpow.pop %v1411
        %v1413 = vmul.f32 %v1410, 1.442695
        %v1414 = vpow.pop %v1413
        %v1415 = vsel %vm1401, %v1412, 0.0
        %1416 = vadd.xlane.f32.xlu0 %v1415
        %v1417 = vpop.xlane.xlu0 %1416
        %v1418 = vsel %vm1405, %v1414, 0.0
        %1419 = vadd.xlane.f32.xlu0 %v1418
        %v1420 = vpop.xlane.xlu0 %1419
        %v1421 = vrcp.pop %v1417
        %v1422 = vmul.f32 %v1412, %v1421
        %v1423 = vrcp.pop %v1420
        %v1424 = vmul.f32 %v1414, %v1423
        %v1426 = vsel %vm1401, %v1422, 0
        %v1429 = vsel %vm1401, %v1424, 0
        %vm1431 = vcmask 1040384
        %v1433 = vsel %vm1431, %v988, 0
        %1435 = vmatprep.subr.mxu0 0.0
        %1436 = vmatpush1.msra.mxu0 %v983
        %1437 = vmatprep.subr.mxu0 0.0
        %1438 = vmatpush1.msra.mxu0 %v1433
        %1439 = vmatprep.subr.mxu0 0.0
        %1440 = vmatpush1.msra.mxu0 0.0
        %1441 = vmatprep.subr.mxu0 0.0
        %1442 = vmatpush1.msra.mxu0 0.0
        %1443 = vmatprep.subr.mxu0 0.0
        %1444 = vmatpush1.msra.mxu0 0.0
        %1445 = vmatprep.subr.mxu0 0.0
        %1446 = vmatpush1.msra.mxu0 0.0
        %1447 = vmatprep.subr.mxu0 0.0
        %1448 = vmatpush1.msra.mxu0 0.0
        %1449 = vmatprep.subr.mxu0 0.0
        %1450 = vmatpush1.msra.mxu0 0.0
        %1451 = vmatprep.subr.mxu0 0.0
        %1452 = vmatpush1.msra.mxu0 0.0
        %1453 = vmatprep.subr.mxu0 0.0
        %1454 = vmatpush1.msra.mxu0 0.0
        %1455 = vmatprep.subr.mxu0 0.0
        %1456 = vmatpush1.msra.mxu0 0.0
        %1457 = vmatprep.subr.mxu0 0.0
        %1458 = vmatpush1.msra.mxu0 0.0
        %1459 = vmatprep.subr.mxu0 0.0
        %1460 = vmatpush1.msra.mxu0 0.0
        %1461 = vmatprep.subr.mxu0 0.0
        %1462 = vmatpush1.msra.mxu0 0.0
        %1463 = vmatprep.subr.mxu0 0.0
        %1464 = vmatpush1.msra.mxu0 0.0
        %1465 = vmatprep.subr.mxu0 0.0
        %1466 = vmatpush1.msra.mxu0 0.0
        %1467 = vmatprep.subr.mxu0 0.0
        %1468 = vmatpush1.msra.mxu0 0.0
        %1469 = vmatprep.subr.mxu0 0.0
        %1470 = vmatpush1.msra.mxu0 0.0
        %1471 = vmatprep.subr.mxu0 0.0
        %1472 = vmatpush1.msra.mxu0 0.0
        %1473 = vmatprep.subr.mxu0 0.0
        %1474 = vmatpush1.msra.mxu0 0.0
        %1475 = vmatprep.subr.mxu0 0.0
        %1476 = vmatpush1.msra.mxu0 0.0
        %1477 = vmatprep.subr.mxu0 0.0
        %1478 = vmatpush1.msra.mxu0 0.0
        %1479 = vmatprep.subr.mxu0 0.0
        %1480 = vmatpush1.msra.mxu0 0.0
        %1481 = vmatprep.subr.mxu0 0.0
        %1482 = vmatpush1.msra.mxu0 0.0
        %1483 = vmatprep.subr.mxu0 0.0
        %1484 = vmatpush1.msra.mxu0 0.0
        %1485 = vmatprep.subr.mxu0 0.0
        %1486 = vmatpush1.msra.mxu0 0.0
        %1487 = vmatprep.subr.mxu0 0.0
        %1488 = vmatpush1.msra.mxu0 0.0
        %1489 = vmatprep.subr.mxu0 0.0
        %1490 = vmatpush1.msra.mxu0 0.0
        %1491 = vmatprep.subr.mxu0 0.0
        %1492 = vmatpush1.msra.mxu0 0.0
        %1493 = vmatprep.subr.mxu0 0.0
        %1494 = vmatpush1.msra.mxu0 0.0
        %1495 = vmatprep.subr.mxu0 0.0
        %1496 = vmatpush1.msra.mxu0 0.0
        %1497 = vmatprep.subr.mxu0 0.0
        %1498 = vmatpush1.msra.mxu0 0.0
        %1499 = vmatprep.mubr.f32.mxu0 0.0
        %1500 = vmatmul.mubr.f32.gmra.mrb[0].mxu0 %v1426
        %v1501 = vpop.f32.mrb[0].mxu0
        %v1502 = vadd.f32 0.0, %v1501
        %v1503 = vpop.f32.mrb[0].mxu0
        %1504 = vmatprep.mubr.f32.mxu0 0.0
        %1505 = vmatmul.mubr.f32.gmra.mrb[0].mxu0 %v1429
        %v1506 = vpop.f32.mrb[0].mxu0
        %v1507 = vadd.f32 0.0, %v1506
        %v1508 = vpop.f32.mrb[0].mxu0
        %1509 = vdwg.mxu0
        %1510 = vst.msk [vmem:[#allocation2] sm:$0xff] %vm1066, %v1502
        %vm1511 = vcmask 253952
        %1512 = vst.msk [vmem:[#allocation2 + $0x8] sm:$0x1] %vm1511, %v1507
        %v1514 = vsel %vm1431, %v1063, 0
        %1516 = vmatprep.subr.mxu0 0.0
        %1517 = vmatpush1.msra.mxu0 %v1058
        %1518 = vmatprep.subr.mxu0 0.0
        %1519 = vmatpush1.msra.mxu0 %v1514
        %1520 = vmatprep.subr.mxu0 0.0
        %1521 = vmatpush1.msra.mxu0 0.0
        %1522 = vmatprep.subr.mxu0 0.0
        %1523 = vmatpush1.msra.mxu0 0.0
        %1524 = vmatprep.subr.mxu0 0.0
        %1525 = vmatpush1.msra.mxu0 0.0
        %1526 = vmatprep.subr.mxu0 0.0
        %1527 = vmatpush1.msra.mxu0 0.0
        %1528 = vmatprep.subr.mxu0 0.0
        %1529 = vmatpush1.msra.mxu0 0.0
        %1530 = vmatprep.subr.mxu0 0.0
        %1531 = vmatpush1.msra.mxu0 0.0
        %1532 = vmatprep.subr.mxu0 0.0
        %1533 = vmatpush1.msra.mxu0 0.0
        %1534 = vmatprep.subr.mxu0 0.0
        %1535 = vmatpush1.msra.mxu0 0.0
        %1536 = vmatprep.subr.mxu0 0.0
        %1537 = vmatpush1.msra.mxu0 0.0
        %1538 = vmatprep.subr.mxu0 0.0
        %1539 = vmatpush1.msra.mxu0 0.0
        %1540 = vmatprep.subr.mxu0 0.0
        %1541 = vmatpush1.msra.mxu0 0.0
        %1542 = vmatprep.subr.mxu0 0.0
        %1543 = vmatpush1.msra.mxu0 0.0
        %1544 = vmatprep.subr.mxu0 0.0
        %1545 = vmatpush1.msra.mxu0 0.0
        %1546 = vmatprep.subr.mxu0 0.0
        %1547 = vmatpush1.msra.mxu0 0.0
        %1548 = vmatprep.subr.mxu0 0.0
        %1549 = vmatpush1.msra.mxu0 0.0
        %1550 = vmatprep.subr.mxu0 0.0
        %1551 = vmatpush1.msra.mxu0 0.0
        %1552 = vmatprep.subr.mxu0 0.0
        %1553 = vmatpush1.msra.mxu0 0.0
        %1554 = vmatprep.subr.mxu0 0.0
        %1555 = vmatpush1.msra.mxu0 0.0
        %1556 = vmatprep.subr.mxu0 0.0
        %1557 = vmatpush1.msra.mxu0 0.0
        %1558 = vmatprep.subr.mxu0 0.0
        %1559 = vmatpush1.msra.mxu0 0.0
        %1560 = vmatprep.subr.mxu0 0.0
        %1561 = vmatpush1.msra.mxu0 0.0
        %1562 = vmatprep.subr.mxu0 0.0
        %1563 = vmatpush1.msra.mxu0 0.0
        %1564 = vmatprep.subr.mxu0 0.0
        %1565 = vmatpush1.msra.mxu0 0.0
        %1566 = vmatprep.subr.mxu0 0.0
        %1567 = vmatpush1.msra.mxu0 0.0
        %1568 = vmatprep.subr.mxu0 0.0
        %1569 = vmatpush1.msra.mxu0 0.0
        %1570 = vmatprep.subr.mxu0 0.0
        %1571 = vmatpush1.msra.mxu0 0.0
        %1572 = vmatprep.subr.mxu0 0.0
        %1573 = vmatpush1.msra.mxu0 0.0
        %1574 = vmatprep.subr.mxu0 0.0
        %1575 = vmatpush1.msra.mxu0 0.0
        %1576 = vmatprep.subr.mxu0 0.0
        %1577 = vmatpush1.msra.mxu0 0.0
        %1578 = vmatprep.subr.mxu0 0.0
        %1579 = vmatpush1.msra.mxu0 0.0
        %1580 = vmatprep.mubr.f32.mxu0 0.0
        %1581 = vmatmul.mubr.f32.gmra.mrb[0].mxu0 %v1426
        %v1582 = vpop.f32.mrb[0].mxu0
        %v1583 = vadd.f32 0.0, %v1582
        %v1584 = vpop.f32.mrb[0].mxu0
        %1585 = vmatprep.mubr.f32.mxu0 0.0
        %1586 = vmatmul.mubr.f32.gmra.mrb[0].mxu0 %v1429
        %v1587 = vpop.f32.mrb[0].mxu0
        %v1588 = vadd.f32 0.0, %v1587
        %v1589 = vpop.f32.mrb[0].mxu0
        %1590 = vdwg.mxu0
        %1591 = vst.msk [vmem:[#allocation3] sm:$0xff] %vm1066, %v1583
        %1592 = vst.msk [vmem:[#allocation3 + $0x8] sm:$0x1] %vm1511, %v1588
        %1593 = vrot.lane.b32.xlu0 %v558, 96
        %v1594 = vpop.permute.xlu0 %1593
        %1595 = vrot.lane.b32.xlu0 %v563, 96
        %v1596 = vpop.permute.xlu0 %1595
        %v1597 = vsel %vm1066, %v1594, 0
        %v1599 = vsel %vm1066, %v1596, 0
        %1601 = vmatprep.subr.mxu0 0.0
        %1602 = vmatpush1.msra.mxu0 %v858
        %1603 = vmatprep.subr.mxu0 0.0
        %1604 = vmatpush1.msra.mxu0 %v863
        %1605 = vmatprep.subr.mxu0 0.0
        %1606 = vmatpush1.msra.mxu0 %v868
        %1607 = vmatprep.subr.mxu0 0.0
        %1608 = vmatpush1.msra.mxu0 %v873
        %1609 = vmatprep.subr.mxu0 0.0
        %1610 = vmatpush1.msra.mxu0 0.0
        %1611 = vmatprep.subr.mxu0 0.0
        %1612 = vmatpush1.msra.mxu0 0.0
        %1613 = vmatprep.subr.mxu0 0.0
        %1614 = vmatpush1.msra.mxu0 0.0
        %1615 = vmatprep.subr.mxu0 0.0
        %1616 = vmatpush1.msra.mxu0 0.0
        %1617 = vmatprep.subr.mxu0 0.0
        %1618 = vmatpush1.msra.mxu0 0.0
        %1619 = vmatprep.subr.mxu0 0.0
        %1620 = vmatpush1.msra.mxu0 0.0
        %1621 = vmatprep.subr.mxu0 0.0
        %1622 = vmatpush1.msra.mxu0 0.0
        %1623 = vmatprep.subr.mxu0 0.0
        %1624 = vmatpush1.msra.mxu0 0.0
        %1625 = vmatprep.subr.mxu0 0.0
        %1626 = vmatpush1.msra.mxu0 0.0
        %1627 = vmatprep.subr.mxu0 0.0
        %1628 = vmatpush1.msra.mxu0 0.0
        %1629 = vmatprep.subr.mxu0 0.0
        %1630 = vmatpush1.msra.mxu0 0.0
        %1631 = vmatprep.subr.mxu0 0.0
        %1632 = vmatpush1.msra.mxu0 0.0
        %1633 = vmatprep.subr.mxu0 0.0
        %1634 = vmatpush1.msra.mxu0 0.0
        %1635 = vmatprep.subr.mxu0 0.0
        %1636 = vmatpush1.msra.mxu0 0.0
        %1637 = vmatprep.subr.mxu0 0.0
        %1638 = vmatpush1.msra.mxu0 0.0
        %1639 = vmatprep.subr.mxu0 0.0
        %1640 = vmatpush1.msra.mxu0 0.0
        %1641 = vmatprep.subr.mxu0 0.0
        %1642 = vmatpush1.msra.mxu0 0.0
        %1643 = vmatprep.subr.mxu0 0.0
        %1644 = vmatpush1.msra.mxu0 0.0
        %1645 = vmatprep.subr.mxu0 0.0
        %1646 = vmatpush1.msra.mxu0 0.0
        %1647 = vmatprep.subr.mxu0 0.0
        %1648 = vmatpush1.msra.mxu0 0.0
        %1649 = vmatprep.subr.mxu0 0.0
        %1650 = vmatpush1.msra.mxu0 0.0
        %1651 = vmatprep.subr.mxu0 0.0
        %1652 = vmatpush1.msra.mxu0 0.0
        %1653 = vmatprep.subr.mxu0 0.0
        %1654 = vmatpush1.msra.mxu0 0.0
        %1655 = vmatprep.subr.mxu0 0.0
        %1656 = vmatpush1.msra.mxu0 0.0
        %1657 = vmatprep.subr.mxu0 0.0
        %1658 = vmatpush1.msra.mxu0 0.0
        %1659 = vmatprep.subr.mxu0 0.0
        %1660 = vmatpush1.msra.mxu0 0.0
        %1661 = vmatprep.subr.mxu0 0.0
        %1662 = vmatpush1.msra.mxu0 0.0
        %1663 = vmatprep.subr.mxu0 0.0
        %1664 = vmatpush1.msra.mxu0 0.0
        %1665 = vmatprep.mubr.f32.mxu0 0.0
        %1666 = vmatmul.mubr.f32.gmra.mrb[0].mxu0 %v1597
        %v1667 = vpop.f32.mrb[0].mxu0
        %v1668 = vadd.f32 0.0, %v1667
        %v1669 = vpop.f32.mrb[0].mxu0
        %1670 = vmatprep.mubr.f32.mxu0 0.0
        %1671 = vmatmul.mubr.f32.gmra.mrb[0].mxu0 %v1599
        %v1672 = vpop.f32.mrb[0].mxu0
        %v1673 = vadd.f32 0.0, %v1672
        %v1674 = vpop.f32.mrb[0].mxu0
        %1675 = vdwg.mxu0
        %1676 = vrot.lane.b32.xlu0 %v477, 96
        %v1677 = vpop.permute.xlu0 %1676
        %1678 = vrot.lane.b32.xlu0 %v482, 96
        %v1679 = vpop.permute.xlu0 %1678
        %v1680 = vsel %vm1066, %v1677, 0
        %v1682 = vsel %vm1066, %v1679, 0
        %1684 = vmatprep.subr.mxu0 0.0
        %1685 = vmatpush1.msra.mxu0 %v707
        %1686 = vmatprep.subr.mxu0 0.0
        %1687 = vmatpush1.msra.mxu0 %v712
        %1688 = vmatprep.subr.mxu0 0.0
        %1689 = vmatpush1.msra.mxu0 %v717
        %1690 = vmatprep.subr.mxu0 0.0
        %1691 = vmatpush1.msra.mxu0 %v722
        %1692 = vmatprep.subr.mxu0 0.0
        %1693 = vmatpush1.msra.mxu0 0.0
        %1694 = vmatprep.subr.mxu0 0.0
        %1695 = vmatpush1.msra.mxu0 0.0
        %1696 = vmatprep.subr.mxu0 0.0
        %1697 = vmatpush1.msra.mxu0 0.0
        %1698 = vmatprep.subr.mxu0 0.0
        %1699 = vmatpush1.msra.mxu0 0.0
        %1700 = vmatprep.subr.mxu0 0.0
        %1701 = vmatpush1.msra.mxu0 0.0
        %1702 = vmatprep.subr.mxu0 0.0
        %1703 = vmatpush1.msra.mxu0 0.0
        %1704 = vmatprep.subr.mxu0 0.0
        %1705 = vmatpush1.msra.mxu0 0.0
        %1706 = vmatprep.subr.mxu0 0.0
        %1707 = vmatpush1.msra.mxu0 0.0
        %1708 = vmatprep.subr.mxu0 0.0
        %1709 = vmatpush1.msra.mxu0 0.0
        %1710 = vmatprep.subr.mxu0 0.0
        %1711 = vmatpush1.msra.mxu0 0.0
        %1712 = vmatprep.subr.mxu0 0.0
        %1713 = vmatpush1.msra.mxu0 0.0
        %1714 = vmatprep.subr.mxu0 0.0
        %1715 = vmatpush1.msra.mxu0 0.0
        %1716 = vmatprep.subr.mxu0 0.0
        %1717 = vmatpush1.msra.mxu0 0.0
        %1718 = vmatprep.subr.mxu0 0.0
        %1719 = vmatpush1.msra.mxu0 0.0
        %1720 = vmatprep.subr.mxu0 0.0
        %1721 = vmatpush1.msra.mxu0 0.0
        %1722 = vmatprep.subr.mxu0 0.0
        %1723 = vmatpush1.msra.mxu0 0.0
        %1724 = vmatprep.subr.mxu0 0.0
        %1725 = vmatpush1.msra.mxu0 0.0
        %1726 = vmatprep.subr.mxu0 0.0
        %1727 = vmatpush1.msra.mxu0 0.0
        %1728 = vmatprep.subr.mxu0 0.0
        %1729 = vmatpush1.msra.mxu0 0.0
        %1730 = vmatprep.subr.mxu0 0.0
        %1731 = vmatpush1.msra.mxu0 0.0
        %1732 = vmatprep.subr.mxu0 0.0
        %1733 = vmatpush1.msra.mxu0 0.0
        %1734 = vmatprep.subr.mxu0 0.0
        %1735 = vmatpush1.msra.mxu0 0.0
        %1736 = vmatprep.subr.mxu0 0.0
        %1737 = vmatpush1.msra.mxu0 0.0
        %1738 = vmatprep.subr.mxu0 0.0
        %1739 = vmatpush1.msra.mxu0 0.0
        %1740 = vmatprep.subr.mxu0 0.0
        %1741 = vmatpush1.msra.mxu0 0.0
        %1742 = vmatprep.subr.mxu0 0.0
        %1743 = vmatpush1.msra.mxu0 0.0
        %1744 = vmatprep.subr.mxu0 0.0
        %1745 = vmatpush1.msra.mxu0 0.0
        %1746 = vmatprep.subr.mxu0 0.0
        %1747 = vmatpush1.msra.mxu0 0.0
        %1748 = vmatprep.mubr.f32.mxu0 0.0
        %1749 = vmatmul.mubr.f32.gmra.mrb[0].mxu0 %v1680
        %v1750 = vpop.f32.mrb[0].mxu0
        %v1751 = vadd.f32 %v1668, %v1750
        %v1752 = vpop.f32.mrb[0].mxu0
        %1753 = vmatprep.mubr.f32.mxu0 0.0
        %1754 = vmatmul.mubr.f32.gmra.mrb[0].mxu0 %v1682
        %v1755 = vpop.f32.mrb[0].mxu0
        %v1756 = vadd.f32 %v1673, %v1755
        %v1757 = vpop.f32.mrb[0].mxu0
        %1758 = vdwg.mxu0
        %1759 = vmatprep.subr.mxu0 0.0
        %1760 = vmatpush1.msra.mxu0 %v707
        %1761 = vmatprep.subr.mxu0 0.0
        %1762 = vmatpush1.msra.mxu0 %v712
        %1763 = vmatprep.subr.mxu0 0.0
        %1764 = vmatpush1.msra.mxu0 %v717
        %1765 = vmatprep.subr.mxu0 0.0
        %1766 = vmatpush1.msra.mxu0 %v722
        %1767 = vmatprep.subr.mxu0 0.0
        %1768 = vmatpush1.msra.mxu0 0.0
        %1769 = vmatprep.subr.mxu0 0.0
        %1770 = vmatpush1.msra.mxu0 0.0
        %1771 = vmatprep.subr.mxu0 0.0
        %1772 = vmatpush1.msra.mxu0 0.0
        %1773 = vmatprep.subr.mxu0 0.0
        %1774 = vmatpush1.msra.mxu0 0.0
        %1775 = vmatprep.subr.mxu0 0.0
        %1776 = vmatpush1.msra.mxu0 0.0
        %1777 = vmatprep.subr.mxu0 0.0
        %1778 = vmatpush1.msra.mxu0 0.0
        %1779 = vmatprep.subr.mxu0 0.0
        %1780 = vmatpush1.msra.mxu0 0.0
        %1781 = vmatprep.subr.mxu0 0.0
        %1782 = vmatpush1.msra.mxu0 0.0
        %1783 = vmatprep.subr.mxu0 0.0
        %1784 = vmatpush1.msra.mxu0 0.0
        %1785 = vmatprep.subr.mxu0 0.0
        %1786 = vmatpush1.msra.mxu0 0.0
        %1787 = vmatprep.subr.mxu0 0.0
        %1788 = vmatpush1.msra.mxu0 0.0
        %1789 = vmatprep.subr.mxu0 0.0
        %1790 = vmatpush1.msra.mxu0 0.0
        %1791 = vmatprep.subr.mxu0 0.0
        %1792 = vmatpush1.msra.mxu0 0.0
        %1793 = vmatprep.subr.mxu0 0.0
        %1794 = vmatpush1.msra.mxu0 0.0
        %1795 = vmatprep.subr.mxu0 0.0
        %1796 = vmatpush1.msra.mxu0 0.0
        %1797 = vmatprep.subr.mxu0 0.0
        %1798 = vmatpush1.msra.mxu0 0.0
        %1799 = vmatprep.subr.mxu0 0.0
        %1800 = vmatpush1.msra.mxu0 0.0
        %1801 = vmatprep.subr.mxu0 0.0
        %1802 = vmatpush1.msra.mxu0 0.0
        %1803 = vmatprep.subr.mxu0 0.0
        %1804 = vmatpush1.msra.mxu0 0.0
        %1805 = vmatprep.subr.mxu0 0.0
        %1806 = vmatpush1.msra.mxu0 0.0
        %1807 = vmatprep.subr.mxu0 0.0
        %1808 = vmatpush1.msra.mxu0 0.0
        %1809 = vmatprep.subr.mxu0 0.0
        %1810 = vmatpush1.msra.mxu0 0.0
        %1811 = vmatprep.subr.mxu0 0.0
        %1812 = vmatpush1.msra.mxu0 0.0
        %1813 = vmatprep.subr.mxu0 0.0
        %1814 = vmatpush1.msra.mxu0 0.0
        %1815 = vmatprep.subr.mxu0 0.0
        %1816 = vmatpush1.msra.mxu0 0.0
        %1817 = vmatprep.subr.mxu0 0.0
        %1818 = vmatpush1.msra.mxu0 0.0
        %1819 = vmatprep.subr.mxu0 0.0
        %1820 = vmatpush1.msra.mxu0 0.0
        %1821 = vmatprep.subr.mxu0 0.0
        %1822 = vmatpush1.msra.mxu0 0.0
        %1823 = vmatprep.mubr.f32.mxu0 0.0
        %1824 = vmatmul.mubr.f32.gmra.mrb[0].mxu0 %v1597
        %v1825 = vpop.f32.mrb[0].mxu0
        %v1826 = vadd.f32 0.0, %v1825
        %v1827 = vpop.f32.mrb[0].mxu0
        %1828 = vmatprep.mubr.f32.mxu0 0.0
        %1829 = vmatmul.mubr.f32.gmra.mrb[0].mxu0 %v1599
        %v1830 = vpop.f32.mrb[0].mxu0
        %v1831 = vadd.f32 0.0, %v1830
        %v1832 = vpop.f32.mrb[0].mxu0
        %1833 = vdwg.mxu0
        %1834 = vmatprep.subr.mxu0 0.0
        %1835 = vmatpush1.msra.mxu0 %v858
        %1836 = vmatprep.subr.mxu0 0.0
        %1837 = vmatpush1.msra.mxu0 %v863
        %1838 = vmatprep.subr.mxu0 0.0
        %1839 = vmatpush1.msra.mxu0 %v868
        %1840 = vmatprep.subr.mxu0 0.0
        %1841 = vmatpush1.msra.mxu0 %v873
        %1842 = vmatprep.subr.mxu0 0.0
        %1843 = vmatpush1.msra.mxu0 0.0
        %1844 = vmatprep.subr.mxu0 0.0
        %1845 = vmatpush1.msra.mxu0 0.0
        %1846 = vmatprep.subr.mxu0 0.0
        %1847 = vmatpush1.msra.mxu0 0.0
        %1848 = vmatprep.subr.mxu0 0.0
        %1849 = vmatpush1.msra.mxu0 0.0
        %1850 = vmatprep.subr.mxu0 0.0
        %1851 = vmatpush1.msra.mxu0 0.0
        %1852 = vmatprep.subr.mxu0 0.0
        %1853 = vmatpush1.msra.mxu0 0.0
        %1854 = vmatprep.subr.mxu0 0.0
        %1855 = vmatpush1.msra.mxu0 0.0
        %1856 = vmatprep.subr.mxu0 0.0
        %1857 = vmatpush1.msra.mxu0 0.0
        %1858 = vmatprep.subr.mxu0 0.0
        %1859 = vmatpush1.msra.mxu0 0.0
        %1860 = vmatprep.subr.mxu0 0.0
        %1861 = vmatpush1.msra.mxu0 0.0
        %1862 = vmatprep.subr.mxu0 0.0
        %1863 = vmatpush1.msra.mxu0 0.0
        %1864 = vmatprep.subr.mxu0 0.0
        %1865 = vmatpush1.msra.mxu0 0.0
        %1866 = vmatprep.subr.mxu0 0.0
        %1867 = vmatpush1.msra.mxu0 0.0
        %1868 = vmatprep.subr.mxu0 0.0
        %1869 = vmatpush1.msra.mxu0 0.0
        %1870 = vmatprep.subr.mxu0 0.0
        %1871 = vmatpush1.msra.mxu0 0.0
        %1872 = vmatprep.subr.mxu0 0.0
        %1873 = vmatpush1.msra.mxu0 0.0
        %1874 = vmatprep.subr.mxu0 0.0
        %1875 = vmatpush1.msra.mxu0 0.0
        %1876 = vmatprep.subr.mxu0 0.0
        %1877 = vmatpush1.msra.mxu0 0.0
        %1878 = vmatprep.subr.mxu0 0.0
        %1879 = vmatpush1.msra.mxu0 0.0
        %1880 = vmatprep.subr.mxu0 0.0
        %1881 = vmatpush1.msra.mxu0 0.0
        %1882 = vmatprep.subr.mxu0 0.0
        %1883 = vmatpush1.msra.mxu0 0.0
        %1884 = vmatprep.subr.mxu0 0.0
        %1885 = vmatpush1.msra.mxu0 0.0
        %1886 = vmatprep.subr.mxu0 0.0
        %1887 = vmatpush1.msra.mxu0 0.0
        %1888 = vmatprep.subr.mxu0 0.0
        %1889 = vmatpush1.msra.mxu0 0.0
        %1890 = vmatprep.subr.mxu0 0.0
        %1891 = vmatpush1.msra.mxu0 0.0
        %1892 = vmatprep.subr.mxu0 0.0
        %1893 = vmatpush1.msra.mxu0 0.0
        %1894 = vmatprep.subr.mxu0 0.0
        %1895 = vmatpush1.msra.mxu0 0.0
        %1896 = vmatprep.subr.mxu0 0.0
        %1897 = vmatpush1.msra.mxu0 0.0
        %1898 = vmatprep.mubr.f32.mxu0 0.0
        %1899 = vmatmul.mubr.f32.gmra.mrb[0].mxu0 %v1680
        %v1900 = vpop.f32.mrb[0].mxu0
        %v1901 = vadd.f32 0.0, %v1900
        %v1902 = vpop.f32.mrb[0].mxu0
        %1903 = vmatprep.mubr.f32.mxu0 0.0
        %1904 = vmatmul.mubr.f32.gmra.mrb[0].mxu0 %v1682
        %v1905 = vpop.f32.mrb[0].mxu0
        %v1906 = vadd.f32 0.0, %v1905
        %v1907 = vpop.f32.mrb[0].mxu0
        %1908 = vdwg.mxu0
        %v1909 = vsub.f32 %v1826, %v1901
        %v1910 = vsub.f32 %v1831, %v1906
        %v1911 = vmul.f32 %v1751, %v1751
        %v1912 = vmul.f32 %v1756, %v1756
        %v1913 = vmul.f32 %v1909, %v1909
        %v1914 = vmul.f32 %v1910, %v1910
        %v1915 = vadd.f32 %v1911, %v1913
        %v1916 = vadd.f32 %v1912, %v1914
        %v1917 = vrsqrt.pop %v1915
        %v1918 = vmul.f32 %v1915, %v1917
        %vm1919 = vcmp.eq.f32.partialorder %v1915, inf
        %v1920 = vsel %vm1919, %v1915, %v1918
        %vm1921 = vcmp.eq.f32.partialorder %v1915, 0.0
        %v1922 = vand.u32 %v1915, 2147483648
        %v1923 = vsel %vm1921, %v1922, %v1920
        %v1924 = vrsqrt.pop %v1916
        %v1925 = vmul.f32 %v1916, %v1924
        %vm1926 = vcmp.eq.f32.partialorder %v1916, inf
        %v1927 = vsel %vm1926, %v1916, %v1925
        %vm1928 = vcmp.eq.f32.partialorder %v1916, 0.0
        %v1929 = vand.u32 %v1916, 2147483648
        %v1930 = vsel %vm1928, %v1929, %v1927
        %v1931 = vsel %vm1401, %v1923, -inf
        %1932 = vmax.xlane.f32.xlu0 %v1931
        %v1933 = vpop.xlane.xlu0 %1932
        %v1934 = vsel %vm1405, %v1930, -inf
        %1935 = vmax.xlane.f32.xlu0 %v1934
        %v1936 = vpop.xlane.xlu0 %1935
        %v1937 = vsub.f32 %v1923, %v1933
        %v1938 = vsub.f32 %v1930, %v1936
        %v1939 = vmul.f32 %v1937, 1.442695
        %v1940 = vpow.pop %v1939
        %v1941 = vmul.f32 %v1938, 1.442695
        %v1942 = vpow.pop %v1941
        %v1943 = vsel %vm1401, %v1940, 0.0
        %1944 = vadd.xlane.f32.xlu0 %v1943
        %v1945 = vpop.xlane.xlu0 %1944
        %v1946 = vsel %vm1405, %v1942, 0.0
        %1947 = vadd.xlane.f32.xlu0 %v1946
        %v1948 = vpop.xlane.xlu0 %1947
        %v1949 = vrcp.pop %v1945
        %v1950 = vmul.f32 %v1940, %v1949
        %v1951 = vrcp.pop %v1948
        %v1952 = vmul.f32 %v1942, %v1951
        %1954 = vrot.lane.b32.xlu0 %v983, 96
        %v1955 = vpop.permute.xlu0 %1954
        %1956 = vrot.lane.b32.xlu0 %v988, 96
        %v1957 = vpop.permute.xlu0 %1956
        %v1960 = vsel %vm1401, %v1950, 0
        %v1963 = vsel %vm1401, %v1952, 0
        %v1965 = vsel %vm1431, %v1957, 0
        %1967 = vmatprep.subr.mxu0 0.0
        %1968 = vmatpush1.msra.mxu0 %v1955
        %1969 = vmatprep.subr.mxu0 0.0
        %1970 = vmatpush1.msra.mxu0 %v1965
        %1971 = vmatprep.subr.mxu0 0.0
        %1972 = vmatpush1.msra.mxu0 0.0
        %1973 = vmatprep.subr.mxu0 0.0
        %1974 = vmatpush1.msra.mxu0 0.0
        %1975 = vmatprep.subr.mxu0 0.0
        %1976 = vmatpush1.msra.mxu0 0.0
        %1977 = vmatprep.subr.mxu0 0.0
        %1978 = vmatpush1.msra.mxu0 0.0
        %1979 = vmatprep.subr.mxu0 0.0
        %1980 = vmatpush1.msra.mxu0 0.0
        %1981 = vmatprep.subr.mxu0 0.0
        %1982 = vmatpush1.msra.mxu0 0.0
        %1983 = vmatprep.subr.mxu0 0.0
        %1984 = vmatpush1.msra.mxu0 0.0
        %1985 = vmatprep.subr.mxu0 0.0
        %1986 = vmatpush1.msra.mxu0 0.0
        %1987 = vmatprep.subr.mxu0 0.0
        %1988 = vmatpush1.msra.mxu0 0.0
        %1989 = vmatprep.subr.mxu0 0.0
        %1990 = vmatpush1.msra.mxu0 0.0
        %1991 = vmatprep.subr.mxu0 0.0
        %1992 = vmatpush1.msra.mxu0 0.0
        %1993 = vmatprep.subr.mxu0 0.0
        %1994 = vmatpush1.msra.mxu0 0.0
        %1995 = vmatprep.subr.mxu0 0.0
        %1996 = vmatpush1.msra.mxu0 0.0
        %1997 = vmatprep.subr.mxu0 0.0
        %1998 = vmatpush1.msra.mxu0 0.0
        %1999 = vmatprep.subr.mxu0 0.0
        %2000 = vmatpush1.msra.mxu0 0.0
        %2001 = vmatprep.subr.mxu0 0.0
        %2002 = vmatpush1.msra.mxu0 0.0
        %2003 = vmatprep.subr.mxu0 0.0
        %2004 = vmatpush1.msra.mxu0 0.0
        %2005 = vmatprep.subr.mxu0 0.0
        %2006 = vmatpush1.msra.mxu0 0.0
        %2007 = vmatprep.subr.mxu0 0.0
        %2008 = vmatpush1.msra.mxu0 0.0
        %2009 = vmatprep.subr.mxu0 0.0
        %2010 = vmatpush1.msra.mxu0 0.0
        %2011 = vmatprep.subr.mxu0 0.0
        %2012 = vmatpush1.msra.mxu0 0.0
        %2013 = vmatprep.subr.mxu0 0.0
        %2014 = vmatpush1.msra.mxu0 0.0
        %2015 = vmatprep.subr.mxu0 0.0
        %2016 = vmatpush1.msra.mxu0 0.0
        %2017 = vmatprep.subr.mxu0 0.0
        %2018 = vmatpush1.msra.mxu0 0.0
        %2019 = vmatprep.subr.mxu0 0.0
        %2020 = vmatpush1.msra.mxu0 0.0
        %2021 = vmatprep.subr.mxu0 0.0
        %2022 = vmatpush1.msra.mxu0 0.0
        %2023 = vmatprep.subr.mxu0 0.0
        %2024 = vmatpush1.msra.mxu0 0.0
        %2025 = vmatprep.subr.mxu0 0.0
        %2026 = vmatpush1.msra.mxu0 0.0
        %2027 = vmatprep.subr.mxu0 0.0
        %2028 = vmatpush1.msra.mxu0 0.0
        %2029 = vmatprep.subr.mxu0 0.0
        %2030 = vmatpush1.msra.mxu0 0.0
        %2031 = vmatprep.mubr.f32.mxu0 0.0
        %2032 = vmatmul.mubr.f32.gmra.mrb[0].mxu0 %v1960
        %v2033 = vpop.f32.mrb[0].mxu0
        %v2034 = vadd.f32 0.0, %v2033
        %v2035 = vpop.f32.mrb[0].mxu0
        %2036 = vmatprep.mubr.f32.mxu0 0.0
        %2037 = vmatmul.mubr.f32.gmra.mrb[0].mxu0 %v1963
        %v2038 = vpop.f32.mrb[0].mxu0
        %v2039 = vadd.f32 0.0, %v2038
        %v2040 = vpop.f32.mrb[0].mxu0
        %2041 = vdwg.mxu0
        %2044 = vrot.lane.b32.xlu0 %v2034, 32
        %v2045 = vpop.permute.xlu0 %2044
        %2046 = vrot.lane.b32.xlu0 %v2039, 32
        %v2047 = vpop.permute.xlu0 %2046
        %vm2050 = vcmask 523520
        %2051 = vst.msk [vmem:[#allocation2] sm:$0xff] %vm2050, %v2045
        %vm2052 = vcmask 516352
        %2053 = vst.msk [vmem:[#allocation2 + $0x8] sm:$0x1] %vm2052, %v2047
        %2055 = vrot.lane.b32.xlu0 %v1058, 96
        %v2056 = vpop.permute.xlu0 %2055
        %2057 = vrot.lane.b32.xlu0 %v1063, 96
        %v2058 = vpop.permute.xlu0 %2057
        %v2060 = vsel %vm1431, %v2058, 0
        %2062 = vmatprep.subr.mxu0 0.0
        %2063 = vmatpush1.msra.mxu0 %v2056
        %2064 = vmatprep.subr.mxu0 0.0
        %2065 = vmatpush1.msra.mxu0 %v2060
        %2066 = vmatprep.subr.mxu0 0.0
        %2067 = vmatpush1.msra.mxu0 0.0
        %2068 = vmatprep.subr.mxu0 0.0
        %2069 = vmatpush1.msra.mxu0 0.0
        %2070 = vmatprep.subr.mxu0 0.0
        %2071 = vmatpush1.msra.mxu0 0.0
        %2072 = vmatprep.subr.mxu0 0.0
        %2073 = vmatpush1.msra.mxu0 0.0
        %2074 = vmatprep.subr.mxu0 0.0
        %2075 = vmatpush1.msra.mxu0 0.0
        %2076 = vmatprep.subr.mxu0 0.0
        %2077 = vmatpush1.msra.mxu0 0.0
        %2078 = vmatprep.subr.mxu0 0.0
        %2079 = vmatpush1.msra.mxu0 0.0
        %2080 = vmatprep.subr.mxu0 0.0
        %2081 = vmatpush1.msra.mxu0 0.0
        %2082 = vmatprep.subr.mxu0 0.0
        %2083 = vmatpush1.msra.mxu0 0.0
        %2084 = vmatprep.subr.mxu0 0.0
        %2085 = vmatpush1.msra.mxu0 0.0
        %2086 = vmatprep.subr.mxu0 0.0
        %2087 = vmatpush1.msra.mxu0 0.0
        %2088 = vmatprep.subr.mxu0 0.0
        %2089 = vmatpush1.msra.mxu0 0.0
        %2090 = vmatprep.subr.mxu0 0.0
        %2091 = vmatpush1.msra.mxu0 0.0
        %2092 = vmatprep.subr.mxu0 0.0
        %2093 = vmatpush1.msra.mxu0 0.0
        %2094 = vmatprep.subr.mxu0 0.0
        %2095 = vmatpush1.msra.mxu0 0.0
        %2096 = vmatprep.subr.mxu0 0.0
        %2097 = vmatpush1.msra.mxu0 0.0
        %2098 = vmatprep.subr.mxu0 0.0
        %2099 = vmatpush1.msra.mxu0 0.0
        %2100 = vmatprep.subr.mxu0 0.0
        %2101 = vmatpush1.msra.mxu0 0.0
        %2102 = vmatprep.subr.mxu0 0.0
        %2103 = vmatpush1.msra.mxu0 0.0
        %2104 = vmatprep.subr.mxu0 0.0
        %2105 = vmatpush1.msra.mxu0 0.0
        %2106 = vmatprep.subr.mxu0 0.0
        %2107 = vmatpush1.msra.mxu0 0.0
        %2108 = vmatprep.subr.mxu0 0.0
        %2109 = vmatpush1.msra.mxu0 0.0
        %2110 = vmatprep.subr.mxu0 0.0
        %2111 = vmatpush1.msra.mxu0 0.0
        %2112 = vmatprep.subr.mxu0 0.0
        %2113 = vmatpush1.msra.mxu0 0.0
        %2114 = vmatprep.subr.mxu0 0.0
        %2115 = vmatpush1.msra.mxu0 0.0
        %2116 = vmatprep.subr.mxu0 0.0
        %2117 = vmatpush1.msra.mxu0 0.0
        %2118 = vmatprep.subr.mxu0 0.0
        %2119 = vmatpush1.msra.mxu0 0.0
        %2120 = vmatprep.subr.mxu0 0.0
        %2121 = vmatpush1.msra.mxu0 0.0
        %2122 = vmatprep.subr.mxu0 0.0
        %2123 = vmatpush1.msra.mxu0 0.0
        %2124 = vmatprep.subr.mxu0 0.0
        %2125 = vmatpush1.msra.mxu0 0.0
        %2126 = vmatprep.mubr.f32.mxu0 0.0
        %2127 = vmatmul.mubr.f32.gmra.mrb[0].mxu0 %v1960
        %v2128 = vpop.f32.mrb[0].mxu0
        %v2129 = vadd.f32 0.0, %v2128
        %v2130 = vpop.f32.mrb[0].mxu0
        %2131 = vmatprep.mubr.f32.mxu0 0.0
        %2132 = vmatmul.mubr.f32.gmra.mrb[0].mxu0 %v1963
        %v2133 = vpop.f32.mrb[0].mxu0
        %v2134 = vadd.f32 0.0, %v2133
        %v2135 = vpop.f32.mrb[0].mxu0
        %2136 = vdwg.mxu0
        %2139 = vrot.lane.b32.xlu0 %v2129, 32
        %v2140 = vpop.permute.xlu0 %2139
        %2141 = vrot.lane.b32.xlu0 %v2134, 32
        %v2142 = vpop.permute.xlu0 %2141
        %2145 = vst.msk [vmem:[#allocation3] sm:$0xff] %vm2050, %v2140
        %2146 = vst.msk [vmem:[#allocation3 + $0x8] sm:$0x1] %vm2052, %v2142
        %2147 = vrot.lane.b32.xlu0 %v558, 64
        %v2148 = vpop.permute.xlu0 %2147
        %2149 = vrot.lane.b32.xlu0 %v563, 64
        %v2150 = vpop.permute.xlu0 %2149
        %v2151 = vsel %vm1066, %v2148, 0
        %v2153 = vsel %vm1066, %v2150, 0
        %2155 = vmatprep.subr.mxu0 0.0
        %2156 = vmatpush1.msra.mxu0 %v878
        %2157 = vmatprep.subr.mxu0 0.0
        %2158 = vmatpush1.msra.mxu0 %v883
        %2159 = vmatprep.subr.mxu0 0.0
        %2160 = vmatpush1.msra.mxu0 %v888
        %2161 = vmatprep.subr.mxu0 0.0
        %2162 = vmatpush1.msra.mxu0 %v893
        %2163 = vmatprep.subr.mxu0 0.0
        %2164 = vmatpush1.msra.mxu0 0.0
        %2165 = vmatprep.subr.mxu0 0.0
        %2166 = vmatpush1.msra.mxu0 0.0
        %2167 = vmatprep.subr.mxu0 0.0
        %2168 = vmatpush1.msra.mxu0 0.0
        %2169 = vmatprep.subr.mxu0 0.0
        %2170 = vmatpush1.msra.mxu0 0.0
        %2171 = vmatprep.subr.mxu0 0.0
        %2172 = vmatpush1.msra.mxu0 0.0
        %2173 = vmatprep.subr.mxu0 0.0
        %2174 = vmatpush1.msra.mxu0 0.0
        %2175 = vmatprep.subr.mxu0 0.0
        %2176 = vmatpush1.msra.mxu0 0.0
        %2177 = vmatprep.subr.mxu0 0.0
        %2178 = vmatpush1.msra.mxu0 0.0
        %2179 = vmatprep.subr.mxu0 0.0
        %2180 = vmatpush1.msra.mxu0 0.0
        %2181 = vmatprep.subr.mxu0 0.0
        %2182 = vmatpush1.msra.mxu0 0.0
        %2183 = vmatprep.subr.mxu0 0.0
        %2184 = vmatpush1.msra.mxu0 0.0
        %2185 = vmatprep.subr.mxu0 0.0
        %2186 = vmatpush1.msra.mxu0 0.0
        %2187 = vmatprep.subr.mxu0 0.0
        %2188 = vmatpush1.msra.mxu0 0.0
        %2189 = vmatprep.subr.mxu0 0.0
        %2190 = vmatpush1.msra.mxu0 0.0
        %2191 = vmatprep.subr.mxu0 0.0
        %2192 = vmatpush1.msra.mxu0 0.0
        %2193 = vmatprep.subr.mxu0 0.0
        %2194 = vmatpush1.msra.mxu0 0.0
        %2195 = vmatprep.subr.mxu0 0.0
        %2196 = vmatpush1.msra.mxu0 0.0
        %2197 = vmatprep.subr.mxu0 0.0
        %2198 = vmatpush1.msra.mxu0 0.0
        %2199 = vmatprep.subr.mxu0 0.0
        %2200 = vmatpush1.msra.mxu0 0.0
        %2201 = vmatprep.subr.mxu0 0.0
        %2202 = vmatpush1.msra.mxu0 0.0
        %2203 = vmatprep.subr.mxu0 0.0
        %2204 = vmatpush1.msra.mxu0 0.0
        %2205 = vmatprep.subr.mxu0 0.0
        %2206 = vmatpush1.msra.mxu0 0.0
        %2207 = vmatprep.subr.mxu0 0.0
        %2208 = vmatpush1.msra.mxu0 0.0
        %2209 = vmatprep.subr.mxu0 0.0
        %2210 = vmatpush1.msra.mxu0 0.0
        %2211 = vmatprep.subr.mxu0 0.0
        %2212 = vmatpush1.msra.mxu0 0.0
        %2213 = vmatprep.subr.mxu0 0.0
        %2214 = vmatpush1.msra.mxu0 0.0
        %2215 = vmatprep.subr.mxu0 0.0
        %2216 = vmatpush1.msra.mxu0 0.0
        %2217 = vmatprep.subr.mxu0 0.0
        %2218 = vmatpush1.msra.mxu0 0.0
        %2219 = vmatprep.mubr.f32.mxu0 0.0
        %2220 = vmatmul.mubr.f32.gmra.mrb[0].mxu0 %v2151
        %v2221 = vpop.f32.mrb[0].mxu0
        %v2222 = vadd.f32 0.0, %v2221
        %v2223 = vpop.f32.mrb[0].mxu0
        %2224 = vmatprep.mubr.f32.mxu0 0.0
        %2225 = vmatmul.mubr.f32.gmra.mrb[0].mxu0 %v2153
        %v2226 = vpop.f32.mrb[0].mxu0
        %v2227 = vadd.f32 0.0, %v2226
        %v2228 = vpop.f32.mrb[0].mxu0
        %2229 = vdwg.mxu0
        %2230 = vrot.lane.b32.xlu0 %v477, 64
        %v2231 = vpop.permute.xlu0 %2230
        %2232 = vrot.lane.b32.xlu0 %v482, 64
        %v2233 = vpop.permute.xlu0 %2232
        %v2234 = vsel %vm1066, %v2231, 0
        %v2236 = vsel %vm1066, %v2233, 0
        %2238 = vmatprep.subr.mxu0 0.0
        %2239 = vmatpush1.msra.mxu0 %v727
        %2240 = vmatprep.subr.mxu0 0.0
        %2241 = vmatpush1.msra.mxu0 %v732
        %2242 = vmatprep.subr.mxu0 0.0
        %2243 = vmatpush1.msra.mxu0 %v737
        %2244 = vmatprep.subr.mxu0 0.0
        %2245 = vmatpush1.msra.mxu0 %v742
        %2246 = vmatprep.subr.mxu0 0.0
        %2247 = vmatpush1.msra.mxu0 0.0
        %2248 = vmatprep.subr.mxu0 0.0
        %2249 = vmatpush1.msra.mxu0 0.0
        %2250 = vmatprep.subr.mxu0 0.0
        %2251 = vmatpush1.msra.mxu0 0.0
        %2252 = vmatprep.subr.mxu0 0.0
        %2253 = vmatpush1.msra.mxu0 0.0
        %2254 = vmatprep.subr.mxu0 0.0
        %2255 = vmatpush1.msra.mxu0 0.0
        %2256 = vmatprep.subr.mxu0 0.0
        %2257 = vmatpush1.msra.mxu0 0.0
        %2258 = vmatprep.subr.mxu0 0.0
        %2259 = vmatpush1.msra.mxu0 0.0
        %2260 = vmatprep.subr.mxu0 0.0
        %2261 = vmatpush1.msra.mxu0 0.0
        %2262 = vmatprep.subr.mxu0 0.0
        %2263 = vmatpush1.msra.mxu0 0.0
        %2264 = vmatprep.subr.mxu0 0.0
        %2265 = vmatpush1.msra.mxu0 0.0
        %2266 = vmatprep.subr.mxu0 0.0
        %2267 = vmatpush1.msra.mxu0 0.0
        %2268 = vmatprep.subr.mxu0 0.0
        %2269 = vmatpush1.msra.mxu0 0.0
        %2270 = vmatprep.subr.mxu0 0.0
        %2271 = vmatpush1.msra.mxu0 0.0
        %2272 = vmatprep.subr.mxu0 0.0
        %2273 = vmatpush1.msra.mxu0 0.0
        %2274 = vmatprep.subr.mxu0 0.0
        %2275 = vmatpush1.msra.mxu0 0.0
        %2276 = vmatprep.subr.mxu0 0.0
        %2277 = vmatpush1.msra.mxu0 0.0
        %2278 = vmatprep.subr.mxu0 0.0
        %2279 = vmatpush1.msra.mxu0 0.0
        %2280 = vmatprep.subr.mxu0 0.0
        %2281 = vmatpush1.msra.mxu0 0.0
        %2282 = vmatprep.subr.mxu0 0.0
        %2283 = vmatpush1.msra.mxu0 0.0
        %2284 = vmatprep.subr.mxu0 0.0
        %2285 = vmatpush1.msra.mxu0 0.0
        %2286 = vmatprep.subr.mxu0 0.0
        %2287 = vmatpush1.msra.mxu0 0.0
        %2288 = vmatprep.subr.mxu0 0.0
        %2289 = vmatpush1.msra.mxu0 0.0
        %2290 = vmatprep.subr.mxu0 0.0
        %2291 = vmatpush1.msra.mxu0 0.0
        %2292 = vmatprep.subr.mxu0 0.0
        %2293 = vmatpush1.msra.mxu0 0.0
        %2294 = vmatprep.subr.mxu0 0.0
        %2295 = vmatpush1.msra.mxu0 0.0
        %2296 = vmatprep.subr.mxu0 0.0
        %2297 = vmatpush1.msra.mxu0 0.0
        %2298 = vmatprep.subr.mxu0 0.0
        %2299 = vmatpush1.msra.mxu0 0.0
        %2300 = vmatprep.subr.mxu0 0.0
        %2301 = vmatpush1.msra.mxu0 0.0
        %2302 = vmatprep.mubr.f32.mxu0 0.0
        %2303 = vmatmul.mubr.f32.gmra.mrb[0].mxu0 %v2234
        %v2304 = vpop.f32.mrb[0].mxu0
        %v2305 = vadd.f32 %v2222, %v2304
        %v2306 = vpop.f32.mrb[0].mxu0
        %2307 = vmatprep.mubr.f32.mxu0 0.0
        %2308 = vmatmul.mubr.f32.gmra.mrb[0].mxu0 %v2236
        %v2309 = vpop.f32.mrb[0].mxu0
        %v2310 = vadd.f32 %v2227, %v2309
        %v2311 = vpop.f32.mrb[0].mxu0
        %2312 = vdwg.mxu0
        %2313 = vmatprep.subr.mxu0 0.0
        %2314 = vmatpush1.msra.mxu0 %v727
        %2315 = vmatprep.subr.mxu0 0.0
        %2316 = vmatpush1.msra.mxu0 %v732
        %2317 = vmatprep.subr.mxu0 0.0
        %2318 = vmatpush1.msra.mxu0 %v737
        %2319 = vmatprep.subr.mxu0 0.0
        %2320 = vmatpush1.msra.mxu0 %v742
        %2321 = vmatprep.subr.mxu0 0.0
        %2322 = vmatpush1.msra.mxu0 0.0
        %2323 = vmatprep.subr.mxu0 0.0
        %2324 = vmatpush1.msra.mxu0 0.0
        %2325 = vmatprep.subr.mxu0 0.0
        %2326 = vmatpush1.msra.mxu0 0.0
        %2327 = vmatprep.subr.mxu0 0.0
        %2328 = vmatpush1.msra.mxu0 0.0
        %2329 = vmatprep.subr.mxu0 0.0
        %2330 = vmatpush1.msra.mxu0 0.0
        %2331 = vmatprep.subr.mxu0 0.0
        %2332 = vmatpush1.msra.mxu0 0.0
        %2333 = vmatprep.subr.mxu0 0.0
        %2334 = vmatpush1.msra.mxu0 0.0
        %2335 = vmatprep.subr.mxu0 0.0
        %2336 = vmatpush1.msra.mxu0 0.0
        %2337 = vmatprep.subr.mxu0 0.0
        %2338 = vmatpush1.msra.mxu0 0.0
        %2339 = vmatprep.subr.mxu0 0.0
        %2340 = vmatpush1.msra.mxu0 0.0
        %2341 = vmatprep.subr.mxu0 0.0
        %2342 = vmatpush1.msra.mxu0 0.0
        %2343 = vmatprep.subr.mxu0 0.0
        %2344 = vmatpush1.msra.mxu0 0.0
        %2345 = vmatprep.subr.mxu0 0.0
        %2346 = vmatpush1.msra.mxu0 0.0
        %2347 = vmatprep.subr.mxu0 0.0
        %2348 = vmatpush1.msra.mxu0 0.0
        %2349 = vmatprep.subr.mxu0 0.0
        %2350 = vmatpush1.msra.mxu0 0.0
        %2351 = vmatprep.subr.mxu0 0.0
        %2352 = vmatpush1.msra.mxu0 0.0
        %2353 = vmatprep.subr.mxu0 0.0
        %2354 = vmatpush1.msra.mxu0 0.0
        %2355 = vmatprep.subr.mxu0 0.0
        %2356 = vmatpush1.msra.mxu0 0.0
        %2357 = vmatprep.subr.mxu0 0.0
        %2358 = vmatpush1.msra.mxu0 0.0
        %2359 = vmatprep.subr.mxu0 0.0
        %2360 = vmatpush1.msra.mxu0 0.0
        %2361 = vmatprep.subr.mxu0 0.0
        %2362 = vmatpush1.msra.mxu0 0.0
        %2363 = vmatprep.subr.mxu0 0.0
        %2364 = vmatpush1.msra.mxu0 0.0
        %2365 = vmatprep.subr.mxu0 0.0
        %2366 = vmatpush1.msra.mxu0 0.0
        %2367 = vmatprep.subr.mxu0 0.0
        %2368 = vmatpush1.msra.mxu0 0.0
        %2369 = vmatprep.subr.mxu0 0.0
        %2370 = vmatpush1.msra.mxu0 0.0
        %2371 = vmatprep.subr.mxu0 0.0
        %2372 = vmatpush1.msra.mxu0 0.0
        %2373 = vmatprep.subr.mxu0 0.0
        %2374 = vmatpush1.msra.mxu0 0.0
        %2375 = vmatprep.subr.mxu0 0.0
        %2376 = vmatpush1.msra.mxu0 0.0
        %2377 = vmatprep.mubr.f32.mxu0 0.0
        %2378 = vmatmul.mubr.f32.gmra.mrb[0].mxu0 %v2151
        %v2379 = vpop.f32.mrb[0].mxu0
        %v2380 = vadd.f32 0.0, %v2379
        %v2381 = vpop.f32.mrb[0].mxu0
        %2382 = vmatprep.mubr.f32.mxu0 0.0
        %2383 = vmatmul.mubr.f32.gmra.mrb[0].mxu0 %v2153
        %v2384 = vpop.f32.mrb[0].mxu0
        %v2385 = vadd.f32 0.0, %v2384
        %v2386 = vpop.f32.mrb[0].mxu0
        %2387 = vdwg.mxu0
        %2388 = vmatprep.subr.mxu0 0.0
        %2389 = vmatpush1.msra.mxu0 %v878
        %2390 = vmatprep.subr.mxu0 0.0
        %2391 = vmatpush1.msra.mxu0 %v883
        %2392 = vmatprep.subr.mxu0 0.0
        %2393 = vmatpush1.msra.mxu0 %v888
        %2394 = vmatprep.subr.mxu0 0.0
        %2395 = vmatpush1.msra.mxu0 %v893
        %2396 = vmatprep.subr.mxu0 0.0
        %2397 = vmatpush1.msra.mxu0 0.0
        %2398 = vmatprep.subr.mxu0 0.0
        %2399 = vmatpush1.msra.mxu0 0.0
        %2400 = vmatprep.subr.mxu0 0.0
        %2401 = vmatpush1.msra.mxu0 0.0
        %2402 = vmatprep.subr.mxu0 0.0
        %2403 = vmatpush1.msra.mxu0 0.0
        %2404 = vmatprep.subr.mxu0 0.0
        %2405 = vmatpush1.msra.mxu0 0.0
        %2406 = vmatprep.subr.mxu0 0.0
        %2407 = vmatpush1.msra.mxu0 0.0
        %2408 = vmatprep.subr.mxu0 0.0
        %2409 = vmatpush1.msra.mxu0 0.0
        %2410 = vmatprep.subr.mxu0 0.0
        %2411 = vmatpush1.msra.mxu0 0.0
        %2412 = vmatprep.subr.mxu0 0.0
        %2413 = vmatpush1.msra.mxu0 0.0
        %2414 = vmatprep.subr.mxu0 0.0
        %2415 = vmatpush1.msra.mxu0 0.0
        %2416 = vmatprep.subr.mxu0 0.0
        %2417 = vmatpush1.msra.mxu0 0.0
        %2418 = vmatprep.subr.mxu0 0.0
        %2419 = vmatpush1.msra.mxu0 0.0
        %2420 = vmatprep.subr.mxu0 0.0
        %2421 = vmatpush1.msra.mxu0 0.0
        %2422 = vmatprep.subr.mxu0 0.0
        %2423 = vmatpush1.msra.mxu0 0.0
        %2424 = vmatprep.subr.mxu0 0.0
        %2425 = vmatpush1.msra.mxu0 0.0
        %2426 = vmatprep.subr.mxu0 0.0
        %2427 = vmatpush1.msra.mxu0 0.0
        %2428 = vmatprep.subr.mxu0 0.0
        %2429 = vmatpush1.msra.mxu0 0.0
        %2430 = vmatprep.subr.mxu0 0.0
        %2431 = vmatpush1.msra.mxu0 0.0
        %2432 = vmatprep.subr.mxu0 0.0
        %2433 = vmatpush1.msra.mxu0 0.0
        %2434 = vmatprep.subr.mxu0 0.0
        %2435 = vmatpush1.msra.mxu0 0.0
        %2436 = vmatprep.subr.mxu0 0.0
        %2437 = vmatpush1.msra.mxu0 0.0
        %2438 = vmatprep.subr.mxu0 0.0
        %2439 = vmatpush1.msra.mxu0 0.0
        %2440 = vmatprep.subr.mxu0 0.0
        %2441 = vmatpush1.msra.mxu0 0.0
        %2442 = vmatprep.subr.mxu0 0.0
        %2443 = vmatpush1.msra.mxu0 0.0
        %2444 = vmatprep.subr.mxu0 0.0
        %2445 = vmatpush1.msra.mxu0 0.0
        %2446 = vmatprep.subr.mxu0 0.0
        %2447 = vmatpush1.msra.mxu0 0.0
        %2448 = vmatprep.subr.mxu0 0.0
        %2449 = vmatpush1.msra.mxu0 0.0
        %2450 = vmatprep.subr.mxu0 0.0
        %2451 = vmatpush1.msra.mxu0 0.0
        %2452 = vmatprep.mubr.f32.mxu0 0.0
        %2453 = vmatmul.mubr.f32.gmra.mrb[0].mxu0 %v2234
        %v2454 = vpop.f32.mrb[0].mxu0
        %v2455 = vadd.f32 0.0, %v2454
        %v2456 = vpop.f32.mrb[0].mxu0
        %2457 = vmatprep.mubr.f32.mxu0 0.0
        %2458 = vmatmul.mubr.f32.gmra.mrb[0].mxu0 %v2236
        %v2459 = vpop.f32.mrb[0].mxu0
        %v2460 = vadd.f32 0.0, %v2459
        %v2461 = vpop.f32.mrb[0].mxu0
        %2462 = vdwg.mxu0
        %v2463 = vsub.f32 %v2380, %v2455
        %v2464 = vsub.f32 %v2385, %v2460
        %v2465 = vmul.f32 %v2305, %v2305
        %v2466 = vmul.f32 %v2310, %v2310
        %v2467 = vmul.f32 %v2463, %v2463
        %v2468 = vmul.f32 %v2464, %v2464
        %v2469 = vadd.f32 %v2465, %v2467
        %v2470 = vadd.f32 %v2466, %v2468
        %v2471 = vrsqrt.pop %v2469
        %v2472 = vmul.f32 %v2469, %v2471
        %vm2473 = vcmp.eq.f32.partialorder %v2469, inf
        %v2474 = vsel %vm2473, %v2469, %v2472
        %vm2475 = vcmp.eq.f32.partialorder %v2469, 0.0
        %v2476 = vand.u32 %v2469, 2147483648
        %v2477 = vsel %vm2475, %v2476, %v2474
        %v2478 = vrsqrt.pop %v2470
        %v2479 = vmul.f32 %v2470, %v2478
        %vm2480 = vcmp.eq.f32.partialorder %v2470, inf
        %v2481 = vsel %vm2480, %v2470, %v2479
        %vm2482 = vcmp.eq.f32.partialorder %v2470, 0.0
        %v2483 = vand.u32 %v2470, 2147483648
        %v2484 = vsel %vm2482, %v2483, %v2481
        %v2485 = vsel %vm1401, %v2477, -inf
        %2486 = vmax.xlane.f32.xlu0 %v2485
        %v2487 = vpop.xlane.xlu0 %2486
        %v2488 = vsel %vm1405, %v2484, -inf
        %2489 = vmax.xlane.f32.xlu0 %v2488
        %v2490 = vpop.xlane.xlu0 %2489
        %v2491 = vsub.f32 %v2477, %v2487
        %v2492 = vsub.f32 %v2484, %v2490
        %v2493 = vmul.f32 %v2491, 1.442695
        %v2494 = vpow.pop %v2493
        %v2495 = vmul.f32 %v2492, 1.442695
        %v2496 = vpow.pop %v2495
        %v2497 = vsel %vm1401, %v2494, 0.0
        %2498 = vadd.xlane.f32.xlu0 %v2497
        %v2499 = vpop.xlane.xlu0 %2498
        %v2500 = vsel %vm1405, %v2496, 0.0
        %2501 = vadd.xlane.f32.xlu0 %v2500
        %v2502 = vpop.xlane.xlu0 %2501
        %v2503 = vrcp.pop %v2499
        %v2504 = vmul.f32 %v2494, %v2503
        %v2505 = vrcp.pop %v2502
        %v2506 = vmul.f32 %v2496, %v2505
        %2507 = vrot.lane.b32.xlu0 %v983, 64
        %v2508 = vpop.permute.xlu0 %2507
        %2509 = vrot.lane.b32.xlu0 %v988, 64
        %v2510 = vpop.permute.xlu0 %2509
        %v2513 = vsel %vm1401, %v2504, 0
        %v2516 = vsel %vm1401, %v2506, 0
        %v2518 = vsel %vm1431, %v2510, 0
        %2520 = vmatprep.subr.mxu0 0.0
        %2521 = vmatpush1.msra.mxu0 %v2508
        %2522 = vmatprep.subr.mxu0 0.0
        %2523 = vmatpush1.msra.mxu0 %v2518
        %2524 = vmatprep.subr.mxu0 0.0
        %2525 = vmatpush1.msra.mxu0 0.0
        %2526 = vmatprep.subr.mxu0 0.0
        %2527 = vmatpush1.msra.mxu0 0.0
        %2528 = vmatprep.subr.mxu0 0.0
        %2529 = vmatpush1.msra.mxu0 0.0
        %2530 = vmatprep.subr.mxu0 0.0
        %2531 = vmatpush1.msra.mxu0 0.0
        %2532 = vmatprep.subr.mxu0 0.0
        %2533 = vmatpush1.msra.mxu0 0.0
        %2534 = vmatprep.subr.mxu0 0.0
        %2535 = vmatpush1.msra.mxu0 0.0
        %2536 = vmatprep.subr.mxu0 0.0
        %2537 = vmatpush1.msra.mxu0 0.0
        %2538 = vmatprep.subr.mxu0 0.0
        %2539 = vmatpush1.msra.mxu0 0.0
        %2540 = vmatprep.subr.mxu0 0.0
        %2541 = vmatpush1.msra.mxu0 0.0
        %2542 = vmatprep.subr.mxu0 0.0
        %2543 = vmatpush1.msra.mxu0 0.0
        %2544 = vmatprep.subr.mxu0 0.0
        %2545 = vmatpush1.msra.mxu0 0.0
        %2546 = vmatprep.subr.mxu0 0.0
        %2547 = vmatpush1.msra.mxu0 0.0
        %2548 = vmatprep.subr.mxu0 0.0
        %2549 = vmatpush1.msra.mxu0 0.0
        %2550 = vmatprep.subr.mxu0 0.0
        %2551 = vmatpush1.msra.mxu0 0.0
        %2552 = vmatprep.subr.mxu0 0.0
        %2553 = vmatpush1.msra.mxu0 0.0
        %2554 = vmatprep.subr.mxu0 0.0
        %2555 = vmatpush1.msra.mxu0 0.0
        %2556 = vmatprep.subr.mxu0 0.0
        %2557 = vmatpush1.msra.mxu0 0.0
        %2558 = vmatprep.subr.mxu0 0.0
        %2559 = vmatpush1.msra.mxu0 0.0
        %2560 = vmatprep.subr.mxu0 0.0
        %2561 = vmatpush1.msra.mxu0 0.0
        %2562 = vmatprep.subr.mxu0 0.0
        %2563 = vmatpush1.msra.mxu0 0.0
        %2564 = vmatprep.subr.mxu0 0.0
        %2565 = vmatpush1.msra.mxu0 0.0
        %2566 = vmatprep.subr.mxu0 0.0
        %2567 = vmatpush1.msra.mxu0 0.0
        %2568 = vmatprep.subr.mxu0 0.0
        %2569 = vmatpush1.msra.mxu0 0.0
        %2570 = vmatprep.subr.mxu0 0.0
        %2571 = vmatpush1.msra.mxu0 0.0
        %2572 = vmatprep.subr.mxu0 0.0
        %2573 = vmatpush1.msra.mxu0 0.0
        %2574 = vmatprep.subr.mxu0 0.0
        %2575 = vmatpush1.msra.mxu0 0.0
        %2576 = vmatprep.subr.mxu0 0.0
        %2577 = vmatpush1.msra.mxu0 0.0
        %2578 = vmatprep.subr.mxu0 0.0
        %2579 = vmatpush1.msra.mxu0 0.0
        %2580 = vmatprep.subr.mxu0 0.0
        %2581 = vmatpush1.msra.mxu0 0.0
        %2582 = vmatprep.subr.mxu0 0.0
        %2583 = vmatpush1.msra.mxu0 0.0
        %2584 = vmatprep.mubr.f32.mxu0 0.0
        %2585 = vmatmul.mubr.f32.gmra.mrb[0].mxu0 %v2513
        %v2586 = vpop.f32.mrb[0].mxu0
        %v2587 = vadd.f32 0.0, %v2586
        %v2588 = vpop.f32.mrb[0].mxu0
        %2589 = vmatprep.mubr.f32.mxu0 0.0
        %2590 = vmatmul.mubr.f32.gmra.mrb[0].mxu0 %v2516
        %v2591 = vpop.f32.mrb[0].mxu0
        %v2592 = vadd.f32 0.0, %v2591
        %v2593 = vpop.f32.mrb[0].mxu0
        %2594 = vdwg.mxu0
        %2597 = vrot.lane.b32.xlu0 %v2587, 64
        %v2598 = vpop.permute.xlu0 %2597
        %2599 = vrot.lane.b32.xlu0 %v2592, 64
        %v2600 = vpop.permute.xlu0 %2599
        %vm2603 = vcmask 785920
        %2604 = vst.msk [vmem:[#allocation2] sm:$0xff] %vm2603, %v2598
        %vm2605 = vcmask 778752
        %2606 = vst.msk [vmem:[#allocation2 + $0x8] sm:$0x1] %vm2605, %v2600
        %2607 = vrot.lane.b32.xlu0 %v1058, 64
        %v2608 = vpop.permute.xlu0 %2607
        %2609 = vrot.lane.b32.xlu0 %v1063, 64
        %v2610 = vpop.permute.xlu0 %2609
        %v2612 = vsel %vm1431, %v2610, 0
        %2614 = vmatprep.subr.mxu0 0.0
        %2615 = vmatpush1.msra.mxu0 %v2608
        %2616 = vmatprep.subr.mxu0 0.0
        %2617 = vmatpush1.msra.mxu0 %v2612
        %2618 = vmatprep.subr.mxu0 0.0
        %2619 = vmatpush1.msra.mxu0 0.0
        %2620 = vmatprep.subr.mxu0 0.0
        %2621 = vmatpush1.msra.mxu0 0.0
        %2622 = vmatprep.subr.mxu0 0.0
        %2623 = vmatpush1.msra.mxu0 0.0
        %2624 = vmatprep.subr.mxu0 0.0
        %2625 = vmatpush1.msra.mxu0 0.0
        %2626 = vmatprep.subr.mxu0 0.0
        %2627 = vmatpush1.msra.mxu0 0.0
        %2628 = vmatprep.subr.mxu0 0.0
        %2629 = vmatpush1.msra.mxu0 0.0
        %2630 = vmatprep.subr.mxu0 0.0
        %2631 = vmatpush1.msra.mxu0 0.0
        %2632 = vmatprep.subr.mxu0 0.0
        %2633 = vmatpush1.msra.mxu0 0.0
        %2634 = vmatprep.subr.mxu0 0.0
        %2635 = vmatpush1.msra.mxu0 0.0
        %2636 = vmatprep.subr.mxu0 0.0
        %2637 = vmatpush1.msra.mxu0 0.0
        %2638 = vmatprep.subr.mxu0 0.0
        %2639 = vmatpush1.msra.mxu0 0.0
        %2640 = vmatprep.subr.mxu0 0.0
        %2641 = vmatpush1.msra.mxu0 0.0
        %2642 = vmatprep.subr.mxu0 0.0
        %2643 = vmatpush1.msra.mxu0 0.0
        %2644 = vmatprep.subr.mxu0 0.0
        %2645 = vmatpush1.msra.mxu0 0.0
        %2646 = vmatprep.subr.mxu0 0.0
        %2647 = vmatpush1.msra.mxu0 0.0
        %2648 = vmatprep.subr.mxu0 0.0
        %2649 = vmatpush1.msra.mxu0 0.0
        %2650 = vmatprep.subr.mxu0 0.0
        %2651 = vmatpush1.msra.mxu0 0.0
        %2652 = vmatprep.subr.mxu0 0.0
        %2653 = vmatpush1.msra.mxu0 0.0
        %2654 = vmatprep.subr.mxu0 0.0
        %2655 = vmatpush1.msra.mxu0 0.0
        %2656 = vmatprep.subr.mxu0 0.0
        %2657 = vmatpush1.msra.mxu0 0.0
        %2658 = vmatprep.subr.mxu0 0.0
        %2659 = vmatpush1.msra.mxu0 0.0
        %2660 = vmatprep.subr.mxu0 0.0
        %2661 = vmatpush1.msra.mxu0 0.0
        %2662 = vmatprep.subr.mxu0 0.0
        %2663 = vmatpush1.msra.mxu0 0.0
        %2664 = vmatprep.subr.mxu0 0.0
        %2665 = vmatpush1.msra.mxu0 0.0
        %2666 = vmatprep.subr.mxu0 0.0
        %2667 = vmatpush1.msra.mxu0 0.0
        %2668 = vmatprep.subr.mxu0 0.0
        %2669 = vmatpush1.msra.mxu0 0.0
        %2670 = vmatprep.subr.mxu0 0.0
        %2671 = vmatpush1.msra.mxu0 0.0
        %2672 = vmatprep.subr.mxu0 0.0
        %2673 = vmatpush1.msra.mxu0 0.0
        %2674 = vmatprep.subr.mxu0 0.0
        %2675 = vmatpush1.msra.mxu0 0.0
        %2676 = vmatprep.subr.mxu0 0.0
        %2677 = vmatpush1.msra.mxu0 0.0
        %2678 = vmatprep.mubr.f32.mxu0 0.0
        %2679 = vmatmul.mubr.f32.gmra.mrb[0].mxu0 %v2513
        %v2680 = vpop.f32.mrb[0].mxu0
        %v2681 = vadd.f32 0.0, %v2680
        %v2682 = vpop.f32.mrb[0].mxu0
        %2683 = vmatprep.mubr.f32.mxu0 0.0
        %2684 = vmatmul.mubr.f32.gmra.mrb[0].mxu0 %v2516
        %v2685 = vpop.f32.mrb[0].mxu0
        %v2686 = vadd.f32 0.0, %v2685
        %v2687 = vpop.f32.mrb[0].mxu0
        %2688 = vdwg.mxu0
        %2691 = vrot.lane.b32.xlu0 %v2681, 64
        %v2692 = vpop.permute.xlu0 %2691
        %2693 = vrot.lane.b32.xlu0 %v2686, 64
        %v2694 = vpop.permute.xlu0 %2693
        %2697 = vst.msk [vmem:[#allocation3] sm:$0xff] %vm2603, %v2692
        %2698 = vst.msk [vmem:[#allocation3 + $0x8] sm:$0x1] %vm2605, %v2694
        %2699 = vrot.lane.b32.xlu0 %v558, 32
        %v2700 = vpop.permute.xlu0 %2699
        %2701 = vrot.lane.b32.xlu0 %v563, 32
        %v2702 = vpop.permute.xlu0 %2701
        %v2703 = vsel %vm1066, %v2700, 0
        %v2705 = vsel %vm1066, %v2702, 0
        %2707 = vmatprep.subr.mxu0 0.0
        %2708 = vmatpush1.msra.mxu0 %v898
        %2709 = vmatprep.subr.mxu0 0.0
        %2710 = vmatpush1.msra.mxu0 %v903
        %2711 = vmatprep.subr.mxu0 0.0
        %2712 = vmatpush1.msra.mxu0 %v908
        %2713 = vmatprep.subr.mxu0 0.0
        %2714 = vmatpush1.msra.mxu0 %v913
        %2715 = vmatprep.subr.mxu0 0.0
        %2716 = vmatpush1.msra.mxu0 0.0
        %2717 = vmatprep.subr.mxu0 0.0
        %2718 = vmatpush1.msra.mxu0 0.0
        %2719 = vmatprep.subr.mxu0 0.0
        %2720 = vmatpush1.msra.mxu0 0.0
        %2721 = vmatprep.subr.mxu0 0.0
        %2722 = vmatpush1.msra.mxu0 0.0
        %2723 = vmatprep.subr.mxu0 0.0
        %2724 = vmatpush1.msra.mxu0 0.0
        %2725 = vmatprep.subr.mxu0 0.0
        %2726 = vmatpush1.msra.mxu0 0.0
        %2727 = vmatprep.subr.mxu0 0.0
        %2728 = vmatpush1.msra.mxu0 0.0
        %2729 = vmatprep.subr.mxu0 0.0
        %2730 = vmatpush1.msra.mxu0 0.0
        %2731 = vmatprep.subr.mxu0 0.0
        %2732 = vmatpush1.msra.mxu0 0.0
        %2733 = vmatprep.subr.mxu0 0.0
        %2734 = vmatpush1.msra.mxu0 0.0
        %2735 = vmatprep.subr.mxu0 0.0
        %2736 = vmatpush1.msra.mxu0 0.0
        %2737 = vmatprep.subr.mxu0 0.0
        %2738 = vmatpush1.msra.mxu0 0.0
        %2739 = vmatprep.subr.mxu0 0.0
        %2740 = vmatpush1.msra.mxu0 0.0
        %2741 = vmatprep.subr.mxu0 0.0
        %2742 = vmatpush1.msra.mxu0 0.0
        %2743 = vmatprep.subr.mxu0 0.0
        %2744 = vmatpush1.msra.mxu0 0.0
        %2745 = vmatprep.subr.mxu0 0.0
        %2746 = vmatpush1.msra.mxu0 0.0
        %2747 = vmatprep.subr.mxu0 0.0
        %2748 = vmatpush1.msra.mxu0 0.0
        %2749 = vmatprep.subr.mxu0 0.0
        %2750 = vmatpush1.msra.mxu0 0.0
        %2751 = vmatprep.subr.mxu0 0.0
        %2752 = vmatpush1.msra.mxu0 0.0
        %2753 = vmatprep.subr.mxu0 0.0
        %2754 = vmatpush1.msra.mxu0 0.0
        %2755 = vmatprep.subr.mxu0 0.0
        %2756 = vmatpush1.msra.mxu0 0.0
        %2757 = vmatprep.subr.mxu0 0.0
        %2758 = vmatpush1.msra.mxu0 0.0
        %2759 = vmatprep.subr.mxu0 0.0
        %2760 = vmatpush1.msra.mxu0 0.0
        %2761 = vmatprep.subr.mxu0 0.0
        %2762 = vmatpush1.msra.mxu0 0.0
        %2763 = vmatprep.subr.mxu0 0.0
        %2764 = vmatpush1.msra.mxu0 0.0
        %2765 = vmatprep.subr.mxu0 0.0
        %2766 = vmatpush1.msra.mxu0 0.0
        %2767 = vmatprep.subr.mxu0 0.0
        %2768 = vmatpush1.msra.mxu0 0.0
        %2769 = vmatprep.subr.mxu0 0.0
        %2770 = vmatpush1.msra.mxu0 0.0
        %2771 = vmatprep.mubr.f32.mxu0 0.0
        %2772 = vmatmul.mubr.f32.gmra.mrb[0].mxu0 %v2703
        %v2773 = vpop.f32.mrb[0].mxu0
        %v2774 = vadd.f32 0.0, %v2773
        %v2775 = vpop.f32.mrb[0].mxu0
        %2776 = vmatprep.mubr.f32.mxu0 0.0
        %2777 = vmatmul.mubr.f32.gmra.mrb[0].mxu0 %v2705
        %v2778 = vpop.f32.mrb[0].mxu0
        %v2779 = vadd.f32 0.0, %v2778
        %v2780 = vpop.f32.mrb[0].mxu0
        %2781 = vdwg.mxu0
        %2782 = vrot.lane.b32.xlu0 %v477, 32
        %v2783 = vpop.permute.xlu0 %2782
        %2784 = vrot.lane.b32.xlu0 %v482, 32
        %v2785 = vpop.permute.xlu0 %2784
        %v2786 = vsel %vm1066, %v2783, 0
        %v2788 = vsel %vm1066, %v2785, 0
        %2790 = vmatprep.subr.mxu0 0.0
        %2791 = vmatpush1.msra.mxu0 %v747
        %2792 = vmatprep.subr.mxu0 0.0
        %2793 = vmatpush1.msra.mxu0 %v752
        %2794 = vmatprep.subr.mxu0 0.0
        %2795 = vmatpush1.msra.mxu0 %v757
        %2796 = vmatprep.subr.mxu0 0.0
        %2797 = vmatpush1.msra.mxu0 %v762
        %2798 = vmatprep.subr.mxu0 0.0
        %2799 = vmatpush1.msra.mxu0 0.0
        %2800 = vmatprep.subr.mxu0 0.0
        %2801 = vmatpush1.msra.mxu0 0.0
        %2802 = vmatprep.subr.mxu0 0.0
        %2803 = vmatpush1.msra.mxu0 0.0
        %2804 = vmatprep.subr.mxu0 0.0
        %2805 = vmatpush1.msra.mxu0 0.0
        %2806 = vmatprep.subr.mxu0 0.0
        %2807 = vmatpush1.msra.mxu0 0.0
        %2808 = vmatprep.subr.mxu0 0.0
        %2809 = vmatpush1.msra.mxu0 0.0
        %2810 = vmatprep.subr.mxu0 0.0
        %2811 = vmatpush1.msra.mxu0 0.0
        %2812 = vmatprep.subr.mxu0 0.0
        %2813 = vmatpush1.msra.mxu0 0.0
        %2814 = vmatprep.subr.mxu0 0.0
        %2815 = vmatpush1.msra.mxu0 0.0
        %2816 = vmatprep.subr.mxu0 0.0
        %2817 = vmatpush1.msra.mxu0 0.0
        %2818 = vmatprep.subr.mxu0 0.0
        %2819 = vmatpush1.msra.mxu0 0.0
        %2820 = vmatprep.subr.mxu0 0.0
        %2821 = vmatpush1.msra.mxu0 0.0
        %2822 = vmatprep.subr.mxu0 0.0
        %2823 = vmatpush1.msra.mxu0 0.0
        %2824 = vmatprep.subr.mxu0 0.0
        %2825 = vmatpush1.msra.mxu0 0.0
        %2826 = vmatprep.subr.mxu0 0.0
        %2827 = vmatpush1.msra.mxu0 0.0
        %2828 = vmatprep.subr.mxu0 0.0
        %2829 = vmatpush1.msra.mxu0 0.0
        %2830 = vmatprep.subr.mxu0 0.0
        %2831 = vmatpush1.msra.mxu0 0.0
        %2832 = vmatprep.subr.mxu0 0.0
        %2833 = vmatpush1.msra.mxu0 0.0
        %2834 = vmatprep.subr.mxu0 0.0
        %2835 = vmatpush1.msra.mxu0 0.0
        %2836 = vmatprep.subr.mxu0 0.0
        %2837 = vmatpush1.msra.mxu0 0.0
        %2838 = vmatprep.subr.mxu0 0.0
        %2839 = vmatpush1.msra.mxu0 0.0
        %2840 = vmatprep.subr.mxu0 0.0
        %2841 = vmatpush1.msra.mxu0 0.0
        %2842 = vmatprep.subr.mxu0 0.0
        %2843 = vmatpush1.msra.mxu0 0.0
        %2844 = vmatprep.subr.mxu0 0.0
        %2845 = vmatpush1.msra.mxu0 0.0
        %2846 = vmatprep.subr.mxu0 0.0
        %2847 = vmatpush1.msra.mxu0 0.0
        %2848 = vmatprep.subr.mxu0 0.0
        %2849 = vmatpush1.msra.mxu0 0.0
        %2850 = vmatprep.subr.mxu0 0.0
        %2851 = vmatpush1.msra.mxu0 0.0
        %2852 = vmatprep.subr.mxu0 0.0
        %2853 = vmatpush1.msra.mxu0 0.0
        %2854 = vmatprep.mubr.f32.mxu0 0.0
        %2855 = vmatmul.mubr.f32.gmra.mrb[0].mxu0 %v2786
        %v2856 = vpop.f32.mrb[0].mxu0
        %v2857 = vadd.f32 %v2774, %v2856
        %v2858 = vpop.f32.mrb[0].mxu0
        %2859 = vmatprep.mubr.f32.mxu0 0.0
        %2860 = vmatmul.mubr.f32.gmra.mrb[0].mxu0 %v2788
        %v2861 = vpop.f32.mrb[0].mxu0
        %v2862 = vadd.f32 %v2779, %v2861
        %v2863 = vpop.f32.mrb[0].mxu0
        %2864 = vdwg.mxu0
        %2865 = vmatprep.subr.mxu0 0.0
        %2866 = vmatpush1.msra.mxu0 %v747
        %2867 = vmatprep.subr.mxu0 0.0
        %2868 = vmatpush1.msra.mxu0 %v752
        %2869 = vmatprep.subr.mxu0 0.0
        %2870 = vmatpush1.msra.mxu0 %v757
        %2871 = vmatprep.subr.mxu0 0.0
        %2872 = vmatpush1.msra.mxu0 %v762
        %2873 = vmatprep.subr.mxu0 0.0
        %2874 = vmatpush1.msra.mxu0 0.0
        %2875 = vmatprep.subr.mxu0 0.0
        %2876 = vmatpush1.msra.mxu0 0.0
        %2877 = vmatprep.subr.mxu0 0.0
        %2878 = vmatpush1.msra.mxu0 0.0
        %2879 = vmatprep.subr.mxu0 0.0
        %2880 = vmatpush1.msra.mxu0 0.0
        %2881 = vmatprep.subr.mxu0 0.0
        %2882 = vmatpush1.msra.mxu0 0.0
        %2883 = vmatprep.subr.mxu0 0.0
        %2884 = vmatpush1.msra.mxu0 0.0
        %2885 = vmatprep.subr.mxu0 0.0
        %2886 = vmatpush1.msra.mxu0 0.0
        %2887 = vmatprep.subr.mxu0 0.0
        %2888 = vmatpush1.msra.mxu0 0.0
        %2889 = vmatprep.subr.mxu0 0.0
        %2890 = vmatpush1.msra.mxu0 0.0
        %2891 = vmatprep.subr.mxu0 0.0
        %2892 = vmatpush1.msra.mxu0 0.0
        %2893 = vmatprep.subr.mxu0 0.0
        %2894 = vmatpush1.msra.mxu0 0.0
        %2895 = vmatprep.subr.mxu0 0.0
        %2896 = vmatpush1.msra.mxu0 0.0
        %2897 = vmatprep.subr.mxu0 0.0
        %2898 = vmatpush1.msra.mxu0 0.0
        %2899 = vmatprep.subr.mxu0 0.0
        %2900 = vmatpush1.msra.mxu0 0.0
        %2901 = vmatprep.subr.mxu0 0.0
        %2902 = vmatpush1.msra.mxu0 0.0
        %2903 = vmatprep.subr.mxu0 0.0
        %2904 = vmatpush1.msra.mxu0 0.0
        %2905 = vmatprep.subr.mxu0 0.0
        %2906 = vmatpush1.msra.mxu0 0.0
        %2907 = vmatprep.subr.mxu0 0.0
        %2908 = vmatpush1.msra.mxu0 0.0
        %2909 = vmatprep.subr.mxu0 0.0
        %2910 = vmatpush1.msra.mxu0 0.0
        %2911 = vmatprep.subr.mxu0 0.0
        %2912 = vmatpush1.msra.mxu0 0.0
        %2913 = vmatprep.subr.mxu0 0.0
        %2914 = vmatpush1.msra.mxu0 0.0
        %2915 = vmatprep.subr.mxu0 0.0
        %2916 = vmatpush1.msra.mxu0 0.0
        %2917 = vmatprep.subr.mxu0 0.0
        %2918 = vmatpush1.msra.mxu0 0.0
        %2919 = vmatprep.subr.mxu0 0.0
        %2920 = vmatpush1.msra.mxu0 0.0
        %2921 = vmatprep.subr.mxu0 0.0
        %2922 = vmatpush1.msra.mxu0 0.0
        %2923 = vmatprep.subr.mxu0 0.0
        %2924 = vmatpush1.msra.mxu0 0.0
        %2925 = vmatprep.subr.mxu0 0.0
        %2926 = vmatpush1.msra.mxu0 0.0
        %2927 = vmatprep.subr.mxu0 0.0
        %2928 = vmatpush1.msra.mxu0 0.0
        %2929 = vmatprep.mubr.f32.mxu0 0.0
        %2930 = vmatmul.mubr.f32.gmra.mrb[0].mxu0 %v2703
        %v2931 = vpop.f32.mrb[0].mxu0
        %v2932 = vadd.f32 0.0, %v2931
        %v2933 = vpop.f32.mrb[0].mxu0
        %2934 = vmatprep.mubr.f32.mxu0 0.0
        %2935 = vmatmul.mubr.f32.gmra.mrb[0].mxu0 %v2705
        %v2936 = vpop.f32.mrb[0].mxu0
        %v2937 = vadd.f32 0.0, %v2936
        %v2938 = vpop.f32.mrb[0].mxu0
        %2939 = vdwg.mxu0
        %2940 = vmatprep.subr.mxu0 0.0
        %2941 = vmatpush1.msra.mxu0 %v898
        %2942 = vmatprep.subr.mxu0 0.0
        %2943 = vmatpush1.msra.mxu0 %v903
        %2944 = vmatprep.subr.mxu0 0.0
        %2945 = vmatpush1.msra.mxu0 %v908
        %2946 = vmatprep.subr.mxu0 0.0
        %2947 = vmatpush1.msra.mxu0 %v913
        %2948 = vmatprep.subr.mxu0 0.0
        %2949 = vmatpush1.msra.mxu0 0.0
        %2950 = vmatprep.subr.mxu0 0.0
        %2951 = vmatpush1.msra.mxu0 0.0
        %2952 = vmatprep.subr.mxu0 0.0
        %2953 = vmatpush1.msra.mxu0 0.0
        %2954 = vmatprep.subr.mxu0 0.0
        %2955 = vmatpush1.msra.mxu0 0.0
        %2956 = vmatprep.subr.mxu0 0.0
        %2957 = vmatpush1.msra.mxu0 0.0
        %2958 = vmatprep.subr.mxu0 0.0
        %2959 = vmatpush1.msra.mxu0 0.0
        %2960 = vmatprep.subr.mxu0 0.0
        %2961 = vmatpush1.msra.mxu0 0.0
        %2962 = vmatprep.subr.mxu0 0.0
        %2963 = vmatpush1.msra.mxu0 0.0
        %2964 = vmatprep.subr.mxu0 0.0
        %2965 = vmatpush1.msra.mxu0 0.0
        %2966 = vmatprep.subr.mxu0 0.0
        %2967 = vmatpush1.msra.mxu0 0.0
        %2968 = vmatprep.subr.mxu0 0.0
        %2969 = vmatpush1.msra.mxu0 0.0
        %2970 = vmatprep.subr.mxu0 0.0
        %2971 = vmatpush1.msra.mxu0 0.0
        %2972 = vmatprep.subr.mxu0 0.0
        %2973 = vmatpush1.msra.mxu0 0.0
        %2974 = vmatprep.subr.mxu0 0.0
        %2975 = vmatpush1.msra.mxu0 0.0
        %2976 = vmatprep.subr.mxu0 0.0
        %2977 = vmatpush1.msra.mxu0 0.0
        %2978 = vmatprep.subr.mxu0 0.0
        %2979 = vmatpush1.msra.mxu0 0.0
        %2980 = vmatprep.subr.mxu0 0.0
        %2981 = vmatpush1.msra.mxu0 0.0
        %2982 = vmatprep.subr.mxu0 0.0
        %2983 = vmatpush1.msra.mxu0 0.0
        %2984 = vmatprep.subr.mxu0 0.0
        %2985 = vmatpush1.msra.mxu0 0.0
        %2986 = vmatprep.subr.mxu0 0.0
        %2987 = vmatpush1.msra.mxu0 0.0
        %2988 = vmatprep.subr.mxu0 0.0
        %2989 = vmatpush1.msra.mxu0 0.0
        %2990 = vmatprep.subr.mxu0 0.0
        %2991 = vmatpush1.msra.mxu0 0.0
        %2992 = vmatprep.subr.mxu0 0.0
        %2993 = vmatpush1.msra.mxu0 0.0
        %2994 = vmatprep.subr.mxu0 0.0
        %2995 = vmatpush1.msra.mxu0 0.0
        %2996 = vmatprep.subr.mxu0 0.0
        %2997 = vmatpush1.msra.mxu0 0.0
        %2998 = vmatprep.subr.mxu0 0.0
        %2999 = vmatpush1.msra.mxu0 0.0
        %3000 = vmatprep.subr.mxu0 0.0
        %3001 = vmatpush1.msra.mxu0 0.0
        %3002 = vmatprep.subr.mxu0 0.0
        %3003 = vmatpush1.msra.mxu0 0.0
        %3004 = vmatprep.mubr.f32.mxu0 0.0
        %3005 = vmatmul.mubr.f32.gmra.mrb[0].mxu0 %v2786
        %v3006 = vpop.f32.mrb[0].mxu0
        %v3007 = vadd.f32 0.0, %v3006
        %v3008 = vpop.f32.mrb[0].mxu0
        %3009 = vmatprep.mubr.f32.mxu0 0.0
        %3010 = vmatmul.mubr.f32.gmra.mrb[0].mxu0 %v2788
        %v3011 = vpop.f32.mrb[0].mxu0
        %v3012 = vadd.f32 0.0, %v3011
        %v3013 = vpop.f32.mrb[0].mxu0
        %3014 = vdwg.mxu0
        %v3015 = vsub.f32 %v2932, %v3007
        %v3016 = vsub.f32 %v2937, %v3012
        %v3017 = vmul.f32 %v2857, %v2857
        %v3018 = vmul.f32 %v2862, %v2862
        %v3019 = vmul.f32 %v3015, %v3015
        %v3020 = vmul.f32 %v3016, %v3016
        %v3021 = vadd.f32 %v3017, %v3019
        %v3022 = vadd.f32 %v3018, %v3020
        %v3023 = vrsqrt.pop %v3021
        %v3024 = vmul.f32 %v3021, %v3023
        %vm3025 = vcmp.eq.f32.partialorder %v3021, inf
        %v3026 = vsel %vm3025, %v3021, %v3024
        %vm3027 = vcmp.eq.f32.partialorder %v3021, 0.0
        %v3028 = vand.u32 %v3021, 2147483648
        %v3029 = vsel %vm3027, %v3028, %v3026
        %v3030 = vrsqrt.pop %v3022
        %v3031 = vmul.f32 %v3022, %v3030
        %vm3032 = vcmp.eq.f32.partialorder %v3022, inf
        %v3033 = vsel %vm3032, %v3022, %v3031
        %vm3034 = vcmp.eq.f32.partialorder %v3022, 0.0
        %v3035 = vand.u32 %v3022, 2147483648
        %v3036 = vsel %vm3034, %v3035, %v3033
        %v3037 = vsel %vm1401, %v3029, -inf
        %3038 = vmax.xlane.f32.xlu0 %v3037
        %v3039 = vpop.xlane.xlu0 %3038
        %v3040 = vsel %vm1405, %v3036, -inf
        %3041 = vmax.xlane.f32.xlu0 %v3040
        %v3042 = vpop.xlane.xlu0 %3041
        %v3043 = vsub.f32 %v3029, %v3039
        %v3044 = vsub.f32 %v3036, %v3042
        %v3045 = vmul.f32 %v3043, 1.442695
        %v3046 = vpow.pop %v3045
        %v3047 = vmul.f32 %v3044, 1.442695
        %v3048 = vpow.pop %v3047
        %v3049 = vsel %vm1401, %v3046, 0.0
        %3050 = vadd.xlane.f32.xlu0 %v3049
        %v3051 = vpop.xlane.xlu0 %3050
        %v3052 = vsel %vm1405, %v3048, 0.0
        %3053 = vadd.xlane.f32.xlu0 %v3052
        %v3054 = vpop.xlane.xlu0 %3053
        %v3055 = vrcp.pop %v3051
        %v3056 = vmul.f32 %v3046, %v3055
        %v3057 = vrcp.pop %v3054
        %v3058 = vmul.f32 %v3048, %v3057
        %3059 = vrot.lane.b32.xlu0 %v983, 32
        %v3060 = vpop.permute.xlu0 %3059
        %3061 = vrot.lane.b32.xlu0 %v988, 32
        %v3062 = vpop.permute.xlu0 %3061
        %v3065 = vsel %vm1401, %v3056, 0
        %v3068 = vsel %vm1401, %v3058, 0
        %v3070 = vsel %vm1431, %v3062, 0
        %3072 = vmatprep.subr.mxu0 0.0
        %3073 = vmatpush1.msra.mxu0 %v3060
        %3074 = vmatprep.subr.mxu0 0.0
        %3075 = vmatpush1.msra.mxu0 %v3070
        %3076 = vmatprep.subr.mxu0 0.0
        %3077 = vmatpush1.msra.mxu0 0.0
        %3078 = vmatprep.subr.mxu0 0.0
        %3079 = vmatpush1.msra.mxu0 0.0
        %3080 = vmatprep.subr.mxu0 0.0
        %3081 = vmatpush1.msra.mxu0 0.0
        %3082 = vmatprep.subr.mxu0 0.0
        %3083 = vmatpush1.msra.mxu0 0.0
        %3084 = vmatprep.subr.mxu0 0.0
        %3085 = vmatpush1.msra.mxu0 0.0
        %3086 = vmatprep.subr.mxu0 0.0
        %3087 = vmatpush1.msra.mxu0 0.0
        %3088 = vmatprep.subr.mxu0 0.0
        %3089 = vmatpush1.msra.mxu0 0.0
        %3090 = vmatprep.subr.mxu0 0.0
        %3091 = vmatpush1.msra.mxu0 0.0
        %3092 = vmatprep.subr.mxu0 0.0
        %3093 = vmatpush1.msra.mxu0 0.0
        %3094 = vmatprep.subr.mxu0 0.0
        %3095 = vmatpush1.msra.mxu0 0.0
        %3096 = vmatprep.subr.mxu0 0.0
        %3097 = vmatpush1.msra.mxu0 0.0
        %3098 = vmatprep.subr.mxu0 0.0
        %3099 = vmatpush1.msra.mxu0 0.0
        %3100 = vmatprep.subr.mxu0 0.0
        %3101 = vmatpush1.msra.mxu0 0.0
        %3102 = vmatprep.subr.mxu0 0.0
        %3103 = vmatpush1.msra.mxu0 0.0
        %3104 = vmatprep.subr.mxu0 0.0
        %3105 = vmatpush1.msra.mxu0 0.0
        %3106 = vmatprep.subr.mxu0 0.0
        %3107 = vmatpush1.msra.mxu0 0.0
        %3108 = vmatprep.subr.mxu0 0.0
        %3109 = vmatpush1.msra.mxu0 0.0
        %3110 = vmatprep.subr.mxu0 0.0
        %3111 = vmatpush1.msra.mxu0 0.0
        %3112 = vmatprep.subr.mxu0 0.0
        %3113 = vmatpush1.msra.mxu0 0.0
        %3114 = vmatprep.subr.mxu0 0.0
        %3115 = vmatpush1.msra.mxu0 0.0
        %3116 = vmatprep.subr.mxu0 0.0
        %3117 = vmatpush1.msra.mxu0 0.0
        %3118 = vmatprep.subr.mxu0 0.0
        %3119 = vmatpush1.msra.mxu0 0.0
        %3120 = vmatprep.subr.mxu0 0.0
        %3121 = vmatpush1.msra.mxu0 0.0
        %3122 = vmatprep.subr.mxu0 0.0
        %3123 = vmatpush1.msra.mxu0 0.0
        %3124 = vmatprep.subr.mxu0 0.0
        %3125 = vmatpush1.msra.mxu0 0.0
        %3126 = vmatprep.subr.mxu0 0.0
        %3127 = vmatpush1.msra.mxu0 0.0
        %3128 = vmatprep.subr.mxu0 0.0
        %3129 = vmatpush1.msra.mxu0 0.0
        %3130 = vmatprep.subr.mxu0 0.0
        %3131 = vmatpush1.msra.mxu0 0.0
        %3132 = vmatprep.subr.mxu0 0.0
        %3133 = vmatpush1.msra.mxu0 0.0
        %3134 = vmatprep.subr.mxu0 0.0
        %3135 = vmatpush1.msra.mxu0 0.0
        %3136 = vmatprep.mubr.f32.mxu0 0.0
        %3137 = vmatmul.mubr.f32.gmra.mrb[0].mxu0 %v3065
        %v3138 = vpop.f32.mrb[0].mxu0
        %v3139 = vadd.f32 0.0, %v3138
        %v3140 = vpop.f32.mrb[0].mxu0
        %3141 = vmatprep.mubr.f32.mxu0 0.0
        %3142 = vmatmul.mubr.f32.gmra.mrb[0].mxu0 %v3068
        %v3143 = vpop.f32.mrb[0].mxu0
        %v3144 = vadd.f32 0.0, %v3143
        %v3145 = vpop.f32.mrb[0].mxu0
        %3146 = vdwg.mxu0
        %3149 = vrot.lane.b32.xlu0 %v3139, 96
        %v3150 = vpop.permute.xlu0 %3149
        %3151 = vrot.lane.b32.xlu0 %v3144, 96
        %v3152 = vpop.permute.xlu0 %3151
        %vm3155 = vcmask 1048320
        %3156 = vst.msk [vmem:[#allocation2] sm:$0xff] %vm3155, %v3150
        %vm3157 = vcmask 1041152
        %3158 = vst.msk [vmem:[#allocation2 + $0x8] sm:$0x1] %vm3157, %v3152
        %3159 = vrot.lane.b32.xlu0 %v1058, 32
        %v3160 = vpop.permute.xlu0 %3159
        %3161 = vrot.lane.b32.xlu0 %v1063, 32
        %v3162 = vpop.permute.xlu0 %3161
        %v3164 = vsel %vm1431, %v3162, 0
        %3166 = vmatprep.subr.mxu0 0.0
        %3167 = vmatpush1.msra.mxu0 %v3160
        %3168 = vmatprep.subr.mxu0 0.0
        %3169 = vmatpush1.msra.mxu0 %v3164
        %3170 = vmatprep.subr.mxu0 0.0
        %3171 = vmatpush1.msra.mxu0 0.0
        %3172 = vmatprep.subr.mxu0 0.0
        %3173 = vmatpush1.msra.mxu0 0.0
        %3174 = vmatprep.subr.mxu0 0.0
        %3175 = vmatpush1.msra.mxu0 0.0
        %3176 = vmatprep.subr.mxu0 0.0
        %3177 = vmatpush1.msra.mxu0 0.0
        %3178 = vmatprep.subr.mxu0 0.0
        %3179 = vmatpush1.msra.mxu0 0.0
        %3180 = vmatprep.subr.mxu0 0.0
        %3181 = vmatpush1.msra.mxu0 0.0
        %3182 = vmatprep.subr.mxu0 0.0
        %3183 = vmatpush1.msra.mxu0 0.0
        %3184 = vmatprep.subr.mxu0 0.0
        %3185 = vmatpush1.msra.mxu0 0.0
        %3186 = vmatprep.subr.mxu0 0.0
        %3187 = vmatpush1.msra.mxu0 0.0
        %3188 = vmatprep.subr.mxu0 0.0
        %3189 = vmatpush1.msra.mxu0 0.0
        %3190 = vmatprep.subr.mxu0 0.0
        %3191 = vmatpush1.msra.mxu0 0.0
        %3192 = vmatprep.subr.mxu0 0.0
        %3193 = vmatpush1.msra.mxu0 0.0
        %3194 = vmatprep.subr.mxu0 0.0
        %3195 = vmatpush1.msra.mxu0 0.0
        %3196 = vmatprep.subr.mxu0 0.0
        %3197 = vmatpush1.msra.mxu0 0.0
        %3198 = vmatprep.subr.mxu0 0.0
        %3199 = vmatpush1.msra.mxu0 0.0
        %3200 = vmatprep.subr.mxu0 0.0
        %3201 = vmatpush1.msra.mxu0 0.0
        %3202 = vmatprep.subr.mxu0 0.0
        %3203 = vmatpush1.msra.mxu0 0.0
        %3204 = vmatprep.subr.mxu0 0.0
        %3205 = vmatpush1.msra.mxu0 0.0
        %3206 = vmatprep.subr.mxu0 0.0
        %3207 = vmatpush1.msra.mxu0 0.0
        %3208 = vmatprep.subr.mxu0 0.0
        %3209 = vmatpush1.msra.mxu0 0.0
        %3210 = vmatprep.subr.mxu0 0.0
        %3211 = vmatpush1.msra.mxu0 0.0
        %3212 = vmatprep.subr.mxu0 0.0
        %3213 = vmatpush1.msra.mxu0 0.0
        %3214 = vmatprep.subr.mxu0 0.0
        %3215 = vmatpush1.msra.mxu0 0.0
        %3216 = vmatprep.subr.mxu0 0.0
        %3217 = vmatpush1.msra.mxu0 0.0
        %3218 = vmatprep.subr.mxu0 0.0
        %3219 = vmatpush1.msra.mxu0 0.0
        %3220 = vmatprep.subr.mxu0 0.0
        %3221 = vmatpush1.msra.mxu0 0.0
        %3222 = vmatprep.subr.mxu0 0.0
        %3223 = vmatpush1.msra.mxu0 0.0
        %3224 = vmatprep.subr.mxu0 0.0
        %3225 = vmatpush1.msra.mxu0 0.0
        %3226 = vmatprep.subr.mxu0 0.0
        %3227 = vmatpush1.msra.mxu0 0.0
        %3228 = vmatprep.subr.mxu0 0.0
        %3229 = vmatpush1.msra.mxu0 0.0
        %3230 = vmatprep.mubr.f32.mxu0 0.0
        %3231 = vmatmul.mubr.f32.gmra.mrb[0].mxu0 %v3065
        %v3232 = vpop.f32.mrb[0].mxu0
        %v3233 = vadd.f32 0.0, %v3232
        %v3234 = vpop.f32.mrb[0].mxu0
        %3235 = vmatprep.mubr.f32.mxu0 0.0
        %3236 = vmatmul.mubr.f32.gmra.mrb[0].mxu0 %v3068
        %v3237 = vpop.f32.mrb[0].mxu0
        %v3238 = vadd.f32 0.0, %v3237
        %v3239 = vpop.f32.mrb[0].mxu0
        %3240 = vdwg.mxu0
        %3243 = vrot.lane.b32.xlu0 %v3233, 96
        %v3244 = vpop.permute.xlu0 %3243
        %3245 = vrot.lane.b32.xlu0 %v3238, 96
        %v3246 = vpop.permute.xlu0 %3245
        %3249 = vst.msk [vmem:[#allocation3] sm:$0xff] %vm3155, %v3244
        %3250 = vst.msk [vmem:[#allocation3 + $0x8] sm:$0x1] %vm3157, %v3246
        %v3251 = vld [vmem:[#allocation2] sm:$0xff]
        %v3252 = vld [vmem:[#allocation2 + $0x8] sm:$0x1]
        %v3253 = vld [vmem:[#allocation3] sm:$0xff]
        %v3254 = vld [vmem:[#allocation3 + $0x8] sm:$0x1]
        %v3256 = vsel %vm1401, %v401, 0
        %v3259 = vsel %vm1401, %v402, 0
        %v3262 = vsel %vm1431, %v3254, 0
        %3264 = vmatprep.subr.mxu0 0.0
        %3265 = vmatpush1.msra.mxu0 %v3253
        %3266 = vmatprep.subr.mxu0 0.0
        %3267 = vmatpush1.msra.mxu0 %v3262
        %3268 = vmatprep.subr.mxu0 0.0
        %3269 = vmatpush1.msra.mxu0 0.0
        %3270 = vmatprep.subr.mxu0 0.0
        %3271 = vmatpush1.msra.mxu0 0.0
        %3272 = vmatprep.subr.mxu0 0.0
        %3273 = vmatpush1.msra.mxu0 0.0
        %3274 = vmatprep.subr.mxu0 0.0
        %3275 = vmatpush1.msra.mxu0 0.0
        %3276 = vmatprep.subr.mxu0 0.0
        %3277 = vmatpush1.msra.mxu0 0.0
        %3278 = vmatprep.subr.mxu0 0.0
        %3279 = vmatpush1.msra.mxu0 0.0
        %3280 = vmatprep.subr.mxu0 0.0
        %3281 = vmatpush1.msra.mxu0 0.0
        %3282 = vmatprep.subr.mxu0 0.0
        %3283 = vmatpush1.msra.mxu0 0.0
        %3284 = vmatprep.subr.mxu0 0.0
        %3285 = vmatpush1.msra.mxu0 0.0
        %3286 = vmatprep.subr.mxu0 0.0
        %3287 = vmatpush1.msra.mxu0 0.0
        %3288 = vmatprep.subr.mxu0 0.0
        %3289 = vmatpush1.msra.mxu0 0.0
        %3290 = vmatprep.subr.mxu0 0.0
        %3291 = vmatpush1.msra.mxu0 0.0
        %3292 = vmatprep.subr.mxu0 0.0
        %3293 = vmatpush1.msra.mxu0 0.0
        %3294 = vmatprep.subr.mxu0 0.0
        %3295 = vmatpush1.msra.mxu0 0.0
        %3296 = vmatprep.subr.mxu0 0.0
        %3297 = vmatpush1.msra.mxu0 0.0
        %3298 = vmatprep.subr.mxu0 0.0
        %3299 = vmatpush1.msra.mxu0 0.0
        %3300 = vmatprep.subr.mxu0 0.0
        %3301 = vmatpush1.msra.mxu0 0.0
        %3302 = vmatprep.subr.mxu0 0.0
        %3303 = vmatpush1.msra.mxu0 0.0
        %3304 = vmatprep.subr.mxu0 0.0
        %3305 = vmatpush1.msra.mxu0 0.0
        %3306 = vmatprep.subr.mxu0 0.0
        %3307 = vmatpush1.msra.mxu0 0.0
        %3308 = vmatprep.subr.mxu0 0.0
        %3309 = vmatpush1.msra.mxu0 0.0
        %3310 = vmatprep.subr.mxu0 0.0
        %3311 = vmatpush1.msra.mxu0 0.0
        %3312 = vmatprep.subr.mxu0 0.0
        %3313 = vmatpush1.msra.mxu0 0.0
        %3314 = vmatprep.subr.mxu0 0.0
        %3315 = vmatpush1.msra.mxu0 0.0
        %3316 = vmatprep.subr.mxu0 0.0
        %3317 = vmatpush1.msra.mxu0 0.0
        %3318 = vmatprep.subr.mxu0 0.0
        %3319 = vmatpush1.msra.mxu0 0.0
        %3320 = vmatprep.subr.mxu0 0.0
        %3321 = vmatpush1.msra.mxu0 0.0
        %3322 = vmatprep.subr.mxu0 0.0
        %3323 = vmatpush1.msra.mxu0 0.0
        %3324 = vmatprep.subr.mxu0 0.0
        %3325 = vmatpush1.msra.mxu0 0.0
        %3326 = vmatprep.subr.mxu0 0.0
        %3327 = vmatpush1.msra.mxu0 0.0
        %3328 = vmatprep.mubr.f32.mxu0 0.0
        %3329 = vmatmul.mubr.f32.gmra.mrb[0].mxu0 %v3256
        %v3330 = vpop.f32.mrb[0].mxu0
        %v3331 = vadd.f32 0.0, %v3330
        %v3332 = vpop.f32.mrb[0].mxu0
        %3333 = vmatprep.mubr.f32.mxu0 0.0
        %3334 = vmatmul.mubr.f32.gmra.mrb[0].mxu0 %v3259
        %v3335 = vpop.f32.mrb[0].mxu0
        %v3336 = vadd.f32 0.0, %v3335
        %v3337 = vpop.f32.mrb[0].mxu0
        %3338 = vdwg.mxu0
        %v3340 = vsel %vm1401, %v399, 0
        %v3343 = vsel %vm1401, %v400, 0
        %v3346 = vsel %vm1431, %v3252, 0
        %3348 = vmatprep.subr.mxu0 0.0
        %3349 = vmatpush1.msra.mxu0 %v3251
        %3350 = vmatprep.subr.mxu0 0.0
        %3351 = vmatpush1.msra.mxu0 %v3346
        %3352 = vmatprep.subr.mxu0 0.0
        %3353 = vmatpush1.msra.mxu0 0.0
        %3354 = vmatprep.subr.mxu0 0.0
        %3355 = vmatpush1.msra.mxu0 0.0
        %3356 = vmatprep.subr.mxu0 0.0
        %3357 = vmatpush1.msra.mxu0 0.0
        %3358 = vmatprep.subr.mxu0 0.0
        %3359 = vmatpush1.msra.mxu0 0.0
        %3360 = vmatprep.subr.mxu0 0.0
        %3361 = vmatpush1.msra.mxu0 0.0
        %3362 = vmatprep.subr.mxu0 0.0
        %3363 = vmatpush1.msra.mxu0 0.0
        %3364 = vmatprep.subr.mxu0 0.0
        %3365 = vmatpush1.msra.mxu0 0.0
        %3366 = vmatprep.subr.mxu0 0.0
        %3367 = vmatpush1.msra.mxu0 0.0
        %3368 = vmatprep.subr.mxu0 0.0
        %3369 = vmatpush1.msra.mxu0 0.0
        %3370 = vmatprep.subr.mxu0 0.0
        %3371 = vmatpush1.msra.mxu0 0.0
        %3372 = vmatprep.subr.mxu0 0.0
        %3373 = vmatpush1.msra.mxu0 0.0
        %3374 = vmatprep.subr.mxu0 0.0
        %3375 = vmatpush1.msra.mxu0 0.0
        %3376 = vmatprep.subr.mxu0 0.0
        %3377 = vmatpush1.msra.mxu0 0.0
        %3378 = vmatprep.subr.mxu0 0.0
        %3379 = vmatpush1.msra.mxu0 0.0
        %3380 = vmatprep.subr.mxu0 0.0
        %3381 = vmatpush1.msra.mxu0 0.0
        %3382 = vmatprep.subr.mxu0 0.0
        %3383 = vmatpush1.msra.mxu0 0.0
        %3384 = vmatprep.subr.mxu0 0.0
        %3385 = vmatpush1.msra.mxu0 0.0
        %3386 = vmatprep.subr.mxu0 0.0
        %3387 = vmatpush1.msra.mxu0 0.0
        %3388 = vmatprep.subr.mxu0 0.0
        %3389 = vmatpush1.msra.mxu0 0.0
        %3390 = vmatprep.subr.mxu0 0.0
        %3391 = vmatpush1.msra.mxu0 0.0
        %3392 = vmatprep.subr.mxu0 0.0
        %3393 = vmatpush1.msra.mxu0 0.0
        %3394 = vmatprep.subr.mxu0 0.0
        %3395 = vmatpush1.msra.mxu0 0.0
        %3396 = vmatprep.subr.mxu0 0.0
        %3397 = vmatpush1.msra.mxu0 0.0
        %3398 = vmatprep.subr.mxu0 0.0
        %3399 = vmatpush1.msra.mxu0 0.0
        %3400 = vmatprep.subr.mxu0 0.0
        %3401 = vmatpush1.msra.mxu0 0.0
        %3402 = vmatprep.subr.mxu0 0.0
        %3403 = vmatpush1.msra.mxu0 0.0
        %3404 = vmatprep.subr.mxu0 0.0
        %3405 = vmatpush1.msra.mxu0 0.0
        %3406 = vmatprep.subr.mxu0 0.0
        %3407 = vmatpush1.msra.mxu0 0.0
        %3408 = vmatprep.subr.mxu0 0.0
        %3409 = vmatpush1.msra.mxu0 0.0
        %3410 = vmatprep.subr.mxu0 0.0
        %3411 = vmatpush1.msra.mxu0 0.0
        %3412 = vmatprep.mubr.f32.mxu0 0.0
        %3413 = vmatmul.mubr.f32.gmra.mrb[0].mxu0 %v3340
        %v3414 = vpop.f32.mrb[0].mxu0
        %v3415 = vadd.f32 %v3331, %v3414
        %v3416 = vpop.f32.mrb[0].mxu0
        %3417 = vmatprep.mubr.f32.mxu0 0.0
        %3418 = vmatmul.mubr.f32.gmra.mrb[0].mxu0 %v3343
        %v3419 = vpop.f32.mrb[0].mxu0
        %v3420 = vadd.f32 %v3336, %v3419
        %v3421 = vpop.f32.mrb[0].mxu0
        %3422 = vdwg.mxu0
        %3423 = vst [vmem:[%s355] sm:$0xff] %v3415
        %3424 = vst [vmem:[%s355 + $0x8] sm:$0xff] %v3420
        %s3425 = sand.u32 %s235, 1
        %s3426 = scalar_lea.sflag [#allocation5], %s3425
        %s3427 = sand.u32 %s235, 1
        %s3428 = smul.addr %s3427, 16
        %s3429 = scalar_lea.vmem [#allocation4], %s3428
        // Predicated region
        $region57: #{tpu_custom_call.1} parent=55 // pred_check
          %p3430 = pneg %p245
        $region58: #{tpu_custom_call.1} parent=55 // pred_check_branch
          %3432 = sbr.rel (%p3430) target = $region60
        $region59: #{tpu_custom_call.1} parent=55 // pred_region
          %s3434 = ssub.s32 256, 256
          %3435 = vsyncadd %s3426, %s3434
          %s3436 = smul.addr %s23, 2
          %s3437 = smul.addr %s3436, 128
          %s3438 = scalar_lea.hbm %s9, %s3437
          %s3439 = sshll.u32 %s3429, 4
          %s3440 = int_to_ptr.vmem [resolvable:$true] %s3439
          %3445 = dma.vmem_to_hbm [thread:$0]  %s3440, 256, %s3438, %s3426, 128, 128, 8
        $region60: #{tpu_custom_call.1} parent=55 // pred_fallthru
          _
      $region56: #{tpu_custom_call.1} parent=5 // pred_fallthru
        _
      %p3446 = scmp.le.s32.totalorder 2, %s18
      // Predicated region
      $region61: #{tpu_custom_call.1} parent=5 // pred_check
        %p3447 = pneg %p3446
      $region62: #{tpu_custom_call.1} parent=5 // pred_check_branch
        %3449 = sbr.rel (%p3447) target = $region64
      $region63: #{tpu_custom_call.1} parent=5 // pred_region
        %s3450 = ssub.s32 %s18, 2
        // Predicated region
        $region65: #{tpu_custom_call.1} parent=63 // pred_check
          %p3451 = pneg %p251
        $region66: #{tpu_custom_call.1} parent=63 // pred_check_branch
          %3453 = sbr.rel (%p3451) target = $region68
        $region67: #{tpu_custom_call.1} parent=63 // pred_region
          %s3454 = sand.u32 %s236, 1
          %s3455 = scalar_lea.sflag [#allocation5], %s3454
          %s3456 = sand.u32 %s236, 1
          %s3457 = smul.addr %s3456, 16
          %s3458 = scalar_lea.vmem [#allocation4], %s3457
          %3459 = dma.done %s3455, 256
        $region68: #{tpu_custom_call.1} parent=63 // pred_fallthru
          _
      $region64: #{tpu_custom_call.1} parent=5 // pred_fallthru
        _
    $region6: #{tpu_custom_call.1} parent=1 // loop_footer
      %s22 = sadd.s32 1, %s18
    $region7: #{tpu_custom_call.1} parent=1 // loop_footer_branch
      %17 = sbr.rel target = $region3
    $region8: #{tpu_custom_call.1} parent=1 // loop_exit
      _
    %3460 = vsyncpa [#allocation5], 1
    %s3461 = scalar_lea.sflag [#allocation5], 1
    %3462 = vsyncpa %s3461, 1

</llo_original>
